<compile_context>
chip_gen: v6e
topology: v6e:2x2x1
jax: 0.10.0
libtpu: 0.0.40
codegen_flags: <defaults>
</compile_context>

<pallas_src>
import functools

import jax
import jax.numpy as jnp
from jax.experimental import pallas as pl
from jax.experimental.pallas import tpu as pltpu


def _attention_kernel(x_ref, gamma_ref, beta_ref, gmat_ref,
                      wqkv_ref, bqkv_ref, wout_ref, bout_ref, o_ref,
                      *, heads: int, dim_head: int, eps: float):
    # x_ref: (1, C, N) f32 ; o_ref: (1, C, N) f32
    C = x_ref.shape[1]
    N = x_ref.shape[2]
    hidden = heads * dim_head

    x = x_ref[0]                                            # (C, N) f32

    # ---- GroupNorm(32, C, eps) ------------------------------------------
    # Reduce over N (lanes) first, then a tiny (C,C)@(C,1) group matvec.
    s1 = jnp.sum(x, axis=-1, keepdims=True)                 # (C, 1) sum x
    s2 = jnp.sum(x * x, axis=-1, keepdims=True)             # (C, 1) sum x^2
    gmat = gmat_ref[...]                                     # (C, C): 1/(cg*N) within group
    mean = jnp.dot(gmat, s1, preferred_element_type=jnp.float32)   # (C,1) group E[x]
    msq = jnp.dot(gmat, s2, preferred_element_type=jnp.float32)    # (C,1) group E[x^2]
    var = msq - mean * mean                                  # biased variance
    inv = jax.lax.rsqrt(var + eps)                           # (C, 1)
    h = (x - mean) * (inv * gamma_ref[...]) + beta_ref[...]  # (C, N) f32

    # ---- to_qkv: 1x1 conv == (3*hidden, C) @ (C, N), bf16 operands --------
    qkv = jnp.dot(wqkv_ref[...], h.astype(jnp.bfloat16),
                  preferred_element_type=jnp.float32)        # (3*hidden, N) f32
    qkv = qkv + bqkv_ref[...]
    # Scale already folded into the Q rows of W_qkv / b_qkv (wrapper).
    q = qkv[0:hidden, :].reshape(heads, dim_head, N).astype(jnp.bfloat16)
    k = qkv[hidden:2 * hidden, :].reshape(heads, dim_head, N).astype(jnp.bfloat16)
    v = qkv[2 * hidden:3 * hidden, :].reshape(heads, dim_head, N).astype(jnp.bfloat16)

    # ---- attention --------------------------------------------------------
    # sim[h,i,j] = sum_d q[h,d,i] * k[h,d,j]  (no transposes; contract dim_head)
    sim = jax.lax.dot_general(q, k, (((1,), (1,)), ((0,), (0,))),
                              preferred_element_type=jnp.float32)   # (h, N, N) f32

    # Softmax with deferred normalization (all f32 on the VPU/EUP/XLU).
    m = jnp.max(sim, axis=-1, keepdims=True)                 # (h, N, 1)
    p = jnp.exp(sim - m)                                     # (h, N, N) f32
    l = jnp.sum(p, axis=-1)                                  # (h, N)

    # out_un[h,d,i] = sum_j v[h,d,j] * p[h,i,j] -> already channel-major (h,d,N)
    out_un = jax.lax.dot_general(v, p.astype(jnp.bfloat16),
                                 (((2,), (2,)), ((0,), (0,))),
                                 preferred_element_type=jnp.float32)  # (h, d, N)
    inv_l = pl.reciprocal(l, approx=True)                    # (h, N) on the EUP
    out_cm = (out_un * inv_l.reshape(heads, 1, N)).reshape(hidden, N)  # (hid, N)

    # ---- to_out: 1x1 conv + residual --------------------------------------
    y = jnp.dot(wout_ref[...], out_cm.astype(jnp.bfloat16),
                preferred_element_type=jnp.float32)          # (C, N) f32
    o_ref[0] = (y + bout_ref[...] + x).astype(o_ref.dtype)


def attention_forward(x, gamma, beta, w_qkv, b_qkv, w_out, b_out,
                      *, heads: int, groups: int = 32, eps: float = 1e-6):
    """x: (B, C, H, W) f32 -> (B, C, H, W) f32, matching Attention.forward."""
    B, C, H, W = x.shape
    N = H * W
    hidden = w_qkv.shape[0] // 3
    assert hidden % heads == 0
    dim_head = hidden // heads
    assert C % groups == 0
    cg = C // groups

    x = x.astype(jnp.float32)
    x3 = x.reshape(B, C, N)

    # Constant group-averaging matrix: gmat @ sum_N(x) gives per-channel group
    # mean. Only ever multiplies (C,1) vectors inside the kernel.
    ch = jnp.arange(C)
    gmat = (ch[:, None] // cg == ch[None, :] // cg).astype(jnp.float32)
    gmat = gmat / float(cg * N)

    # Fold the 1/sqrt(dim_head) attention scale into the Q rows of to_qkv
    # (free: no in-kernel scaling of the (h,N,N) score tensor).
    scale = float(dim_head) ** -0.5
    row_scale = jnp.where(jnp.arange(3 * hidden) < hidden, scale, 1.0)
    w_qkv_s = w_qkv.astype(jnp.float32) * row_scale[:, None]
    b_qkv_s = b_qkv.astype(jnp.float32) * row_scale

    kernel = functools.partial(_attention_kernel, heads=heads,
                               dim_head=dim_head, eps=eps)

    out = pl.pallas_call(
        kernel,
        out_shape=jax.ShapeDtypeStruct((B, C, N), jnp.float32),
        grid=(B,),
        in_specs=[
            pl.BlockSpec((1, C, N), lambda b: (b, 0, 0)),       # x
            pl.BlockSpec((C, 1), lambda b: (0, 0)),             # gamma
            pl.BlockSpec((C, 1), lambda b: (0, 0)),             # beta
            pl.BlockSpec((C, C), lambda b: (0, 0)),             # group matrix
            pl.BlockSpec((3 * hidden, C), lambda b: (0, 0)),    # W_qkv (bf16)
            pl.BlockSpec((3 * hidden, 1), lambda b: (0, 0)),    # b_qkv
            pl.BlockSpec((C, hidden), lambda b: (0, 0)),        # W_out (bf16)
            pl.BlockSpec((C, 1), lambda b: (0, 0)),             # b_out
        ],
        out_specs=pl.BlockSpec((1, C, N), lambda b: (b, 0, 0)),
        compiler_params=pltpu.CompilerParams(
            dimension_semantics=("parallel",)),
    )(x3,
      gamma.astype(jnp.float32).reshape(C, 1),
      beta.astype(jnp.float32).reshape(C, 1),
      gmat,
      w_qkv_s.astype(jnp.bfloat16),
      b_qkv_s.reshape(3 * hidden, 1),
      w_out.astype(jnp.bfloat16),
      b_out.astype(jnp.float32).reshape(C, 1))
    return out.reshape(B, C, H, W)


def _reference(x, gamma, beta, w_qkv, b_qkv, w_out, b_out,
               *, heads, groups=32, eps=1e-6):
    """Pure-JAX f32 reference mirroring the PyTorch forward exactly."""
    hp = jax.lax.Precision.HIGHEST
    B, C, H, W = x.shape
    N = H * W
    xr = x.reshape(B, groups, (C // groups) * N).astype(jnp.float32)
    mean = xr.mean(-1, keepdims=True)
    var = ((xr - mean) ** 2).mean(-1, keepdims=True)        # biased, like torch
    h = ((xr - mean) / jnp.sqrt(var + eps)).reshape(B, C, N)
    h = h * gamma[None, :, None] + beta[None, :, None]

    qkv = jnp.einsum('oc,bcn->bon', w_qkv, h, precision=hp)
    qkv = qkv + b_qkv[None, :, None]
    hidden = w_qkv.shape[0] // 3
    dh = hidden // heads
    q = qkv[:, :hidden].reshape(B, heads, dh, N)
    k = qkv[:, hidden:2 * hidden].reshape(B, heads, dh, N)
    v = qkv[:, 2 * hidden:].reshape(B, heads, dh, N)

    sim = jnp.einsum('bhdi,bhdj->bhij', q, k, precision=hp) * (dh ** -0.5)
    attn = jax.nn.softmax(sim, axis=-1)
    out = jnp.einsum('bhij,bhdj->bhid', attn, v, precision=hp)    # (B,h,N,d)
    out = jnp.transpose(out, (0, 1, 3, 2)).reshape(B, hidden, N)   # b (h d) n
    y = jnp.einsum('oc,bcn->bon', w_out, out, precision=hp)
    y = y + b_out[None, :, None]
    return (y + x.reshape(B, C, N)).reshape(B, C, H, W)


if __name__ == "__main__":
    key = jax.random.PRNGKey(0)
    B, C, H, W = 2, 64, 16, 16      # C must be divisible by 32 (GroupNorm)
    heads = 4
    hidden = C                      # dim_head = 16
    k1, k2, k3, k4, k5, k6, k7 = jax.random.split(key, 7)

    x = jax.random.normal(k1, (B, C, H, W), jnp.float32)
    gamma = 1.0 + 0.1 * jax.random.normal(k2, (C,), jnp.float32)
    beta = 0.1 * jax.random.normal(k3, (C,), jnp.float32)
    w_qkv = jax.random.normal(k4, (3 * hidden, C), jnp.float32) / jnp.sqrt(C)
    b_qkv = 0.1 * jax.random.normal(k5, (3 * hidden,), jnp.float32)
    # NOTE: the torch module zero-inits to_out.weight; we use nonzero weights so
    # the full forward path (not just the residual) is exercised numerically.
    w_out = 0.2 * jax.random.normal(k6, (C, hidden), jnp.float32)
    b_out = 0.1 * jax.random.normal(k7, (C,), jnp.float32)

    out = attention_forward(x, gamma, beta, w_qkv, b_qkv, w_out, b_out,
                            heads=heads)
    out = jax.block_until_ready(out)

    ref = _reference(x, gamma, beta, w_qkv, b_qkv, w_out, b_out, heads=heads)
    assert out.shape == (B, C, H, W), out.shape
    max_err = float(jnp.max(jnp.abs(out - ref)))
    # Tolerance sized for bf16 MXU operands (f32 accumulation, f32 softmax)
    # vs. an all-f32 HIGHEST-precision reference.
    assert jnp.allclose(out, ref, atol=1e-2, rtol=1e-2), (
        f"mismatch vs reference, max abs err={max_err}")

    print("KERNEL_OK")
</pallas_src>

<mosaic_0001>
module attributes {stable_mosaic.version = 11 : i64} {
  func.func @_attention_kernel(%arg0: i32, %arg1: memref<1x64x256xf32, #tpu.memory_space<vmem>>, %arg2: memref<64x1xf32, #tpu.memory_space<vmem>>, %arg3: memref<64x1xf32, #tpu.memory_space<vmem>>, %arg4: memref<64x64xf32, #tpu.memory_space<vmem>>, %arg5: memref<192x64xbf16, #tpu.memory_space<vmem>>, %arg6: memref<192x1xf32, #tpu.memory_space<vmem>>, %arg7: memref<64x64xbf16, #tpu.memory_space<vmem>>, %arg8: memref<64x1xf32, #tpu.memory_space<vmem>>, %arg9: memref<1x64x256xf32, #tpu.memory_space<vmem>>) attributes {dimension_semantics = [#tpu.dimension_semantics<parallel>], iteration_bounds = array<i64: 2>, scalar_prefetch = 0 : i64, scratch_operands = 0 : i64, tpu.core_type = #tpu.core_type<tc>, window_params = [{transform_indices = @transform_0, window_bounds = array<i64: 1, 64, 256>}, {pipeline_mode = #tpu.pipeline_mode<synchronous>, transform_indices = @transform_1, window_bounds = array<i64: 64, 1>}, {pipeline_mode = #tpu.pipeline_mode<synchronous>, transform_indices = @transform_2, window_bounds = array<i64: 64, 1>}, {pipeline_mode = #tpu.pipeline_mode<synchronous>, transform_indices = @transform_3, window_bounds = array<i64: 64, 64>}, {pipeline_mode = #tpu.pipeline_mode<synchronous>, transform_indices = @transform_4, window_bounds = array<i64: 192, 64>}, {pipeline_mode = #tpu.pipeline_mode<synchronous>, transform_indices = @transform_5, window_bounds = array<i64: 192, 1>}, {pipeline_mode = #tpu.pipeline_mode<synchronous>, transform_indices = @transform_6, window_bounds = array<i64: 64, 64>}, {pipeline_mode = #tpu.pipeline_mode<synchronous>, transform_indices = @transform_7, window_bounds = array<i64: 64, 1>}, {transform_indices = @transform_8, window_bounds = array<i64: 1, 64, 256>}]} {
    %c0 = arith.constant 0 : index
    %c0_0 = arith.constant 0 : index
    %c0_1 = arith.constant 0 : index
    %0 = vector.load %arg1[%c0, %c0_0, %c0_1] : memref<1x64x256xf32, #tpu.memory_space<vmem>>, vector<1x64x256xf32>
    %1 = vector.shape_cast %0 : vector<1x64x256xf32> to vector<64x256xf32>
    %cst = arith.constant dense<0.000000e+00> : vector<64xf32>
    %2 = vector.multi_reduction <add>, %1, %cst [1] : vector<64x256xf32> to vector<64xf32>
    %3 = vector.shape_cast %2 : vector<64xf32> to vector<64x1xf32>
    %4 = arith.mulf %1, %1 : vector<64x256xf32>
    %cst_2 = arith.constant dense<0.000000e+00> : vector<64xf32>
    %5 = vector.multi_reduction <add>, %4, %cst_2 [1] : vector<64x256xf32> to vector<64xf32>
    %6 = vector.shape_cast %5 : vector<64xf32> to vector<64x1xf32>
    %c0_3 = arith.constant 0 : index
    %c0_4 = arith.constant 0 : index
    %7 = vector.load %arg4[%c0_3, %c0_4] : memref<64x64xf32, #tpu.memory_space<vmem>>, vector<64x64xf32>
    %cst_5 = arith.constant dense<0.000000e+00> : vector<64x1xf32>
    %8 = tpu.matmul %7, %3, %cst_5 {dimension_numbers = #tpu.dot_dimension_numbers<[1], [0], [0], [1], [0, 0, 1, 1], [], []>} : vector<64x64xf32>, vector<64x1xf32>, vector<64x1xf32> -> vector<64x1xf32>
    %cst_6 = arith.constant dense<0.000000e+00> : vector<64x1xf32>
    %9 = tpu.matmul %7, %6, %cst_6 {dimension_numbers = #tpu.dot_dimension_numbers<[1], [0], [0], [1], [0, 0, 1, 1], [], []>} : vector<64x64xf32>, vector<64x1xf32>, vector<64x1xf32> -> vector<64x1xf32>
    %10 = arith.mulf %8, %8 : vector<64x1xf32>
    %11 = arith.subf %9, %10 : vector<64x1xf32>
    %cst_7 = arith.constant 9.99999997E-7 : f32
    %12 = vector.broadcast %cst_7 : f32 to vector<64x1xf32>
    %13 = arith.addf %11, %12 : vector<64x1xf32>
    %14 = math.rsqrt %13 : vector<64x1xf32>
    %15 = vector.broadcast %8 : vector<64x1xf32> to vector<64x256xf32>
    %16 = arith.subf %1, %15 : vector<64x256xf32>
    %c0_8 = arith.constant 0 : index
    %c0_9 = arith.constant 0 : index
    %17 = vector.load %arg2[%c0_8, %c0_9] : memref<64x1xf32, #tpu.memory_space<vmem>>, vector<64x1xf32>
    %18 = arith.mulf %14, %17 : vector<64x1xf32>
    %19 = vector.broadcast %18 : vector<64x1xf32> to vector<64x256xf32>
    %20 = arith.mulf %16, %19 : vector<64x256xf32>
    %c0_10 = arith.constant 0 : index
    %c0_11 = arith.constant 0 : index
    %21 = vector.load %arg3[%c0_10, %c0_11] : memref<64x1xf32, #tpu.memory_space<vmem>>, vector<64x1xf32>
    %22 = vector.broadcast %21 : vector<64x1xf32> to vector<64x256xf32>
    %23 = arith.addf %20, %22 : vector<64x256xf32>
    %c0_12 = arith.constant 0 : index
    %c0_13 = arith.constant 0 : index
    %24 = vector.load %arg5[%c0_12, %c0_13] : memref<192x64xbf16, #tpu.memory_space<vmem>>, vector<192x64xbf16>
    %25 = arith.truncf %23 : vector<64x256xf32> to vector<64x256xbf16>
    %cst_14 = arith.constant dense<0.000000e+00> : vector<192x256xf32>
    %26 = tpu.matmul %24, %25, %cst_14 {dimension_numbers = #tpu.dot_dimension_numbers<[1], [0], [0], [1], [0, 0, 1, 1], [], []>} : vector<192x64xbf16>, vector<64x256xbf16>, vector<192x256xf32> -> vector<192x256xf32>
    %c0_15 = arith.constant 0 : index
    %c0_16 = arith.constant 0 : index
    %27 = vector.load %arg6[%c0_15, %c0_16] : memref<192x1xf32, #tpu.memory_space<vmem>>, vector<192x1xf32>
    %28 = vector.broadcast %27 : vector<192x1xf32> to vector<192x256xf32>
    %29 = arith.addf %26, %28 : vector<192x256xf32>
    %30 = vector.extract_strided_slice %29 {offsets = [0, 0], sizes = [64, 256], strides = [1, 1]} : vector<192x256xf32> to vector<64x256xf32>
    %31 = vector.shape_cast %30 : vector<64x256xf32> to vector<4x16x256xf32>
    %32 = arith.truncf %31 : vector<4x16x256xf32> to vector<4x16x256xbf16>
    %33 = vector.extract_strided_slice %29 {offsets = [64, 0], sizes = [64, 256], strides = [1, 1]} : vector<192x256xf32> to vector<64x256xf32>
    %34 = vector.shape_cast %33 : vector<64x256xf32> to vector<4x16x256xf32>
    %35 = arith.truncf %34 : vector<4x16x256xf32> to vector<4x16x256xbf16>
    %36 = vector.extract_strided_slice %29 {offsets = [128, 0], sizes = [64, 256], strides = [1, 1]} : vector<192x256xf32> to vector<64x256xf32>
    %37 = vector.shape_cast %36 : vector<64x256xf32> to vector<4x16x256xf32>
    %38 = arith.truncf %37 : vector<4x16x256xf32> to vector<4x16x256xbf16>
    %cst_17 = arith.constant dense<0.000000e+00> : vector<4x256x256xf32>
    %39 = tpu.matmul %32, %35, %cst_17 {dimension_numbers = #tpu.dot_dimension_numbers<[1], [1], [2], [2], [0, 0, 0, 2, 1, 2], [0], [0]>} : vector<4x16x256xbf16>, vector<4x16x256xbf16>, vector<4x256x256xf32> -> vector<4x256x256xf32>
    %cst_18 = arith.constant dense<0xFF800000> : vector<4x256xf32>
    %40 = vector.multi_reduction <maximumf>, %39, %cst_18 [2] : vector<4x256x256xf32> to vector<4x256xf32>
    %41 = vector.shape_cast %40 : vector<4x256xf32> to vector<4x256x1xf32>
    %42 = vector.broadcast %41 : vector<4x256x1xf32> to vector<4x256x256xf32>
    %43 = arith.subf %39, %42 : vector<4x256x256xf32>
    %44 = math.exp %43 : vector<4x256x256xf32>
    %cst_19 = arith.constant dense<0.000000e+00> : vector<4x256xf32>
    %45 = vector.multi_reduction <add>, %44, %cst_19 [2] : vector<4x256x256xf32> to vector<4x256xf32>
    %46 = arith.truncf %44 : vector<4x256x256xf32> to vector<4x256x256xbf16>
    %cst_20 = arith.constant dense<0.000000e+00> : vector<4x16x256xf32>
    %47 = tpu.matmul %38, %46, %cst_20 {dimension_numbers = #tpu.dot_dimension_numbers<[2], [2], [1], [1], [0, 0, 0, 1, 1, 1], [0], [0]>} : vector<4x16x256xbf16>, vector<4x256x256xbf16>, vector<4x16x256xf32> -> vector<4x16x256xf32>
    %48 = tpu.reciprocal %45 {approx = true} : vector<4x256xf32> -> vector<4x256xf32>
    %49 = vector.shape_cast %48 : vector<4x256xf32> to vector<4x1x256xf32>
    %50 = vector.broadcast %49 : vector<4x1x256xf32> to vector<4x16x256xf32>
    %51 = arith.mulf %47, %50 : vector<4x16x256xf32>
    %52 = vector.shape_cast %51 : vector<4x16x256xf32> to vector<64x256xf32>
    %c0_21 = arith.constant 0 : index
    %c0_22 = arith.constant 0 : index
    %53 = vector.load %arg7[%c0_21, %c0_22] : memref<64x64xbf16, #tpu.memory_space<vmem>>, vector<64x64xbf16>
    %54 = arith.truncf %52 : vector<64x256xf32> to vector<64x256xbf16>
    %cst_23 = arith.constant dense<0.000000e+00> : vector<64x256xf32>
    %55 = tpu.matmul %53, %54, %cst_23 {dimension_numbers = #tpu.dot_dimension_numbers<[1], [0], [0], [1], [0, 0, 1, 1], [], []>} : vector<64x64xbf16>, vector<64x256xbf16>, vector<64x256xf32> -> vector<64x256xf32>
    %c0_24 = arith.constant 0 : index
    %c0_25 = arith.constant 0 : index
    %56 = vector.load %arg8[%c0_24, %c0_25] : memref<64x1xf32, #tpu.memory_space<vmem>>, vector<64x1xf32>
    %57 = vector.broadcast %56 : vector<64x1xf32> to vector<64x256xf32>
    %58 = arith.addf %55, %57 : vector<64x256xf32>
    %59 = arith.addf %58, %1 : vector<64x256xf32>
    %c0_26 = arith.constant 0 : index
    %c0_27 = arith.constant 0 : index
    %c0_28 = arith.constant 0 : index
    %60 = vector.load %arg9[%c0_26, %c0_27, %c0_28] : memref<1x64x256xf32, #tpu.memory_space<vmem>>, vector<1x64x256xf32>
    %61 = vector.shape_cast %60 : vector<1x64x256xf32> to vector<64x256xf32>
    %62 = vector.shape_cast %59 : vector<64x256xf32> to vector<1x64x256xf32>
    tpu.vector_store %arg9[%c0_26, %c0_27, %c0_28], %62 {strides = array<i32>} : memref<1x64x256xf32, #tpu.memory_space<vmem>>, vector<1x64x256xf32>,
    return
  }
  func.func @transform_0(%arg0: i32) -> (i32, i32, i32) {
    %c0_i32 = arith.constant 0 : i32
    %c0_i32_0 = arith.constant 0 : i32
    %c0_i32_1 = arith.constant 0 : i32
    return %arg0, %c0_i32, %c0_i32_0 : i32, i32, i32
  }
  func.func @transform_1(%arg0: i32) -> (i32, i32) {
    %c0_i32 = arith.constant 0 : i32
    %c0_i32_0 = arith.constant 0 : i32
    %c0_i32_1 = arith.constant 0 : i32
    return %c0_i32, %c0_i32_0 : i32, i32
  }
  func.func @transform_2(%arg0: i32) -> (i32, i32) {
    %c0_i32 = arith.constant 0 : i32
    %c0_i32_0 = arith.constant 0 : i32
    %c0_i32_1 = arith.constant 0 : i32
    return %c0_i32, %c0_i32_0 : i32, i32
  }
  func.func @transform_3(%arg0: i32) -> (i32, i32) {
    %c0_i32 = arith.constant 0 : i32
    %c0_i32_0 = arith.constant 0 : i32
    %c0_i32_1 = arith.constant 0 : i32
    return %c0_i32, %c0_i32_0 : i32, i32
  }
  func.func @transform_4(%arg0: i32) -> (i32, i32) {
    %c0_i32 = arith.constant 0 : i32
    %c0_i32_0 = arith.constant 0 : i32
    %c0_i32_1 = arith.constant 0 : i32
    return %c0_i32, %c0_i32_0 : i32, i32
  }
  func.func @transform_5(%arg0: i32) -> (i32, i32) {
    %c0_i32 = arith.constant 0 : i32
    %c0_i32_0 = arith.constant 0 : i32
    %c0_i32_1 = arith.constant 0 : i32
    return %c0_i32, %c0_i32_0 : i32, i32
  }
  func.func @transform_6(%arg0: i32) -> (i32, i32) {
    %c0_i32 = arith.constant 0 : i32
    %c0_i32_0 = arith.constant 0 : i32
    %c0_i32_1 = arith.constant 0 : i32
    return %c0_i32, %c0_i32_0 : i32, i32
  }
  func.func @transform_7(%arg0: i32) -> (i32, i32) {
    %c0_i32 = arith.constant 0 : i32
    %c0_i32_0 = arith.constant 0 : i32
    %c0_i32_1 = arith.constant 0 : i32
    return %c0_i32, %c0_i32_0 : i32, i32
  }
  func.func @transform_8(%arg0: i32) -> (i32, i32, i32) {
    %c0_i32 = arith.constant 0 : i32
    %c0_i32_0 = arith.constant 0 : i32
    %c0_i32_1 = arith.constant 0 : i32
    return %arg0, %c0_i32, %c0_i32_0 : i32, i32, i32
  }
}

</mosaic_0001>

<llo_original>
// kernel: tpu_custom_call.1
$region0: #{tpu_custom_call.1}
  #allocation0 [shape = 'u32[]', space=smem, size = 0x4, offset = 0x4, fixed_abs, tag = 'smem constant byte address 0x4 - core index']
  #allocation1 [shape = 'u32[144,128]{1,0:T(1,128)}', space=vmem, size = 0x12000, scoped, tag = 'internal scratch']
  %s0 = inlined_call_operand.vmem [shape: f32[2,64,256], index: 0, kind: input, shape index: {}]
  %s1 = inlined_call_operand.vmem [shape: f32[64,1], index: 1, kind: input, shape index: {}]
  %s2 = inlined_call_operand.vmem [shape: f32[64,1], index: 2, kind: input, shape index: {}]
  %s3 = inlined_call_operand.vmem [shape: f32[64,64], index: 3, kind: input, shape index: {}]
  %s4 = inlined_call_operand.vmem [shape: bf16[192,64], index: 4, kind: input, shape index: {}]
  %s5 = inlined_call_operand.vmem [shape: f32[192,1], index: 5, kind: input, shape index: {}]
  %s6 = inlined_call_operand.vmem [shape: bf16[64,64], index: 6, kind: input, shape index: {}]
  %s7 = inlined_call_operand.vmem [shape: f32[64,1], index: 7, kind: input, shape index: {}]
  %s8 = inlined_call_operand.hbm [shape: f32[2,64,256], index: 8, kind: output, shape index: {}]
  %s9 = sld [smem:[#allocation0]]
  $region65: #{tpu_custom_call.1} parent=0
    _
  %s11 = ssub.s32 1, %s9
  %s12 = scalar_select 0, %s11, %s9
  $region1: #{tpu_custom_call.1} parent=0
    #allocation2 [shape = 'u8[131072]{0}', space=vmem, size = 0x20000, scoped, tag = 'output window, operand 0']
    #allocation3 [shape = 's32[2]{0}', space=sflag, size = 0x8, scoped, tag = 'scoped memory for tpu_custom_call.1']
    %13 = vsyncpa [#allocation3], 0
    %s14 = scalar_lea.sflag [#allocation3], 1
    %15 = vsyncpa %s14, 0
    loop: start=0, step=1, limit=4
    $region2: #{tpu_custom_call.1} parent=1 // loop_pre_header
      _
    $region3: #{tpu_custom_call.1} parent=1 // loop_header
      %s17 = sphi 0, %s21
      %p18 = scmp.ge.s32.totalorder %s17, 4
      %s27 = sphi 0, %s29
      %s30 = sphi 0, %s27
      %s31 = sphi 0, %s30
      %s47 = sphi 0, %s31
      %s51 = sphi 0, %s51
      %s53 = sphi 0, %s51
      %s54 = sphi 0, %s53
      %s68 = sphi 0, %s54
      %s72 = sphi 0, %s72
      %s74 = sphi 0, %s72
      %s75 = sphi 0, %s74
      %s89 = sphi 0, %s75
      %s93 = sphi 0, %s93
      %s95 = sphi 0, %s93
      %s96 = sphi 0, %s95
      %s110 = sphi 0, %s96
      %s114 = sphi 0, %s114
      %s116 = sphi 0, %s114
      %s117 = sphi 0, %s116
      %s131 = sphi 0, %s117
      %s135 = sphi 0, %s135
      %s137 = sphi 0, %s135
      %s138 = sphi 0, %s137
      %s152 = sphi 0, %s138
      %s156 = sphi 0, %s156
      %s158 = sphi 0, %s156
      %s159 = sphi 0, %s158
      %s173 = sphi 0, %s159
      %s177 = sphi 0, %s177
      %s179 = sphi 0, %s177
      %s180 = sphi 0, %s179
      %s194 = sphi 0, %s180
      %s200 = sphi 0, %s202
      %s203 = sphi 0, %s200
      %s204 = sphi 0, %s203
      %s220 = sphi 0, %s204
    $region4: #{tpu_custom_call.1} parent=1 // loop_header_branch
      %20 = sbr.rel (%p18) target = $region8
    $region5: #{tpu_custom_call.1} parent=1 // loop_body
      %s22 = ssub.s32 %s17, 1
      %s23 = ssub.s32 %s17, 2
      %s24 = sadd.s32 %s17, 1
      %s25 = ssub.s32 %s17, %s24
      %p26 = scmp.eq.s32.totalorder %s25, 0
      %s28 = sadd.s32 %s27, 1
      %s29 = scalar_select %p26, %s27, %s28
      %p32 = pneg %p26
      %p33 = scmp.eq.s32.totalorder %s17, 1
      %p34 = por %p32, %p33
      %p35 = scmp.ne.s32.totalorder %s27, %s30
      %p36 = scmp.eq.s32.totalorder %s17, 0
      %p37 = por %p35, %p36
      %p38 = scmp.ne.s32.totalorder %s27, %s30
      %p39 = scmp.eq.s32.totalorder %s22, 1
      %p40 = por %p38, %p39
      %p41 = scmp.ne.s32.totalorder %s30, %s31
      %p42 = scmp.eq.s32.totalorder %s22, 0
      %p43 = por %p41, %p42
      %p44 = scmp.ne.s32.totalorder %s30, %s31
      %p45 = scmp.eq.s32.totalorder %s23, 1
      %p46 = por %p44, %p45
      %p48 = scmp.ne.s32.totalorder %s31, %s47
      %p49 = scmp.eq.s32.totalorder %s23, 0
      %p50 = por %p48, %p49
      %s52 = sadd.s32 %s51, 1
      %p55 = scmp.eq.s32.totalorder %s17, 1
      %p56 = scmp.ne.s32.totalorder %s51, %s53
      %p57 = scmp.eq.s32.totalorder %s17, 0
      %p58 = por %p56, %p57
      %p59 = scmp.ne.s32.totalorder %s51, %s53
      %p60 = scmp.eq.s32.totalorder %s22, 1
      %p61 = por %p59, %p60
      %p62 = scmp.ne.s32.totalorder %s53, %s54
      %p63 = scmp.eq.s32.totalorder %s22, 0
      %p64 = por %p62, %p63
      %p65 = scmp.ne.s32.totalorder %s53, %s54
      %p66 = scmp.eq.s32.totalorder %s23, 1
      %p67 = por %p65, %p66
      %p69 = scmp.ne.s32.totalorder %s54, %s68
      %p70 = scmp.eq.s32.totalorder %s23, 0
      %p71 = por %p69, %p70
      %s73 = sadd.s32 %s72, 1
      %p76 = scmp.eq.s32.totalorder %s17, 1
      %p77 = scmp.ne.s32.totalorder %s72, %s74
      %p78 = scmp.eq.s32.totalorder %s17, 0
      %p79 = por %p77, %p78
      %p80 = scmp.ne.s32.totalorder %s72, %s74
      %p81 = scmp.eq.s32.totalorder %s22, 1
      %p82 = por %p80, %p81
      %p83 = scmp.ne.s32.totalorder %s74, %s75
      %p84 = scmp.eq.s32.totalorder %s22, 0
      %p85 = por %p83, %p84
      %p86 = scmp.ne.s32.totalorder %s74, %s75
      %p87 = scmp.eq.s32.totalorder %s23, 1
      %p88 = por %p86, %p87
      %p90 = scmp.ne.s32.totalorder %s75, %s89
      %p91 = scmp.eq.s32.totalorder %s23, 0
      %p92 = por %p90, %p91
      %s94 = sadd.s32 %s93, 1
      %p97 = scmp.eq.s32.totalorder %s17, 1
      %p98 = scmp.ne.s32.totalorder %s93, %s95
      %p99 = scmp.eq.s32.totalorder %s17, 0
      %p100 = por %p98, %p99
      %p101 = scmp.ne.s32.totalorder %s93, %s95
      %p102 = scmp.eq.s32.totalorder %s22, 1
      %p103 = por %p101, %p102
      %p104 = scmp.ne.s32.totalorder %s95, %s96
      %p105 = scmp.eq.s32.totalorder %s22, 0
      %p106 = por %p104, %p105
      %p107 = scmp.ne.s32.totalorder %s95, %s96
      %p108 = scmp.eq.s32.totalorder %s23, 1
      %p109 = por %p107, %p108
      %p111 = scmp.ne.s32.totalorder %s96, %s110
      %p112 = scmp.eq.s32.totalorder %s23, 0
      %p113 = por %p111, %p112
      %s115 = sadd.s32 %s114, 1
      %p118 = scmp.eq.s32.totalorder %s17, 1
      %p119 = scmp.ne.s32.totalorder %s114, %s116
      %p120 = scmp.eq.s32.totalorder %s17, 0
      %p121 = por %p119, %p120
      %p122 = scmp.ne.s32.totalorder %s114, %s116
      %p123 = scmp.eq.s32.totalorder %s22, 1
      %p124 = por %p122, %p123
      %p125 = scmp.ne.s32.totalorder %s116, %s117
      %p126 = scmp.eq.s32.totalorder %s22, 0
      %p127 = por %p125, %p126
      %p128 = scmp.ne.s32.totalorder %s116, %s117
      %p129 = scmp.eq.s32.totalorder %s23, 1
      %p130 = por %p128, %p129
      %p132 = scmp.ne.s32.totalorder %s117, %s131
      %p133 = scmp.eq.s32.totalorder %s23, 0
      %p134 = por %p132, %p133
      %s136 = sadd.s32 %s135, 1
      %p139 = scmp.eq.s32.totalorder %s17, 1
      %p140 = scmp.ne.s32.totalorder %s135, %s137
      %p141 = scmp.eq.s32.totalorder %s17, 0
      %p142 = por %p140, %p141
      %p143 = scmp.ne.s32.totalorder %s135, %s137
      %p144 = scmp.eq.s32.totalorder %s22, 1
      %p145 = por %p143, %p144
      %p146 = scmp.ne.s32.totalorder %s137, %s138
      %p147 = scmp.eq.s32.totalorder %s22, 0
      %p148 = por %p146, %p147
      %p149 = scmp.ne.s32.totalorder %s137, %s138
      %p150 = scmp.eq.s32.totalorder %s23, 1
      %p151 = por %p149, %p150
      %p153 = scmp.ne.s32.totalorder %s138, %s152
      %p154 = scmp.eq.s32.totalorder %s23, 0
      %p155 = por %p153, %p154
      %s157 = sadd.s32 %s156, 1
      %p160 = scmp.eq.s32.totalorder %s17, 1
      %p161 = scmp.ne.s32.totalorder %s156, %s158
      %p162 = scmp.eq.s32.totalorder %s17, 0
      %p163 = por %p161, %p162
      %p164 = scmp.ne.s32.totalorder %s156, %s158
      %p165 = scmp.eq.s32.totalorder %s22, 1
      %p166 = por %p164, %p165
      %p167 = scmp.ne.s32.totalorder %s158, %s159
      %p168 = scmp.eq.s32.totalorder %s22, 0
      %p169 = por %p167, %p168
      %p170 = scmp.ne.s32.totalorder %s158, %s159
      %p171 = scmp.eq.s32.totalorder %s23, 1
      %p172 = por %p170, %p171
      %p174 = scmp.ne.s32.totalorder %s159, %s173
      %p175 = scmp.eq.s32.totalorder %s23, 0
      %p176 = por %p174, %p175
      %s178 = sadd.s32 %s177, 1
      %p181 = scmp.eq.s32.totalorder %s17, 1
      %p182 = scmp.ne.s32.totalorder %s177, %s179
      %p183 = scmp.eq.s32.totalorder %s17, 0
      %p184 = por %p182, %p183
      %p185 = scmp.ne.s32.totalorder %s177, %s179
      %p186 = scmp.eq.s32.totalorder %s22, 1
      %p187 = por %p185, %p186
      %p188 = scmp.ne.s32.totalorder %s179, %s180
      %p189 = scmp.eq.s32.totalorder %s22, 0
      %p190 = por %p188, %p189
      %p191 = scmp.ne.s32.totalorder %s179, %s180
      %p192 = scmp.eq.s32.totalorder %s23, 1
      %p193 = por %p191, %p192
      %p195 = scmp.ne.s32.totalorder %s180, %s194
      %p196 = scmp.eq.s32.totalorder %s23, 0
      %p197 = por %p195, %p196
      %s198 = ssub.s32 %s17, %s24
      %p199 = scmp.eq.s32.totalorder %s198, 0
      %s201 = sadd.s32 %s200, 1
      %s202 = scalar_select %p199, %s200, %s201
      %p205 = pneg %p199
      %p206 = scmp.eq.s32.totalorder %s17, 1
      %p207 = por %p205, %p206
      %p208 = scmp.ne.s32.totalorder %s200, %s203
      %p209 = scmp.eq.s32.totalorder %s17, 0
      %p210 = por %p208, %p209
      %p211 = scmp.ne.s32.totalorder %s200, %s203
      %p212 = scmp.eq.s32.totalorder %s22, 1
      %p213 = por %p211, %p212
      %p214 = scmp.ne.s32.totalorder %s203, %s204
      %p215 = scmp.eq.s32.totalorder %s22, 0
      %p216 = por %p214, %p215
      %p217 = scmp.ne.s32.totalorder %s203, %s204
      %p218 = scmp.eq.s32.totalorder %s23, 1
      %p219 = por %p217, %p218
      %p221 = scmp.ne.s32.totalorder %s204, %s220
      %p222 = scmp.eq.s32.totalorder %s23, 0
      %p223 = por %p221, %p222
      %p224 = scmp.le.s32.totalorder 1, %s17
      %p225 = scmp.lt.s32.totalorder %s17, 3
      %p226 = pnand %p224, %p225
      %p227 = pneg %p226
      // Predicated region
      $region9: #{tpu_custom_call.1} parent=5 // pred_check
        _
      $region10: #{tpu_custom_call.1} parent=5 // pred_check_branch
        %229 = sbr.rel (%p226) target = $region12
      $region11: #{tpu_custom_call.1} parent=5 // pred_region
        %s230 = ssub.s32 %s17, 1
        // Predicated region
        $region13: #{tpu_custom_call.1} parent=11 // pred_check
          %p231 = pneg %p64
        $region14: #{tpu_custom_call.1} parent=11 // pred_check_branch
          %233 = sbr.rel (%p231) target = $region16
        $region15: #{tpu_custom_call.1} parent=11 // pred_region
          _
        $region16: #{tpu_custom_call.1} parent=11 // pred_fallthru
          _
        // Predicated region
        $region17: #{tpu_custom_call.1} parent=11 // pred_check
          %p234 = pneg %p85
        $region18: #{tpu_custom_call.1} parent=11 // pred_check_branch
          %236 = sbr.rel (%p234) target = $region20
        $region19: #{tpu_custom_call.1} parent=11 // pred_region
          _
        $region20: #{tpu_custom_call.1} parent=11 // pred_fallthru
          _
        // Predicated region
        $region21: #{tpu_custom_call.1} parent=11 // pred_check
          %p237 = pneg %p106
        $region22: #{tpu_custom_call.1} parent=11 // pred_check_branch
          %239 = sbr.rel (%p237) target = $region24
        $region23: #{tpu_custom_call.1} parent=11 // pred_region
          _
        $region24: #{tpu_custom_call.1} parent=11 // pred_fallthru
          _
        // Predicated region
        $region25: #{tpu_custom_call.1} parent=11 // pred_check
          %p240 = pneg %p127
        $region26: #{tpu_custom_call.1} parent=11 // pred_check_branch
          %242 = sbr.rel (%p240) target = $region28
        $region27: #{tpu_custom_call.1} parent=11 // pred_region
          _
        $region28: #{tpu_custom_call.1} parent=11 // pred_fallthru
          _
        // Predicated region
        $region29: #{tpu_custom_call.1} parent=11 // pred_check
          %p243 = pneg %p148
        $region30: #{tpu_custom_call.1} parent=11 // pred_check_branch
          %245 = sbr.rel (%p243) target = $region32
        $region31: #{tpu_custom_call.1} parent=11 // pred_region
          _
        $region32: #{tpu_custom_call.1} parent=11 // pred_fallthru
          _
        // Predicated region
        $region33: #{tpu_custom_call.1} parent=11 // pred_check
          %p246 = pneg %p169
        $region34: #{tpu_custom_call.1} parent=11 // pred_check_branch
          %248 = sbr.rel (%p246) target = $region36
        $region35: #{tpu_custom_call.1} parent=11 // pred_region
          _
        $region36: #{tpu_custom_call.1} parent=11 // pred_fallthru
          _
        // Predicated region
        $region37: #{tpu_custom_call.1} parent=11 // pred_check
          %p249 = pneg %p190
        $region38: #{tpu_custom_call.1} parent=11 // pred_check_branch
          %251 = sbr.rel (%p249) target = $region40
        $region39: #{tpu_custom_call.1} parent=11 // pred_region
          _
        $region40: #{tpu_custom_call.1} parent=11 // pred_fallthru
          _
      $region12: #{tpu_custom_call.1} parent=5 // pred_fallthru
        _
      %p252 = scmp.lt.s32.totalorder %s17, 2
      // Predicated region
      $region41: #{tpu_custom_call.1} parent=5 // pred_check
        %p253 = pneg %p252
      $region42: #{tpu_custom_call.1} parent=5 // pred_check_branch
        %255 = sbr.rel (%p253) target = $region44
      $region43: #{tpu_custom_call.1} parent=5 // pred_region
        // Predicated region
        $region45: #{tpu_custom_call.1} parent=43 // pred_check
          %p256 = pneg %p37
        $region46: #{tpu_custom_call.1} parent=43 // pred_check_branch
          %258 = sbr.rel (%p256) target = $region48
        $region47: #{tpu_custom_call.1} parent=43 // pred_region
          %p259 = scmp.lt.s32.totalorder %s17, 1
          %s260 = scalar_select %p259, %s17, 1
          %s261 = smul.addr %s260, 16
          %s262 = smul.addr %s261, 8
          %s263 = scalar_lea.vmem %s0, %s262
        $region48: #{tpu_custom_call.1} parent=43 // pred_fallthru
          _
      $region44: #{tpu_custom_call.1} parent=5 // pred_fallthru
        _
      %p264 = scmp.le.s32.totalorder 1, %s17
      %p265 = scmp.lt.s32.totalorder %s17, 3
      %p266 = pnand %p264, %p265
      %p267 = pneg %p266
      // Predicated region
      $region49: #{tpu_custom_call.1} parent=5 // pred_check
        _
      $region50: #{tpu_custom_call.1} parent=5 // pred_check_branch
        %269 = sbr.rel (%p266) target = $region52
      $region51: #{tpu_custom_call.1} parent=5 // pred_region
        %s270 = ssub.s32 %s17, 1
        %p271 = scmp.lt.s32.totalorder %s22, 1
        %s272 = scalar_select %p271, %s22, 1
        %s273 = smul.addr %s272, 16
        %s274 = smul.addr %s273, 8
        %s275 = scalar_lea.vmem %s0, %s274
        %p276 = pneg %p43
        %p277 = pneg %p40
        %p278 = pneg %p64
        %p279 = pneg %p61
        %p280 = pneg %p85
        %p281 = pneg %p82
        %p282 = pneg %p106
        %p283 = pneg %p103
        %p284 = pneg %p127
        %p285 = pneg %p124
        %p286 = pneg %p148
        %p287 = pneg %p145
        %p288 = pneg %p169
        %p289 = pneg %p166
        %p290 = pneg %p190
        %p291 = pneg %p187
        %p292 = pneg %p216
        %p293 = pneg %p213
        %s294 = sand.u32 %s203, 1
        %s295 = scalar_lea.sflag [#allocation3], %s294
        %s296 = sand.u32 %s203, 1
        %s297 = smul.addr %s296, 128
        %s298 = scalar_lea.vmem [#allocation2], %s297
        %p299 = scmp.lt.s32.totalorder %s22, 1
        %s300 = scalar_select %p299, %s22, 1
        %s301 = smul.addr %s300, 16
        %s302 = smul.addr %s301, 8
        %s303 = scalar_lea.vmem %s0, %s302
        %v305 = vld [vmem:[%s303] sm:$0xff]
        %v306 = vld [vmem:[%s303 + $0x8] sm:$0xff]
        %v307 = vld [vmem:[%s303 + $0x10] sm:$0xff]
        %v308 = vld [vmem:[%s303 + $0x18] sm:$0xff]
        %v309 = vld [vmem:[%s303 + $0x20] sm:$0xff]
        %v310 = vld [vmem:[%s303 + $0x28] sm:$0xff]
        %v311 = vld [vmem:[%s303 + $0x30] sm:$0xff]
        %v312 = vld [vmem:[%s303 + $0x38] sm:$0xff]
        %v313 = vld [vmem:[%s303 + $0x40] sm:$0xff]
        %v314 = vld [vmem:[%s303 + $0x48] sm:$0xff]
        %v315 = vld [vmem:[%s303 + $0x50] sm:$0xff]
        %v316 = vld [vmem:[%s303 + $0x58] sm:$0xff]
        %v317 = vld [vmem:[%s303 + $0x60] sm:$0xff]
        %v318 = vld [vmem:[%s303 + $0x68] sm:$0xff]
        %v319 = vld [vmem:[%s303 + $0x70] sm:$0xff]
        %v320 = vld [vmem:[%s303 + $0x78] sm:$0xff]
        %v321 = vadd.f32 %v305, %v306
        %322 = vadd.xlane.f32.xlu0 %v321
        %v323 = vpop.xlane.xlu0 %322
        %v324 = vadd.f32 %v307, %v308
        %325 = vadd.xlane.f32.xlu0 %v324
        %v326 = vpop.xlane.xlu0 %325
        %v327 = vadd.f32 %v309, %v310
        %328 = vadd.xlane.f32.xlu0 %v327
        %v329 = vpop.xlane.xlu0 %328
        %v330 = vadd.f32 %v311, %v312
        %331 = vadd.xlane.f32.xlu0 %v330
        %v332 = vpop.xlane.xlu0 %331
        %v333 = vadd.f32 %v313, %v314
        %334 = vadd.xlane.f32.xlu0 %v333
        %v335 = vpop.xlane.xlu0 %334
        %v336 = vadd.f32 %v315, %v316
        %337 = vadd.xlane.f32.xlu0 %v336
        %v338 = vpop.xlane.xlu0 %337
        %v339 = vadd.f32 %v317, %v318
        %340 = vadd.xlane.f32.xlu0 %v339
        %v341 = vpop.xlane.xlu0 %340
        %v342 = vadd.f32 %v319, %v320
        %343 = vadd.xlane.f32.xlu0 %v342
        %v344 = vpop.xlane.xlu0 %343
        %v345 = vmul.f32 %v305, %v305
        %v346 = vmul.f32 %v306, %v306
        %v347 = vmul.f32 %v307, %v307
        %v348 = vmul.f32 %v308, %v308
        %v349 = vmul.f32 %v309, %v309
        %v350 = vmul.f32 %v310, %v310
        %v351 = vmul.f32 %v311, %v311
        %v352 = vmul.f32 %v312, %v312
        %v353 = vmul.f32 %v313, %v313
        %v354 = vmul.f32 %v314, %v314
        %v355 = vmul.f32 %v315, %v315
        %v356 = vmul.f32 %v316, %v316
        %v357 = vmul.f32 %v317, %v317
        %v358 = vmul.f32 %v318, %v318
        %v359 = vmul.f32 %v319, %v319
        %v360 = vmul.f32 %v320, %v320
        %v361 = vadd.f32 %v345, %v346
        %362 = vadd.xlane.f32.xlu0 %v361
        %v363 = vpop.xlane.xlu0 %362
        %v364 = vadd.f32 %v347, %v348
        %365 = vadd.xlane.f32.xlu0 %v364
        %v366 = vpop.xlane.xlu0 %365
        %v367 = vadd.f32 %v349, %v350
        %368 = vadd.xlane.f32.xlu0 %v367
        %v369 = vpop.xlane.xlu0 %368
        %v370 = vadd.f32 %v351, %v352
        %371 = vadd.xlane.f32.xlu0 %v370
        %v372 = vpop.xlane.xlu0 %371
        %v373 = vadd.f32 %v353, %v354
        %374 = vadd.xlane.f32.xlu0 %v373
        %v375 = vpop.xlane.xlu0 %374
        %v376 = vadd.f32 %v355, %v356
        %377 = vadd.xlane.f32.xlu0 %v376
        %v378 = vpop.xlane.xlu0 %377
        %v379 = vadd.f32 %v357, %v358
        %380 = vadd.xlane.f32.xlu0 %v379
        %v381 = vpop.xlane.xlu0 %380
        %v382 = vadd.f32 %v359, %v360
        %383 = vadd.xlane.f32.xlu0 %v382
        %v384 = vpop.xlane.xlu0 %383
        %v385 = vld [vmem:[%s3] sm:$0xff]
        %v386 = vld [vmem:[%s3 + $0x8] sm:$0xff]
        %v387 = vld [vmem:[%s3 + $0x10] sm:$0xff]
        %v388 = vld [vmem:[%s3 + $0x18] sm:$0xff]
        %v389 = vld [vmem:[%s3 + $0x20] sm:$0xff]
        %v390 = vld [vmem:[%s3 + $0x28] sm:$0xff]
        %v391 = vld [vmem:[%s3 + $0x30] sm:$0xff]
        %v392 = vld [vmem:[%s3 + $0x38] sm:$0xff]
        %vm393 = vcmask 523264
        %v395 = vsel %vm393, %v385, 0
        %v398 = vsel %vm393, %v386, 0
        %v401 = vsel %vm393, %v387, 0
        %v404 = vsel %vm393, %v388, 0
        %v407 = vsel %vm393, %v389, 0
        %v410 = vsel %vm393, %v390, 0
        %v413 = vsel %vm393, %v391, 0
        %v416 = vsel %vm393, %v392, 0
        %418 = vmatprep.subr.mxu0 0.0
        %419 = vmatpush1.msra.mxu0 0.0
        %420 = vmatprep.subr.mxu0 0.0
        %421 = vmatpush1.msra.mxu0 0.0
        %422 = vmatprep.subr.mxu0 0.0
        %423 = vmatpush1.msra.mxu0 0.0
        %424 = vmatprep.subr.mxu0 0.0
        %425 = vmatpush1.msra.mxu0 0.0
        %426 = vmatprep.subr.mxu0 0.0
        %427 = vmatpush1.msra.mxu0 0.0
        %428 = vmatprep.subr.mxu0 0.0
        %429 = vmatpush1.msra.mxu0 0.0
        %430 = vmatprep.subr.mxu0 0.0
        %431 = vmatpush1.msra.mxu0 0.0
        %432 = vmatprep.subr.mxu0 0.0
        %433 = vmatpush1.msra.mxu0 0.0
        %434 = vmatprep.subr.mxu0 0.0
        %435 = vmatpush1.msra.mxu0 %v344
        %436 = vmatprep.subr.mxu0 0.0
        %437 = vmatpush1.msra.mxu0 %v341
        %438 = vmatprep.subr.mxu0 0.0
        %439 = vmatpush1.msra.mxu0 %v338
        %440 = vmatprep.subr.mxu0 0.0
        %441 = vmatpush1.msra.mxu0 %v335
        %442 = vmatprep.subr.mxu0 0.0
        %443 = vmatpush1.msra.mxu0 %v332
        %444 = vmatprep.subr.mxu0 0.0
        %445 = vmatpush1.msra.mxu0 %v329
        %446 = vmatprep.subr.mxu0 0.0
        %447 = vmatpush1.msra.mxu0 %v326
        %448 = vmatprep.subr.mxu0 0.0
        %449 = vmatpush1.msra.mxu0 %v323
        %450 = vmatprep.subr.mxu0 0.0
        %451 = vmatpush2.msra.mxu0 0.0
        %452 = vmatprep.subr.mxu0 0.0
        %453 = vmatpush2.msra.mxu0 0.0
        %454 = vmatprep.subr.mxu0 0.0
        %455 = vmatpush2.msra.mxu0 0.0
        %456 = vmatprep.subr.mxu0 0.0
        %457 = vmatpush2.msra.mxu0 0.0
        %458 = vmatprep.subr.mxu0 0.0
        %459 = vmatpush2.msra.mxu0 0.0
        %460 = vmatprep.subr.mxu0 0.0
        %461 = vmatpush2.msra.mxu0 0.0
        %462 = vmatprep.subr.mxu0 0.0
        %463 = vmatpush2.msra.mxu0 0.0
        %464 = vmatprep.subr.mxu0 0.0
        %465 = vmatpush2.msra.mxu0 0.0
        %466 = vmatprep.subr.mxu0 0.0
        %467 = vmatpush2.msra.mxu0 0.0
        %468 = vmatprep.subr.mxu0 0.0
        %469 = vmatpush2.msra.mxu0 0.0
        %470 = vmatprep.subr.mxu0 0.0
        %471 = vmatpush2.msra.mxu0 0.0
        %472 = vmatprep.subr.mxu0 0.0
        %473 = vmatpush2.msra.mxu0 0.0
        %474 = vmatprep.subr.mxu0 0.0
        %475 = vmatpush2.msra.mxu0 0.0
        %476 = vmatprep.subr.mxu0 0.0
        %477 = vmatpush2.msra.mxu0 0.0
        %478 = vmatprep.subr.mxu0 0.0
        %479 = vmatpush2.msra.mxu0 0.0
        %480 = vmatprep.subr.mxu0 0.0
        %481 = vmatpush2.msra.mxu0 0.0
        %482 = vmatprep.mubr.f32.mxu0 0.0
        %483 = vmatmul.mubr.f32.gmra.mxu0 %v395
        %v484 = vpop.f32.mrf.mxu0
        %v485 = vadd.f32 0.0, %v484
        %v486 = vpop.f32.mrf.mxu0
        %487 = vmatprep.mubr.f32.mxu0 0.0
        %488 = vmatmul.mubr.f32.gmra.mxu0 %v398
        %v489 = vpop.f32.mrf.mxu0
        %v490 = vadd.f32 0.0, %v489
        %v491 = vpop.f32.mrf.mxu0
        %492 = vmatprep.mubr.f32.mxu0 0.0
        %493 = vmatmul.mubr.f32.gmra.mxu0 %v401
        %v494 = vpop.f32.mrf.mxu0
        %v495 = vadd.f32 0.0, %v494
        %v496 = vpop.f32.mrf.mxu0
        %497 = vmatprep.mubr.f32.mxu0 0.0
        %498 = vmatmul.mubr.f32.gmra.mxu0 %v404
        %v499 = vpop.f32.mrf.mxu0
        %v500 = vadd.f32 0.0, %v499
        %v501 = vpop.f32.mrf.mxu0
        %502 = vmatprep.mubr.f32.mxu0 0.0
        %503 = vmatmul.mubr.f32.gmra.mxu0 %v407
        %v504 = vpop.f32.mrf.mxu0
        %v505 = vadd.f32 0.0, %v504
        %v506 = vpop.f32.mrf.mxu0
        %507 = vmatprep.mubr.f32.mxu0 0.0
        %508 = vmatmul.mubr.f32.gmra.mxu0 %v410
        %v509 = vpop.f32.mrf.mxu0
        %v510 = vadd.f32 0.0, %v509
        %v511 = vpop.f32.mrf.mxu0
        %512 = vmatprep.mubr.f32.mxu0 0.0
        %513 = vmatmul.mubr.f32.gmra.mxu0 %v413
        %v514 = vpop.f32.mrf.mxu0
        %v515 = vadd.f32 0.0, %v514
        %v516 = vpop.f32.mrf.mxu0
        %517 = vmatprep.mubr.f32.mxu0 0.0
        %518 = vmatmul.mubr.f32.gmra.mxu0 %v416
        %v519 = vpop.f32.mrf.mxu0
        %v520 = vadd.f32 0.0, %v519
        %v521 = vpop.f32.mrf.mxu0
        %522 = vdwg.mxu0
        %523 = vmatprep.subr.mxu0 0.0
        %524 = vmatpush1.msra.mxu0 0.0
        %525 = vmatprep.subr.mxu0 0.0
        %526 = vmatpush1.msra.mxu0 0.0
        %527 = vmatprep.subr.mxu0 0.0
        %528 = vmatpush1.msra.mxu0 0.0
        %529 = vmatprep.subr.mxu0 0.0
        %530 = vmatpush1.msra.mxu0 0.0
        %531 = vmatprep.subr.mxu0 0.0
        %532 = vmatpush1.msra.mxu0 0.0
        %533 = vmatprep.subr.mxu0 0.0
        %534 = vmatpush1.msra.mxu0 0.0
        %535 = vmatprep.subr.mxu0 0.0
        %536 = vmatpush1.msra.mxu0 0.0
        %537 = vmatprep.subr.mxu0 0.0
        %538 = vmatpush1.msra.mxu0 0.0
        %539 = vmatprep.subr.mxu0 0.0
        %540 = vmatpush1.msra.mxu0 %v384
        %541 = vmatprep.subr.mxu0 0.0
        %542 = vmatpush1.msra.mxu0 %v381
        %543 = vmatprep.subr.mxu0 0.0
        %544 = vmatpush1.msra.mxu0 %v378
        %545 = vmatprep.subr.mxu0 0.0
        %546 = vmatpush1.msra.mxu0 %v375
        %547 = vmatprep.subr.mxu0 0.0
        %548 = vmatpush1.msra.mxu0 %v372
        %549 = vmatprep.subr.mxu0 0.0
        %550 = vmatpush1.msra.mxu0 %v369
        %551 = vmatprep.subr.mxu0 0.0
        %552 = vmatpush1.msra.mxu0 %v366
        %553 = vmatprep.subr.mxu0 0.0
        %554 = vmatpush1.msra.mxu0 %v363
        %555 = vmatprep.subr.mxu0 0.0
        %556 = vmatpush2.msra.mxu0 0.0
        %557 = vmatprep.subr.mxu0 0.0
        %558 = vmatpush2.msra.mxu0 0.0
        %559 = vmatprep.subr.mxu0 0.0
        %560 = vmatpush2.msra.mxu0 0.0
        %561 = vmatprep.subr.mxu0 0.0
        %562 = vmatpush2.msra.mxu0 0.0
        %563 = vmatprep.subr.mxu0 0.0
        %564 = vmatpush2.msra.mxu0 0.0
        %565 = vmatprep.subr.mxu0 0.0
        %566 = vmatpush2.msra.mxu0 0.0
        %567 = vmatprep.subr.mxu0 0.0
        %568 = vmatpush2.msra.mxu0 0.0
        %569 = vmatprep.subr.mxu0 0.0
        %570 = vmatpush2.msra.mxu0 0.0
        %571 = vmatprep.subr.mxu0 0.0
        %572 = vmatpush2.msra.mxu0 0.0
        %573 = vmatprep.subr.mxu0 0.0
        %574 = vmatpush2.msra.mxu0 0.0
        %575 = vmatprep.subr.mxu0 0.0
        %576 = vmatpush2.msra.mxu0 0.0
        %577 = vmatprep.subr.mxu0 0.0
        %578 = vmatpush2.msra.mxu0 0.0
        %579 = vmatprep.subr.mxu0 0.0
        %580 = vmatpush2.msra.mxu0 0.0
        %581 = vmatprep.subr.mxu0 0.0
        %582 = vmatpush2.msra.mxu0 0.0
        %583 = vmatprep.subr.mxu0 0.0
        %584 = vmatpush2.msra.mxu0 0.0
        %585 = vmatprep.subr.mxu0 0.0
        %586 = vmatpush2.msra.mxu0 0.0
        %587 = vmatprep.mubr.f32.mxu0 0.0
        %588 = vmatmul.mubr.f32.gmra.mxu0 %v395
        %v589 = vpop.f32.mrf.mxu0
        %v590 = vadd.f32 0.0, %v589
        %v591 = vpop.f32.mrf.mxu0
        %592 = vmatprep.mubr.f32.mxu0 0.0
        %593 = vmatmul.mubr.f32.gmra.mxu0 %v398
        %v594 = vpop.f32.mrf.mxu0
        %v595 = vadd.f32 0.0, %v594
        %v596 = vpop.f32.mrf.mxu0
        %597 = vmatprep.mubr.f32.mxu0 0.0
        %598 = vmatmul.mubr.f32.gmra.mxu0 %v401
        %v599 = vpop.f32.mrf.mxu0
        %v600 = vadd.f32 0.0, %v599
        %v601 = vpop.f32.mrf.mxu0
        %602 = vmatprep.mubr.f32.mxu0 0.0
        %603 = vmatmul.mubr.f32.gmra.mxu0 %v404
        %v604 = vpop.f32.mrf.mxu0
        %v605 = vadd.f32 0.0, %v604
        %v606 = vpop.f32.mrf.mxu0
        %607 = vmatprep.mubr.f32.mxu0 0.0
        %608 = vmatmul.mubr.f32.gmra.mxu0 %v407
        %v609 = vpop.f32.mrf.mxu0
        %v610 = vadd.f32 0.0, %v609
        %v611 = vpop.f32.mrf.mxu0
        %612 = vmatprep.mubr.f32.mxu0 0.0
        %613 = vmatmul.mubr.f32.gmra.mxu0 %v410
        %v614 = vpop.f32.mrf.mxu0
        %v615 = vadd.f32 0.0, %v614
        %v616 = vpop.f32.mrf.mxu0
        %617 = vmatprep.mubr.f32.mxu0 0.0
        %618 = vmatmul.mubr.f32.gmra.mxu0 %v413
        %v619 = vpop.f32.mrf.mxu0
        %v620 = vadd.f32 0.0, %v619
        %v621 = vpop.f32.mrf.mxu0
        %622 = vmatprep.mubr.f32.mxu0 0.0
        %623 = vmatmul.mubr.f32.gmra.mxu0 %v416
        %v624 = vpop.f32.mrf.mxu0
        %v625 = vadd.f32 0.0, %v624
        %v626 = vpop.f32.mrf.mxu0
        %627 = vdwg.mxu0
        %v628 = vmul.f32 %v485, %v485
        %v629 = vmul.f32 %v490, %v490
        %v630 = vmul.f32 %v495, %v495
        %v631 = vmul.f32 %v500, %v500
        %v632 = vmul.f32 %v505, %v505
        %v633 = vmul.f32 %v510, %v510
        %v634 = vmul.f32 %v515, %v515
        %v635 = vmul.f32 %v520, %v520
        %v636 = vsub.f32 %v590, %v628
        %v637 = vsub.f32 %v595, %v629
        %v638 = vsub.f32 %v600, %v630
        %v639 = vsub.f32 %v605, %v631
        %v640 = vsub.f32 %v610, %v632
        %v641 = vsub.f32 %v615, %v633
        %v642 = vsub.f32 %v620, %v634
        %v643 = vsub.f32 %v625, %v635
        %v644 = vadd.f32 %v636, 1e-06
        %v645 = vadd.f32 %v637, 1e-06
        %v646 = vadd.f32 %v638, 1e-06
        %v647 = vadd.f32 %v639, 1e-06
        %v648 = vadd.f32 %v640, 1e-06
        %v649 = vadd.f32 %v641, 1e-06
        %v650 = vadd.f32 %v642, 1e-06
        %v651 = vadd.f32 %v643, 1e-06
        %v652 = vrsqrt.pop %v644
        %v653 = vrsqrt.pop %v645
        %v654 = vrsqrt.pop %v646
        %v655 = vrsqrt.pop %v647
        %v656 = vrsqrt.pop %v648
        %v657 = vrsqrt.pop %v649
        %v658 = vrsqrt.pop %v650
        %v659 = vrsqrt.pop %v651
        %661 = vset.pattern.permute.xlu0 0
        %662 = vperm.xlu0 %661, %v485
        %v663 = vpop.permute.xlu0 %662
        %666 = vset.pattern.permute.xlu0 0
        %667 = vperm.xlu0 %666, %v490
        %v668 = vpop.permute.xlu0 %667
        %671 = vset.pattern.permute.xlu0 0
        %672 = vperm.xlu0 %671, %v495
        %v673 = vpop.permute.xlu0 %672
        %676 = vset.pattern.permute.xlu0 0
        %677 = vperm.xlu0 %676, %v500
        %v678 = vpop.permute.xlu0 %677
        %681 = vset.pattern.permute.xlu0 0
        %682 = vperm.xlu0 %681, %v505
        %v683 = vpop.permute.xlu0 %682
        %686 = vset.pattern.permute.xlu0 0
        %687 = vperm.xlu0 %686, %v510
        %v688 = vpop.permute.xlu0 %687
        %691 = vset.pattern.permute.xlu0 0
        %692 = vperm.xlu0 %691, %v515
        %v693 = vpop.permute.xlu0 %692
        %696 = vset.pattern.permute.xlu0 0
        %697 = vperm.xlu0 %696, %v520
        %v698 = vpop.permute.xlu0 %697
        %v700 = vsub.f32 %v305, %v663
        %v701 = vsub.f32 %v306, %v663
        %v702 = vsub.f32 %v307, %v668
        %v703 = vsub.f32 %v308, %v668
        %v704 = vsub.f32 %v309, %v673
        %v705 = vsub.f32 %v310, %v673
        %v706 = vsub.f32 %v311, %v678
        %v707 = vsub.f32 %v312, %v678
        %v708 = vsub.f32 %v313, %v683
        %v709 = vsub.f32 %v314, %v683
        %v710 = vsub.f32 %v315, %v688
        %v711 = vsub.f32 %v316, %v688
        %v712 = vsub.f32 %v317, %v693
        %v713 = vsub.f32 %v318, %v693
        %v714 = vsub.f32 %v319, %v698
        %v715 = vsub.f32 %v320, %v698
        %v716 = vld [vmem:[%s1] sm:$0xff]
        %v717 = vld [vmem:[%s1 + $0x8] sm:$0xff]
        %v718 = vld [vmem:[%s1 + $0x10] sm:$0xff]
        %v719 = vld [vmem:[%s1 + $0x18] sm:$0xff]
        %v720 = vld [vmem:[%s1 + $0x20] sm:$0xff]
        %v721 = vld [vmem:[%s1 + $0x28] sm:$0xff]
        %v722 = vld [vmem:[%s1 + $0x30] sm:$0xff]
        %v723 = vld [vmem:[%s1 + $0x38] sm:$0xff]
        %v724 = vmul.f32 %v652, %v716
        %v725 = vmul.f32 %v653, %v717
        %v726 = vmul.f32 %v654, %v718
        %v727 = vmul.f32 %v655, %v719
        %v728 = vmul.f32 %v656, %v720
        %v729 = vmul.f32 %v657, %v721
        %v730 = vmul.f32 %v658, %v722
        %v731 = vmul.f32 %v659, %v723
        %733 = vset.pattern.permute.xlu0 0
        %734 = vperm.xlu0 %733, %v724
        %v735 = vpop.permute.xlu0 %734
        %738 = vset.pattern.permute.xlu0 0
        %739 = vperm.xlu0 %738, %v725
        %v740 = vpop.permute.xlu0 %739
        %743 = vset.pattern.permute.xlu0 0
        %744 = vperm.xlu0 %743, %v726
        %v745 = vpop.permute.xlu0 %744
        %748 = vset.pattern.permute.xlu0 0
        %749 = vperm.xlu0 %748, %v727
        %v750 = vpop.permute.xlu0 %749
        %753 = vset.pattern.permute.xlu0 0
        %754 = vperm.xlu0 %753, %v728
        %v755 = vpop.permute.xlu0 %754
        %758 = vset.pattern.permute.xlu0 0
        %759 = vperm.xlu0 %758, %v729
        %v760 = vpop.permute.xlu0 %759
        %763 = vset.pattern.permute.xlu0 0
        %764 = vperm.xlu0 %763, %v730
        %v765 = vpop.permute.xlu0 %764
        %768 = vset.pattern.permute.xlu0 0
        %769 = vperm.xlu0 %768, %v731
        %v770 = vpop.permute.xlu0 %769
        %v772 = vmul.f32 %v700, %v735
        %v773 = vmul.f32 %v701, %v735
        %v774 = vmul.f32 %v702, %v740
        %v775 = vmul.f32 %v703, %v740
        %v776 = vmul.f32 %v704, %v745
        %v777 = vmul.f32 %v705, %v745
        %v778 = vmul.f32 %v706, %v750
        %v779 = vmul.f32 %v707, %v750
        %v780 = vmul.f32 %v708, %v755
        %v781 = vmul.f32 %v709, %v755
        %v782 = vmul.f32 %v710, %v760
        %v783 = vmul.f32 %v711, %v760
        %v784 = vmul.f32 %v712, %v765
        %v785 = vmul.f32 %v713, %v765
        %v786 = vmul.f32 %v714, %v770
        %v787 = vmul.f32 %v715, %v770
        %v788 = vld [vmem:[%s2] sm:$0xff]
        %v789 = vld [vmem:[%s2 + $0x8] sm:$0xff]
        %v790 = vld [vmem:[%s2 + $0x10] sm:$0xff]
        %v791 = vld [vmem:[%s2 + $0x18] sm:$0xff]
        %v792 = vld [vmem:[%s2 + $0x20] sm:$0xff]
        %v793 = vld [vmem:[%s2 + $0x28] sm:$0xff]
        %v794 = vld [vmem:[%s2 + $0x30] sm:$0xff]
        %v795 = vld [vmem:[%s2 + $0x38] sm:$0xff]
        %797 = vset.pattern.permute.xlu0 0
        %798 = vperm.xlu0 %797, %v788
        %v799 = vpop.permute.xlu0 %798
        %802 = vset.pattern.permute.xlu0 0
        %803 = vperm.xlu0 %802, %v789
        %v804 = vpop.permute.xlu0 %803
        %807 = vset.pattern.permute.xlu0 0
        %808 = vperm.xlu0 %807, %v790
        %v809 = vpop.permute.xlu0 %808
        %812 = vset.pattern.permute.xlu0 0
        %813 = vperm.xlu0 %812, %v791
        %v814 = vpop.permute.xlu0 %813
        %817 = vset.pattern.permute.xlu0 0
        %818 = vperm.xlu0 %817, %v792
        %v819 = vpop.permute.xlu0 %818
        %822 = vset.pattern.permute.xlu0 0
        %823 = vperm.xlu0 %822, %v793
        %v824 = vpop.permute.xlu0 %823
        %827 = vset.pattern.permute.xlu0 0
        %828 = vperm.xlu0 %827, %v794
        %v829 = vpop.permute.xlu0 %828
        %832 = vset.pattern.permute.xlu0 0
        %833 = vperm.xlu0 %832, %v795
        %v834 = vpop.permute.xlu0 %833
        %v836 = vadd.f32 %v772, %v799
        %v837 = vadd.f32 %v773, %v799
        %v838 = vadd.f32 %v774, %v804
        %v839 = vadd.f32 %v775, %v804
        %v840 = vadd.f32 %v776, %v809
        %v841 = vadd.f32 %v777, %v809
        %v842 = vadd.f32 %v778, %v814
        %v843 = vadd.f32 %v779, %v814
        %v844 = vadd.f32 %v780, %v819
        %v845 = vadd.f32 %v781, %v819
        %v846 = vadd.f32 %v782, %v824
        %v847 = vadd.f32 %v783, %v824
        %v848 = vadd.f32 %v784, %v829
        %v849 = vadd.f32 %v785, %v829
        %v850 = vadd.f32 %v786, %v834
        %v851 = vadd.f32 %v787, %v834
        %v852 = vld [vmem:[%s4] sm:$0xf]
        %v853 = vld [vmem:[%s4 + $0x4] sm:$0xf]
        %v854 = vld [vmem:[%s4 + $0x8] sm:$0xf]
        %v855 = vld [vmem:[%s4 + $0xc] sm:$0xf]
        %v856 = vld [vmem:[%s4 + $0x10] sm:$0xf]
        %v857 = vld [vmem:[%s4 + $0x14] sm:$0xf]
        %v858 = vld [vmem:[%s4 + $0x18] sm:$0xf]
        %v859 = vld [vmem:[%s4 + $0x1c] sm:$0xf]
        %v860 = vld [vmem:[%s4 + $0x20] sm:$0xf]
        %v861 = vld [vmem:[%s4 + $0x24] sm:$0xf]
        %v862 = vld [vmem:[%s4 + $0x28] sm:$0xf]
        %v863 = vld [vmem:[%s4 + $0x2c] sm:$0xf]
        %v864 = vld [vmem:[%s4 + $0x30] sm:$0xf]
        %v865 = vld [vmem:[%s4 + $0x34] sm:$0xf]
        %v866 = vld [vmem:[%s4 + $0x38] sm:$0xf]
        %v867 = vld [vmem:[%s4 + $0x3c] sm:$0xf]
        %v868 = vld [vmem:[%s4 + $0x40] sm:$0xf]
        %v869 = vld [vmem:[%s4 + $0x44] sm:$0xf]
        %v870 = vld [vmem:[%s4 + $0x48] sm:$0xf]
        %v871 = vld [vmem:[%s4 + $0x4c] sm:$0xf]
        %v872 = vld [vmem:[%s4 + $0x50] sm:$0xf]
        %v873 = vld [vmem:[%s4 + $0x54] sm:$0xf]
        %v874 = vld [vmem:[%s4 + $0x58] sm:$0xf]
        %v875 = vld [vmem:[%s4 + $0x5c] sm:$0xf]
        %v876 = vpack.c.bf16 %v838, %v836
        %v877 = vpack.c.bf16 %v839, %v837
        %v878 = vpack.c.bf16 %v842, %v840
        %v879 = vpack.c.bf16 %v843, %v841
        %v880 = vpack.c.bf16 %v846, %v844
        %v881 = vpack.c.bf16 %v847, %v845
        %v882 = vpack.c.bf16 %v850, %v848
        %v883 = vpack.c.bf16 %v851, %v849
        %v884 = vld [vmem:[%s5] sm:$0xff]
        %v885 = vld [vmem:[%s5 + $0x8] sm:$0xff]
        %v886 = vld [vmem:[%s5 + $0x10] sm:$0xff]
        %v887 = vld [vmem:[%s5 + $0x18] sm:$0xff]
        %v888 = vld [vmem:[%s5 + $0x20] sm:$0xff]
        %v889 = vld [vmem:[%s5 + $0x28] sm:$0xff]
        %v890 = vld [vmem:[%s5 + $0x30] sm:$0xff]
        %v891 = vld [vmem:[%s5 + $0x38] sm:$0xff]
        %v892 = vld [vmem:[%s5 + $0x40] sm:$0xff]
        %v893 = vld [vmem:[%s5 + $0x48] sm:$0xff]
        %v894 = vld [vmem:[%s5 + $0x50] sm:$0xff]
        %v895 = vld [vmem:[%s5 + $0x58] sm:$0xff]
        %v896 = vld [vmem:[%s5 + $0x60] sm:$0xff]
        %v897 = vld [vmem:[%s5 + $0x68] sm:$0xff]
        %v898 = vld [vmem:[%s5 + $0x70] sm:$0xff]
        %v899 = vld [vmem:[%s5 + $0x78] sm:$0xff]
        %v900 = vld [vmem:[%s5 + $0x80] sm:$0xff]
        %v901 = vld [vmem:[%s5 + $0x88] sm:$0xff]
        %v902 = vld [vmem:[%s5 + $0x90] sm:$0xff]
        %v903 = vld [vmem:[%s5 + $0x98] sm:$0xff]
        %v904 = vld [vmem:[%s5 + $0xa0] sm:$0xff]
        %v905 = vld [vmem:[%s5 + $0xa8] sm:$0xff]
        %v906 = vld [vmem:[%s5 + $0xb0] sm:$0xff]
        %v907 = vld [vmem:[%s5 + $0xb8] sm:$0xff]
        %909 = vset.pattern.permute.xlu0 0
        %910 = vperm.xlu0 %909, %v884
        %v911 = vpop.permute.xlu0 %910
        %914 = vset.pattern.permute.xlu0 0
        %915 = vperm.xlu0 %914, %v885
        %v916 = vpop.permute.xlu0 %915
        %919 = vset.pattern.permute.xlu0 0
        %920 = vperm.xlu0 %919, %v886
        %v921 = vpop.permute.xlu0 %920
        %924 = vset.pattern.permute.xlu0 0
        %925 = vperm.xlu0 %924, %v887
        %v926 = vpop.permute.xlu0 %925
        %929 = vset.pattern.permute.xlu0 0
        %930 = vperm.xlu0 %929, %v888
        %v931 = vpop.permute.xlu0 %930
        %934 = vset.pattern.permute.xlu0 0
        %935 = vperm.xlu0 %934, %v889
        %v936 = vpop.permute.xlu0 %935
        %939 = vset.pattern.permute.xlu0 0
        %940 = vperm.xlu0 %939, %v890
        %v941 = vpop.permute.xlu0 %940
        %944 = vset.pattern.permute.xlu0 0
        %945 = vperm.xlu0 %944, %v891
        %v946 = vpop.permute.xlu0 %945
        %949 = vset.pattern.permute.xlu0 0
        %950 = vperm.xlu0 %949, %v892
        %v951 = vpop.permute.xlu0 %950
        %954 = vset.pattern.permute.xlu0 0
        %955 = vperm.xlu0 %954, %v893
        %v956 = vpop.permute.xlu0 %955
        %959 = vset.pattern.permute.xlu0 0
        %960 = vperm.xlu0 %959, %v894
        %v961 = vpop.permute.xlu0 %960
        %964 = vset.pattern.permute.xlu0 0
        %965 = vperm.xlu0 %964, %v895
        %v966 = vpop.permute.xlu0 %965
        %969 = vset.pattern.permute.xlu0 0
        %970 = vperm.xlu0 %969, %v896
        %v971 = vpop.permute.xlu0 %970
        %974 = vset.pattern.permute.xlu0 0
        %975 = vperm.xlu0 %974, %v897
        %v976 = vpop.permute.xlu0 %975
        %979 = vset.pattern.permute.xlu0 0
        %980 = vperm.xlu0 %979, %v898
        %v981 = vpop.permute.xlu0 %980
        %984 = vset.pattern.permute.xlu0 0
        %985 = vperm.xlu0 %984, %v899
        %v986 = vpop.permute.xlu0 %985
        %989 = vset.pattern.permute.xlu0 0
        %990 = vperm.xlu0 %989, %v900
        %v991 = vpop.permute.xlu0 %990
        %994 = vset.pattern.permute.xlu0 0
        %995 = vperm.xlu0 %994, %v901
        %v996 = vpop.permute.xlu0 %995
        %999 = vset.pattern.permute.xlu0 0
        %1000 = vperm.xlu0 %999, %v902
        %v1001 = vpop.permute.xlu0 %1000
        %1004 = vset.pattern.permute.xlu0 0
        %1005 = vperm.xlu0 %1004, %v903
        %v1006 = vpop.permute.xlu0 %1005
        %1009 = vset.pattern.permute.xlu0 0
        %1010 = vperm.xlu0 %1009, %v904
        %v1011 = vpop.permute.xlu0 %1010
        %1014 = vset.pattern.permute.xlu0 0
        %1015 = vperm.xlu0 %1014, %v905
        %v1016 = vpop.permute.xlu0 %1015
        %1019 = vset.pattern.permute.xlu0 0
        %1020 = vperm.xlu0 %1019, %v906
        %v1021 = vpop.permute.xlu0 %1020
        %1024 = vset.pattern.permute.xlu0 0
        %1025 = vperm.xlu0 %1024, %v907
        %v1026 = vpop.permute.xlu0 %1025
        %v1052 = vunpack.c.l.b16 %v852
        %v1053 = vunpack.c.l.b16 %v853
        %v1054 = vunpack.c.l.b16 %v854
        %v1055 = vunpack.c.l.b16 %v855
        %v1056 = vunpack.c.l.b16 %v856
        %v1057 = vunpack.c.l.b16 %v857
        %v1058 = vunpack.c.l.b16 %v858
        %v1059 = vunpack.c.l.b16 %v859
        %v1060 = vunpack.c.l.b16 %v860
        %v1061 = vunpack.c.l.b16 %v861
        %v1062 = vunpack.c.l.b16 %v862
        %v1063 = vunpack.c.l.b16 %v863
        %v1064 = vunpack.c.l.b16 %v864
        %v1065 = vunpack.c.l.b16 %v865
        %v1066 = vunpack.c.l.b16 %v866
        %v1067 = vunpack.c.l.b16 %v867
        %v1068 = vunpack.c.l.b16 %v868
        %v1069 = vunpack.c.l.b16 %v869
        %v1070 = vunpack.c.l.b16 %v870
        %v1071 = vunpack.c.l.b16 %v871
        %v1072 = vunpack.c.l.b16 %v872
        %v1073 = vunpack.c.l.b16 %v873
        %v1074 = vunpack.c.l.b16 %v874
        %v1075 = vunpack.c.l.b16 %v875
        %v1076 = vpack.c.b16 %v1053, %v1052
        %v1077 = vpack.c.b16 %v1055, %v1054
        %v1078 = vpack.c.b16 %v1057, %v1056
        %v1079 = vpack.c.b16 %v1059, %v1058
        %v1080 = vpack.c.b16 %v1061, %v1060
        %v1081 = vpack.c.b16 %v1063, %v1062
        %v1082 = vpack.c.b16 %v1065, %v1064
        %v1083 = vpack.c.b16 %v1067, %v1066
        %v1084 = vpack.c.b16 %v1069, %v1068
        %v1085 = vpack.c.b16 %v1071, %v1070
        %v1086 = vpack.c.b16 %v1073, %v1072
        %v1087 = vpack.c.b16 %v1075, %v1074
        %v1089 = vsel %vm393, %v1076, 0
        %v1092 = vsel %vm393, %v1077, 0
        %v1095 = vsel %vm393, %v1078, 0
        %v1098 = vsel %vm393, %v1079, 0
        %v1101 = vsel %vm393, %v1080, 0
        %v1104 = vsel %vm393, %v1081, 0
        %v1107 = vsel %vm393, %v1082, 0
        %v1110 = vsel %vm393, %v1083, 0
        %v1113 = vsel %vm393, %v1084, 0
        %v1116 = vsel %vm393, %v1085, 0
        %v1119 = vsel %vm393, %v1086, 0
        %v1122 = vsel %vm393, %v1087, 0
        %1124 = vmatprep.subr.bf16.mxu0 0
        %1125 = vmatpush1.bf16.msra.mxu0 0
        %1126 = vmatprep.subr.bf16.mxu0 0
        %1127 = vmatpush1.bf16.msra.mxu0 0
        %1128 = vmatprep.subr.bf16.mxu0 0
        %1129 = vmatpush1.bf16.msra.mxu0 0
        %1130 = vmatprep.subr.bf16.mxu0 0
        %1131 = vmatpush1.bf16.msra.mxu0 0
        %1132 = vmatprep.subr.bf16.mxu0 %v883
        %1133 = vmatpush1.bf16.msra.mxu0 %v882
        %1134 = vmatprep.subr.bf16.mxu0 %v881
        %1135 = vmatpush1.bf16.msra.mxu0 %v880
        %1136 = vmatprep.subr.bf16.mxu0 %v879
        %1137 = vmatpush1.bf16.msra.mxu0 %v878
        %1138 = vmatprep.subr.bf16.mxu0 %v877
        %1139 = vmatpush1.bf16.msra.mxu0 %v876
        %1140 = vmatprep.subr.bf16.mxu0 0
        %1141 = vmatpush2.bf16.msra.mxu0 0
        %1142 = vmatprep.subr.bf16.mxu0 0
        %1143 = vmatpush2.bf16.msra.mxu0 0
        %1144 = vmatprep.subr.bf16.mxu0 0
        %1145 = vmatpush2.bf16.msra.mxu0 0
        %1146 = vmatprep.subr.bf16.mxu0 0
        %1147 = vmatpush2.bf16.msra.mxu0 0
        %1148 = vmatprep.subr.bf16.mxu0 0
        %1149 = vmatpush2.bf16.msra.mxu0 0
        %1150 = vmatprep.subr.bf16.mxu0 0
        %1151 = vmatpush2.bf16.msra.mxu0 0
        %1152 = vmatprep.subr.bf16.mxu0 0
        %1153 = vmatpush2.bf16.msra.mxu0 0
        %1154 = vmatprep.subr.bf16.mxu0 0
        %1155 = vmatpush2.bf16.msra.mxu0 0
        %1156 = vmatprep.mubr.bf16.mxu0 0
        %1157 = vmatmul.mubr.bf16.gmra.mxu0 %v1089
        %v1158 = vpop.f32.mrf.mxu0
        %v1159 = vadd.f32 %v911, %v1158
        %v1160 = vpop.f32.mrf.mxu0
        %v1161 = vadd.f32 %v911, %v1160
        %v1162 = vpop.f32.mrf.mxu0
        %v1163 = vadd.f32 %v916, %v1162
        %v1164 = vpop.f32.mrf.mxu0
        %v1165 = vadd.f32 %v916, %v1164
        %1166 = vmatprep.mubr.bf16.mxu0 0
        %1167 = vmatmul.mubr.bf16.gmra.mxu0 %v1092
        %v1168 = vpop.f32.mrf.mxu0
        %v1169 = vadd.f32 %v921, %v1168
        %v1170 = vpop.f32.mrf.mxu0
        %v1171 = vadd.f32 %v921, %v1170
        %v1172 = vpop.f32.mrf.mxu0
        %v1173 = vadd.f32 %v926, %v1172
        %v1174 = vpop.f32.mrf.mxu0
        %v1175 = vadd.f32 %v926, %v1174
        %1176 = vmatprep.mubr.bf16.mxu0 0
        %1177 = vmatmul.mubr.bf16.gmra.mxu0 %v1095
        %v1178 = vpop.f32.mrf.mxu0
        %v1179 = vadd.f32 %v931, %v1178
        %v1180 = vpop.f32.mrf.mxu0
        %v1181 = vadd.f32 %v931, %v1180
        %v1182 = vpop.f32.mrf.mxu0
        %v1183 = vadd.f32 %v936, %v1182
        %v1184 = vpop.f32.mrf.mxu0
        %v1185 = vadd.f32 %v936, %v1184
        %1186 = vmatprep.mubr.bf16.mxu0 0
        %1187 = vmatmul.mubr.bf16.gmra.mxu0 %v1098
        %v1188 = vpop.f32.mrf.mxu0
        %v1189 = vadd.f32 %v941, %v1188
        %v1190 = vpop.f32.mrf.mxu0
        %v1191 = vadd.f32 %v941, %v1190
        %v1192 = vpop.f32.mrf.mxu0
        %v1193 = vadd.f32 %v946, %v1192
        %v1194 = vpop.f32.mrf.mxu0
        %v1195 = vadd.f32 %v946, %v1194
        %1196 = vmatprep.mubr.bf16.mxu0 0
        %1197 = vmatmul.mubr.bf16.gmra.mxu0 %v1101
        %v1198 = vpop.f32.mrf.mxu0
        %v1199 = vadd.f32 %v951, %v1198
        %v1200 = vpop.f32.mrf.mxu0
        %v1201 = vadd.f32 %v951, %v1200
        %v1202 = vpop.f32.mrf.mxu0
        %v1203 = vadd.f32 %v956, %v1202
        %v1204 = vpop.f32.mrf.mxu0
        %v1205 = vadd.f32 %v956, %v1204
        %1206 = vmatprep.mubr.bf16.mxu0 0
        %1207 = vmatmul.mubr.bf16.gmra.mxu0 %v1104
        %v1208 = vpop.f32.mrf.mxu0
        %v1209 = vadd.f32 %v961, %v1208
        %v1210 = vpop.f32.mrf.mxu0
        %v1211 = vadd.f32 %v961, %v1210
        %v1212 = vpop.f32.mrf.mxu0
        %v1213 = vadd.f32 %v966, %v1212
        %v1214 = vpop.f32.mrf.mxu0
        %v1215 = vadd.f32 %v966, %v1214
        %1216 = vmatprep.mubr.bf16.mxu0 0
        %1217 = vmatmul.mubr.bf16.gmra.mxu0 %v1107
        %v1218 = vpop.f32.mrf.mxu0
        %v1219 = vadd.f32 %v971, %v1218
        %v1220 = vpop.f32.mrf.mxu0
        %v1221 = vadd.f32 %v971, %v1220
        %v1222 = vpop.f32.mrf.mxu0
        %v1223 = vadd.f32 %v976, %v1222
        %v1224 = vpop.f32.mrf.mxu0
        %v1225 = vadd.f32 %v976, %v1224
        %1226 = vmatprep.mubr.bf16.mxu0 0
        %1227 = vmatmul.mubr.bf16.gmra.mxu0 %v1110
        %v1228 = vpop.f32.mrf.mxu0
        %v1229 = vadd.f32 %v981, %v1228
        %v1230 = vpop.f32.mrf.mxu0
        %v1231 = vadd.f32 %v981, %v1230
        %v1232 = vpop.f32.mrf.mxu0
        %v1233 = vadd.f32 %v986, %v1232
        %v1234 = vpop.f32.mrf.mxu0
        %v1235 = vadd.f32 %v986, %v1234
        %1236 = vmatprep.mubr.bf16.mxu0 0
        %1237 = vmatmul.mubr.bf16.gmra.mxu0 %v1113
        %v1238 = vpop.f32.mrf.mxu0
        %v1239 = vadd.f32 %v991, %v1238
        %v1240 = vpop.f32.mrf.mxu0
        %v1241 = vadd.f32 %v991, %v1240
        %v1242 = vpop.f32.mrf.mxu0
        %v1243 = vadd.f32 %v996, %v1242
        %v1244 = vpop.f32.mrf.mxu0
        %v1245 = vadd.f32 %v996, %v1244
        %1246 = vmatprep.mubr.bf16.mxu0 0
        %1247 = vmatmul.mubr.bf16.gmra.mxu0 %v1116
        %v1248 = vpop.f32.mrf.mxu0
        %v1249 = vadd.f32 %v1001, %v1248
        %v1250 = vpop.f32.mrf.mxu0
        %v1251 = vadd.f32 %v1001, %v1250
        %v1252 = vpop.f32.mrf.mxu0
        %v1253 = vadd.f32 %v1006, %v1252
        %v1254 = vpop.f32.mrf.mxu0
        %v1255 = vadd.f32 %v1006, %v1254
        %1256 = vmatprep.mubr.bf16.mxu0 0
        %1257 = vmatmul.mubr.bf16.gmra.mxu0 %v1119
        %v1258 = vpop.f32.mrf.mxu0
        %v1259 = vadd.f32 %v1011, %v1258
        %v1260 = vpop.f32.mrf.mxu0
        %v1261 = vadd.f32 %v1011, %v1260
        %v1262 = vpop.f32.mrf.mxu0
        %v1263 = vadd.f32 %v1016, %v1262
        %v1264 = vpop.f32.mrf.mxu0
        %v1265 = vadd.f32 %v1016, %v1264
        %1266 = vmatprep.mubr.bf16.mxu0 0
        %1267 = vmatmul.mubr.bf16.gmra.mxu0 %v1122
        %v1268 = vpop.f32.mrf.mxu0
        %v1269 = vadd.f32 %v1021, %v1268
        %v1270 = vpop.f32.mrf.mxu0
        %v1271 = vadd.f32 %v1021, %v1270
        %v1272 = vpop.f32.mrf.mxu0
        %v1273 = vadd.f32 %v1026, %v1272
        %v1274 = vpop.f32.mrf.mxu0
        %v1275 = vadd.f32 %v1026, %v1274
        %1276 = vdwg.mxu0
        %v1277 = vpack.c.bf16 %v1163, %v1159
        %v1278 = vpack.c.bf16 %v1165, %v1161
        %v1279 = vpack.c.bf16 %v1173, %v1169
        %v1280 = vpack.c.bf16 %v1175, %v1171
        %v1281 = vpack.c.bf16 %v1183, %v1179
        %v1282 = vpack.c.bf16 %v1185, %v1181
        %v1283 = vpack.c.bf16 %v1193, %v1189
        %v1284 = vpack.c.bf16 %v1195, %v1191
        %v1285 = vpack.c.bf16 %v1203, %v1199
        %v1286 = vpack.c.bf16 %v1205, %v1201
        %v1287 = vpack.c.bf16 %v1213, %v1209
        %v1288 = vpack.c.bf16 %v1215, %v1211
        %v1289 = vpack.c.bf16 %v1223, %v1219
        %v1290 = vpack.c.bf16 %v1225, %v1221
        %v1291 = vpack.c.bf16 %v1233, %v1229
        %v1292 = vpack.c.bf16 %v1235, %v1231
        %v1293 = vpack.c.bf16 %v1243, %v1239
        %v1294 = vpack.c.bf16 %v1245, %v1241
        %v1295 = vpack.c.bf16 %v1253, %v1249
        %v1296 = vpack.c.bf16 %v1255, %v1251
        %v1297 = vpack.c.bf16 %v1263, %v1259
        %v1298 = vpack.c.bf16 %v1265, %v1261
        %v1299 = vpack.c.bf16 %v1273, %v1269
        %v1300 = vpack.c.bf16 %v1275, %v1271
        %1301 = vxpose.xlu0.c.b16.start [1/8] %v1277, 128
        %1302 = vxpose.xlu0.c.b16.cont [2/8] 0, 128
        %1303 = vxpose.xlu0.c.b16.cont [3/8] 0, 128
        %1304 = vxpose.xlu0.c.b16.cont [4/8] 0, 128
        %1305 = vxpose.xlu0.c.b16.cont [5/8] 0, 128
        %1306 = vxpose.xlu0.c.b16.cont [6/8] 0, 128
        %1307 = vxpose.xlu0.c.b16.cont [7/8] 0, 128
        %1308 = vxpose.xlu0.c.b16.end [8/8] 0, 128
        %v1309 = vpop.trf.xlu0
        %v1310 = vpop.trf.xlu0
        %v1311 = vpop.trf.xlu0
        %v1312 = vpop.trf.xlu0
        %v1313 = vpop.trf.xlu0
        %v1314 = vpop.trf.xlu0
        %v1315 = vpop.trf.xlu0
        %v1316 = vpop.trf.xlu0
        %1317 = vxpose.xlu0.c.b16.start [1/8] %v1278, 128
        %1318 = vxpose.xlu0.c.b16.cont [2/8] 0, 128
        %1319 = vxpose.xlu0.c.b16.cont [3/8] 0, 128
        %1320 = vxpose.xlu0.c.b16.cont [4/8] 0, 128
        %1321 = vxpose.xlu0.c.b16.cont [5/8] 0, 128
        %1322 = vxpose.xlu0.c.b16.cont [6/8] 0, 128
        %1323 = vxpose.xlu0.c.b16.cont [7/8] 0, 128
        %1324 = vxpose.xlu0.c.b16.end [8/8] 0, 128
        %v1325 = vpop.trf.xlu0
        %v1326 = vpop.trf.xlu0
        %v1327 = vpop.trf.xlu0
        %v1328 = vpop.trf.xlu0
        %v1329 = vpop.trf.xlu0
        %v1330 = vpop.trf.xlu0
        %v1331 = vpop.trf.xlu0
        %v1332 = vpop.trf.xlu0
        %vm1333 = vcmask 130048
        %v1335 = vsel %vm1333, %v1309, 0
        %v1338 = vsel %vm1333, %v1310, 0
        %v1341 = vsel %vm1333, %v1311, 0
        %v1344 = vsel %vm1333, %v1312, 0
        %v1347 = vsel %vm1333, %v1313, 0
        %v1350 = vsel %vm1333, %v1314, 0
        %v1353 = vsel %vm1333, %v1315, 0
        %v1356 = vsel %vm1333, %v1316, 0
        %v1359 = vsel %vm1333, %v1325, 0
        %v1362 = vsel %vm1333, %v1326, 0
        %v1365 = vsel %vm1333, %v1327, 0
        %v1368 = vsel %vm1333, %v1328, 0
        %v1371 = vsel %vm1333, %v1329, 0
        %v1374 = vsel %vm1333, %v1330, 0
        %v1377 = vsel %vm1333, %v1331, 0
        %v1380 = vsel %vm1333, %v1332, 0
        %1382 = vmatprep.subr.bf16.mxu0 0
        %1383 = vmatpush1.bf16.msra.mxu0 0
        %1384 = vmatprep.subr.bf16.mxu0 0
        %1385 = vmatpush1.bf16.msra.mxu0 0
        %1386 = vmatprep.subr.bf16.mxu0 0
        %1387 = vmatpush1.bf16.msra.mxu0 0
        %1388 = vmatprep.subr.bf16.mxu0 0
        %1389 = vmatpush1.bf16.msra.mxu0 0
        %1390 = vmatprep.subr.bf16.mxu0 0
        %1391 = vmatpush1.bf16.msra.mxu0 0
        %1392 = vmatprep.subr.bf16.mxu0 0
        %1393 = vmatpush1.bf16.msra.mxu0 0
        %1394 = vmatprep.subr.bf16.mxu0 0
        %1395 = vmatpush1.bf16.msra.mxu0 0
        %1396 = vmatprep.subr.bf16.mxu0 %v1286
        %1397 = vmatpush1.bf16.msra.mxu0 %v1285
        %1398 = vmatprep.subr.bf16.mxu0 0
        %1399 = vmatpush2.bf16.msra.mxu0 0
        %1400 = vmatprep.subr.bf16.mxu0 0
        %1401 = vmatpush2.bf16.msra.mxu0 0
        %1402 = vmatprep.subr.bf16.mxu0 0
        %1403 = vmatpush2.bf16.msra.mxu0 0
        %1404 = vmatprep.subr.bf16.mxu0 0
        %1405 = vmatpush2.bf16.msra.mxu0 0
        %1406 = vmatprep.subr.bf16.mxu0 0
        %1407 = vmatpush2.bf16.msra.mxu0 0
        %1408 = vmatprep.subr.bf16.mxu0 0
        %1409 = vmatpush2.bf16.msra.mxu0 0
        %1410 = vmatprep.subr.bf16.mxu0 0
        %1411 = vmatpush2.bf16.msra.mxu0 0
        %1412 = vmatprep.subr.bf16.mxu0 0
        %1413 = vmatpush2.bf16.msra.mxu0 0
        %1414 = vmatprep.mubr.bf16.mxu0 0
        %1415 = vmatmul.mubr.bf16.gmra.mxu0 %v1335
        %v1416 = vpop.f32.mrf.mxu0
        %v1417 = vadd.f32 0.0, %v1416
        %v1418 = vpop.f32.mrf.mxu0
        %v1419 = vadd.f32 0.0, %v1418
        %v1420 = vpop.f32.mrf.mxu0
        %v1421 = vadd.f32 0.0, %v1420
        %v1422 = vpop.f32.mrf.mxu0
        %v1423 = vadd.f32 0.0, %v1422
        %1424 = vmatprep.mubr.bf16.mxu0 0
        %1425 = vmatmul.mubr.bf16.gmra.mxu0 %v1338
        %v1426 = vpop.f32.mrf.mxu0
        %v1427 = vadd.f32 0.0, %v1426
        %v1428 = vpop.f32.mrf.mxu0
        %v1429 = vadd.f32 0.0, %v1428
        %v1430 = vpop.f32.mrf.mxu0
        %v1431 = vadd.f32 0.0, %v1430
        %v1432 = vpop.f32.mrf.mxu0
        %v1433 = vadd.f32 0.0, %v1432
        %1434 = vmatprep.mubr.bf16.mxu0 0
        %1435 = vmatmul.mubr.bf16.gmra.mxu0 %v1341
        %v1436 = vpop.f32.mrf.mxu0
        %v1437 = vadd.f32 0.0, %v1436
        %v1438 = vpop.f32.mrf.mxu0
        %v1439 = vadd.f32 0.0, %v1438
        %v1440 = vpop.f32.mrf.mxu0
        %v1441 = vadd.f32 0.0, %v1440
        %v1442 = vpop.f32.mrf.mxu0
        %v1443 = vadd.f32 0.0, %v1442
        %1444 = vmatprep.mubr.bf16.mxu0 0
        %1445 = vmatmul.mubr.bf16.gmra.mxu0 %v1344
        %v1446 = vpop.f32.mrf.mxu0
        %v1447 = vadd.f32 0.0, %v1446
        %v1448 = vpop.f32.mrf.mxu0
        %v1449 = vadd.f32 0.0, %v1448
        %v1450 = vpop.f32.mrf.mxu0
        %v1451 = vadd.f32 0.0, %v1450
        %v1452 = vpop.f32.mrf.mxu0
        %v1453 = vadd.f32 0.0, %v1452
        %1454 = vmatprep.mubr.bf16.mxu0 0
        %1455 = vmatmul.mubr.bf16.gmra.mxu0 %v1347
        %v1456 = vpop.f32.mrf.mxu0
        %v1457 = vadd.f32 0.0, %v1456
        %v1458 = vpop.f32.mrf.mxu0
        %v1459 = vadd.f32 0.0, %v1458
        %v1460 = vpop.f32.mrf.mxu0
        %v1461 = vadd.f32 0.0, %v1460
        %v1462 = vpop.f32.mrf.mxu0
        %v1463 = vadd.f32 0.0, %v1462
        %1464 = vmatprep.mubr.bf16.mxu0 0
        %1465 = vmatmul.mubr.bf16.gmra.mxu0 %v1350
        %v1466 = vpop.f32.mrf.mxu0
        %v1467 = vadd.f32 0.0, %v1466
        %v1468 = vpop.f32.mrf.mxu0
        %v1469 = vadd.f32 0.0, %v1468
        %v1470 = vpop.f32.mrf.mxu0
        %v1471 = vadd.f32 0.0, %v1470
        %v1472 = vpop.f32.mrf.mxu0
        %v1473 = vadd.f32 0.0, %v1472
        %1474 = vmatprep.mubr.bf16.mxu0 0
        %1475 = vmatmul.mubr.bf16.gmra.mxu0 %v1353
        %v1476 = vpop.f32.mrf.mxu0
        %v1477 = vadd.f32 0.0, %v1476
        %v1478 = vpop.f32.mrf.mxu0
        %v1479 = vadd.f32 0.0, %v1478
        %v1480 = vpop.f32.mrf.mxu0
        %v1481 = vadd.f32 0.0, %v1480
        %v1482 = vpop.f32.mrf.mxu0
        %v1483 = vadd.f32 0.0, %v1482
        %1484 = vmatprep.mubr.bf16.mxu0 0
        %1485 = vmatmul.mubr.bf16.gmra.mxu0 %v1356
        %v1486 = vpop.f32.mrf.mxu0
        %v1487 = vadd.f32 0.0, %v1486
        %v1488 = vpop.f32.mrf.mxu0
        %v1489 = vadd.f32 0.0, %v1488
        %v1490 = vpop.f32.mrf.mxu0
        %v1491 = vadd.f32 0.0, %v1490
        %v1492 = vpop.f32.mrf.mxu0
        %v1493 = vadd.f32 0.0, %v1492
        %1494 = vmatprep.mubr.bf16.mxu0 0
        %1495 = vmatmul.mubr.bf16.gmra.mxu0 %v1359
        %v1496 = vpop.f32.mrf.mxu0
        %v1497 = vadd.f32 0.0, %v1496
        %v1498 = vpop.f32.mrf.mxu0
        %v1499 = vadd.f32 0.0, %v1498
        %v1500 = vpop.f32.mrf.mxu0
        %v1501 = vadd.f32 0.0, %v1500
        %v1502 = vpop.f32.mrf.mxu0
        %v1503 = vadd.f32 0.0, %v1502
        %1504 = vmatprep.mubr.bf16.mxu0 0
        %1505 = vmatmul.mubr.bf16.gmra.mxu0 %v1362
        %v1506 = vpop.f32.mrf.mxu0
        %v1507 = vadd.f32 0.0, %v1506
        %v1508 = vpop.f32.mrf.mxu0
        %v1509 = vadd.f32 0.0, %v1508
        %v1510 = vpop.f32.mrf.mxu0
        %v1511 = vadd.f32 0.0, %v1510
        %v1512 = vpop.f32.mrf.mxu0
        %v1513 = vadd.f32 0.0, %v1512
        %1514 = vmatprep.mubr.bf16.mxu0 0
        %1515 = vmatmul.mubr.bf16.gmra.mxu0 %v1365
        %v1516 = vpop.f32.mrf.mxu0
        %v1517 = vadd.f32 0.0, %v1516
        %v1518 = vpop.f32.mrf.mxu0
        %v1519 = vadd.f32 0.0, %v1518
        %v1520 = vpop.f32.mrf.mxu0
        %v1521 = vadd.f32 0.0, %v1520
        %v1522 = vpop.f32.mrf.mxu0
        %v1523 = vadd.f32 0.0, %v1522
        %1524 = vmatprep.mubr.bf16.mxu0 0
        %1525 = vmatmul.mubr.bf16.gmra.mxu0 %v1368
        %v1526 = vpop.f32.mrf.mxu0
        %v1527 = vadd.f32 0.0, %v1526
        %v1528 = vpop.f32.mrf.mxu0
        %v1529 = vadd.f32 0.0, %v1528
        %v1530 = vpop.f32.mrf.mxu0
        %v1531 = vadd.f32 0.0, %v1530
        %v1532 = vpop.f32.mrf.mxu0
        %v1533 = vadd.f32 0.0, %v1532
        %1534 = vmatprep.mubr.bf16.mxu0 0
        %1535 = vmatmul.mubr.bf16.gmra.mxu0 %v1371
        %v1536 = vpop.f32.mrf.mxu0
        %v1537 = vadd.f32 0.0, %v1536
        %v1538 = vpop.f32.mrf.mxu0
        %v1539 = vadd.f32 0.0, %v1538
        %v1540 = vpop.f32.mrf.mxu0
        %v1541 = vadd.f32 0.0, %v1540
        %v1542 = vpop.f32.mrf.mxu0
        %v1543 = vadd.f32 0.0, %v1542
        %1544 = vmatprep.mubr.bf16.mxu0 0
        %1545 = vmatmul.mubr.bf16.gmra.mxu0 %v1374
        %v1546 = vpop.f32.mrf.mxu0
        %v1547 = vadd.f32 0.0, %v1546
        %v1548 = vpop.f32.mrf.mxu0
        %v1549 = vadd.f32 0.0, %v1548
        %v1550 = vpop.f32.mrf.mxu0
        %v1551 = vadd.f32 0.0, %v1550
        %v1552 = vpop.f32.mrf.mxu0
        %v1553 = vadd.f32 0.0, %v1552
        %1554 = vmatprep.mubr.bf16.mxu0 0
        %1555 = vmatmul.mubr.bf16.gmra.mxu0 %v1377
        %v1556 = vpop.f32.mrf.mxu0
        %v1557 = vadd.f32 0.0, %v1556
        %v1558 = vpop.f32.mrf.mxu0
        %v1559 = vadd.f32 0.0, %v1558
        %v1560 = vpop.f32.mrf.mxu0
        %v1561 = vadd.f32 0.0, %v1560
        %v1562 = vpop.f32.mrf.mxu0
        %v1563 = vadd.f32 0.0, %v1562
        %1564 = vmatprep.mubr.bf16.mxu0 0
        %1565 = vmatmul.mubr.bf16.gmra.mxu0 %v1380
        %v1566 = vpop.f32.mrf.mxu0
        %v1567 = vadd.f32 0.0, %v1566
        %v1568 = vpop.f32.mrf.mxu0
        %v1569 = vadd.f32 0.0, %v1568
        %v1570 = vpop.f32.mrf.mxu0
        %v1571 = vadd.f32 0.0, %v1570
        %v1572 = vpop.f32.mrf.mxu0
        %v1573 = vadd.f32 0.0, %v1572
        %1574 = vdwg.mxu0
        %1575 = vxpose.xlu0.c.b16.start [1/8] %v1279, 128
        %1576 = vxpose.xlu0.c.b16.cont [2/8] 0, 128
        %1577 = vxpose.xlu0.c.b16.cont [3/8] 0, 128
        %1578 = vxpose.xlu0.c.b16.cont [4/8] 0, 128
        %1579 = vxpose.xlu0.c.b16.cont [5/8] 0, 128
        %1580 = vxpose.xlu0.c.b16.cont [6/8] 0, 128
        %1581 = vxpose.xlu0.c.b16.cont [7/8] 0, 128
        %1582 = vxpose.xlu0.c.b16.end [8/8] 0, 128
        %v1583 = vpop.trf.xlu0
        %v1584 = vpop.trf.xlu0
        %v1585 = vpop.trf.xlu0
        %v1586 = vpop.trf.xlu0
        %v1587 = vpop.trf.xlu0
        %v1588 = vpop.trf.xlu0
        %v1589 = vpop.trf.xlu0
        %v1590 = vpop.trf.xlu0
        %1591 = vxpose.xlu0.c.b16.start [1/8] %v1280, 128
        %1592 = vxpose.xlu0.c.b16.cont [2/8] 0, 128
        %1593 = vxpose.xlu0.c.b16.cont [3/8] 0, 128
        %1594 = vxpose.xlu0.c.b16.cont [4/8] 0, 128
        %1595 = vxpose.xlu0.c.b16.cont [5/8] 0, 128
        %1596 = vxpose.xlu0.c.b16.cont [6/8] 0, 128
        %1597 = vxpose.xlu0.c.b16.cont [7/8] 0, 128
        %1598 = vxpose.xlu0.c.b16.end [8/8] 0, 128
        %v1599 = vpop.trf.xlu0
        %v1600 = vpop.trf.xlu0
        %v1601 = vpop.trf.xlu0
        %v1602 = vpop.trf.xlu0
        %v1603 = vpop.trf.xlu0
        %v1604 = vpop.trf.xlu0
        %v1605 = vpop.trf.xlu0
        %v1606 = vpop.trf.xlu0
        %v1608 = vsel %vm1333, %v1583, 0
        %v1611 = vsel %vm1333, %v1584, 0
        %v1614 = vsel %vm1333, %v1585, 0
        %v1617 = vsel %vm1333, %v1586, 0
        %v1620 = vsel %vm1333, %v1587, 0
        %v1623 = vsel %vm1333, %v1588, 0
        %v1626 = vsel %vm1333, %v1589, 0
        %v1629 = vsel %vm1333, %v1590, 0
        %v1632 = vsel %vm1333, %v1599, 0
        %v1635 = vsel %vm1333, %v1600, 0
        %v1638 = vsel %vm1333, %v1601, 0
        %v1641 = vsel %vm1333, %v1602, 0
        %v1644 = vsel %vm1333, %v1603, 0
        %v1647 = vsel %vm1333, %v1604, 0
        %v1650 = vsel %vm1333, %v1605, 0
        %v1653 = vsel %vm1333, %v1606, 0
        %1655 = vmatprep.subr.bf16.mxu0 0
        %1656 = vmatpush1.bf16.msra.mxu0 0
        %1657 = vmatprep.subr.bf16.mxu0 0
        %1658 = vmatpush1.bf16.msra.mxu0 0
        %1659 = vmatprep.subr.bf16.mxu0 0
        %1660 = vmatpush1.bf16.msra.mxu0 0
        %1661 = vmatprep.subr.bf16.mxu0 0
        %1662 = vmatpush1.bf16.msra.mxu0 0
        %1663 = vmatprep.subr.bf16.mxu0 0
        %1664 = vmatpush1.bf16.msra.mxu0 0
        %1665 = vmatprep.subr.bf16.mxu0 0
        %1666 = vmatpush1.bf16.msra.mxu0 0
        %1667 = vmatprep.subr.bf16.mxu0 0
        %1668 = vmatpush1.bf16.msra.mxu0 0
        %1669 = vmatprep.subr.bf16.mxu0 %v1288
        %1670 = vmatpush1.bf16.msra.mxu0 %v1287
        %1671 = vmatprep.subr.bf16.mxu0 0
        %1672 = vmatpush2.bf16.msra.mxu0 0
        %1673 = vmatprep.subr.bf16.mxu0 0
        %1674 = vmatpush2.bf16.msra.mxu0 0
        %1675 = vmatprep.subr.bf16.mxu0 0
        %1676 = vmatpush2.bf16.msra.mxu0 0
        %1677 = vmatprep.subr.bf16.mxu0 0
        %1678 = vmatpush2.bf16.msra.mxu0 0
        %1679 = vmatprep.subr.bf16.mxu0 0
        %1680 = vmatpush2.bf16.msra.mxu0 0
        %1681 = vmatprep.subr.bf16.mxu0 0
        %1682 = vmatpush2.bf16.msra.mxu0 0
        %1683 = vmatprep.subr.bf16.mxu0 0
        %1684 = vmatpush2.bf16.msra.mxu0 0
        %1685 = vmatprep.subr.bf16.mxu0 0
        %1686 = vmatpush2.bf16.msra.mxu0 0
        %1687 = vmatprep.mubr.bf16.mxu0 0
        %1688 = vmatmul.mubr.bf16.gmra.mxu0 %v1608
        %v1689 = vpop.f32.mrf.mxu0
        %v1690 = vadd.f32 0.0, %v1689
        %v1691 = vpop.f32.mrf.mxu0
        %v1692 = vadd.f32 0.0, %v1691
        %v1693 = vpop.f32.mrf.mxu0
        %v1694 = vadd.f32 0.0, %v1693
        %v1695 = vpop.f32.mrf.mxu0
        %v1696 = vadd.f32 0.0, %v1695
        %1697 = vmatprep.mubr.bf16.mxu0 0
        %1698 = vmatmul.mubr.bf16.gmra.mxu0 %v1611
        %v1699 = vpop.f32.mrf.mxu0
        %v1700 = vadd.f32 0.0, %v1699
        %v1701 = vpop.f32.mrf.mxu0
        %v1702 = vadd.f32 0.0, %v1701
        %v1703 = vpop.f32.mrf.mxu0
        %v1704 = vadd.f32 0.0, %v1703
        %v1705 = vpop.f32.mrf.mxu0
        %v1706 = vadd.f32 0.0, %v1705
        %1707 = vmatprep.mubr.bf16.mxu0 0
        %1708 = vmatmul.mubr.bf16.gmra.mxu0 %v1614
        %v1709 = vpop.f32.mrf.mxu0
        %v1710 = vadd.f32 0.0, %v1709
        %v1711 = vpop.f32.mrf.mxu0
        %v1712 = vadd.f32 0.0, %v1711
        %v1713 = vpop.f32.mrf.mxu0
        %v1714 = vadd.f32 0.0, %v1713
        %v1715 = vpop.f32.mrf.mxu0
        %v1716 = vadd.f32 0.0, %v1715
        %1717 = vmatprep.mubr.bf16.mxu0 0
        %1718 = vmatmul.mubr.bf16.gmra.mxu0 %v1617
        %v1719 = vpop.f32.mrf.mxu0
        %v1720 = vadd.f32 0.0, %v1719
        %v1721 = vpop.f32.mrf.mxu0
        %v1722 = vadd.f32 0.0, %v1721
        %v1723 = vpop.f32.mrf.mxu0
        %v1724 = vadd.f32 0.0, %v1723
        %v1725 = vpop.f32.mrf.mxu0
        %v1726 = vadd.f32 0.0, %v1725
        %1727 = vmatprep.mubr.bf16.mxu0 0
        %1728 = vmatmul.mubr.bf16.gmra.mxu0 %v1620
        %v1729 = vpop.f32.mrf.mxu0
        %v1730 = vadd.f32 0.0, %v1729
        %v1731 = vpop.f32.mrf.mxu0
        %v1732 = vadd.f32 0.0, %v1731
        %v1733 = vpop.f32.mrf.mxu0
        %v1734 = vadd.f32 0.0, %v1733
        %v1735 = vpop.f32.mrf.mxu0
        %v1736 = vadd.f32 0.0, %v1735
        %1737 = vmatprep.mubr.bf16.mxu0 0
        %1738 = vmatmul.mubr.bf16.gmra.mxu0 %v1623
        %v1739 = vpop.f32.mrf.mxu0
        %v1740 = vadd.f32 0.0, %v1739
        %v1741 = vpop.f32.mrf.mxu0
        %v1742 = vadd.f32 0.0, %v1741
        %v1743 = vpop.f32.mrf.mxu0
        %v1744 = vadd.f32 0.0, %v1743
        %v1745 = vpop.f32.mrf.mxu0
        %v1746 = vadd.f32 0.0, %v1745
        %1747 = vmatprep.mubr.bf16.mxu0 0
        %1748 = vmatmul.mubr.bf16.gmra.mxu0 %v1626
        %v1749 = vpop.f32.mrf.mxu0
        %v1750 = vadd.f32 0.0, %v1749
        %v1751 = vpop.f32.mrf.mxu0
        %v1752 = vadd.f32 0.0, %v1751
        %v1753 = vpop.f32.mrf.mxu0
        %v1754 = vadd.f32 0.0, %v1753
        %v1755 = vpop.f32.mrf.mxu0
        %v1756 = vadd.f32 0.0, %v1755
        %1757 = vmatprep.mubr.bf16.mxu0 0
        %1758 = vmatmul.mubr.bf16.gmra.mxu0 %v1629
        %v1759 = vpop.f32.mrf.mxu0
        %v1760 = vadd.f32 0.0, %v1759
        %v1761 = vpop.f32.mrf.mxu0
        %v1762 = vadd.f32 0.0, %v1761
        %v1763 = vpop.f32.mrf.mxu0
        %v1764 = vadd.f32 0.0, %v1763
        %v1765 = vpop.f32.mrf.mxu0
        %v1766 = vadd.f32 0.0, %v1765
        %1767 = vmatprep.mubr.bf16.mxu0 0
        %1768 = vmatmul.mubr.bf16.gmra.mxu0 %v1632
        %v1769 = vpop.f32.mrf.mxu0
        %v1770 = vadd.f32 0.0, %v1769
        %v1771 = vpop.f32.mrf.mxu0
        %v1772 = vadd.f32 0.0, %v1771
        %v1773 = vpop.f32.mrf.mxu0
        %v1774 = vadd.f32 0.0, %v1773
        %v1775 = vpop.f32.mrf.mxu0
        %v1776 = vadd.f32 0.0, %v1775
        %1777 = vmatprep.mubr.bf16.mxu0 0
        %1778 = vmatmul.mubr.bf16.gmra.mxu0 %v1635
        %v1779 = vpop.f32.mrf.mxu0
        %v1780 = vadd.f32 0.0, %v1779
        %v1781 = vpop.f32.mrf.mxu0
        %v1782 = vadd.f32 0.0, %v1781
        %v1783 = vpop.f32.mrf.mxu0
        %v1784 = vadd.f32 0.0, %v1783
        %v1785 = vpop.f32.mrf.mxu0
        %v1786 = vadd.f32 0.0, %v1785
        %1787 = vmatprep.mubr.bf16.mxu0 0
        %1788 = vmatmul.mubr.bf16.gmra.mxu0 %v1638
        %v1789 = vpop.f32.mrf.mxu0
        %v1790 = vadd.f32 0.0, %v1789
        %v1791 = vpop.f32.mrf.mxu0
        %v1792 = vadd.f32 0.0, %v1791
        %v1793 = vpop.f32.mrf.mxu0
        %v1794 = vadd.f32 0.0, %v1793
        %v1795 = vpop.f32.mrf.mxu0
        %v1796 = vadd.f32 0.0, %v1795
        %1797 = vmatprep.mubr.bf16.mxu0 0
        %1798 = vmatmul.mubr.bf16.gmra.mxu0 %v1641
        %v1799 = vpop.f32.mrf.mxu0
        %v1800 = vadd.f32 0.0, %v1799
        %v1801 = vpop.f32.mrf.mxu0
        %v1802 = vadd.f32 0.0, %v1801
        %v1803 = vpop.f32.mrf.mxu0
        %v1804 = vadd.f32 0.0, %v1803
        %v1805 = vpop.f32.mrf.mxu0
        %v1806 = vadd.f32 0.0, %v1805
        %1807 = vmatprep.mubr.bf16.mxu0 0
        %1808 = vmatmul.mubr.bf16.gmra.mxu0 %v1644
        %v1809 = vpop.f32.mrf.mxu0
        %v1810 = vadd.f32 0.0, %v1809
        %v1811 = vpop.f32.mrf.mxu0
        %v1812 = vadd.f32 0.0, %v1811
        %v1813 = vpop.f32.mrf.mxu0
        %v1814 = vadd.f32 0.0, %v1813
        %v1815 = vpop.f32.mrf.mxu0
        %v1816 = vadd.f32 0.0, %v1815
        %1817 = vmatprep.mubr.bf16.mxu0 0
        %1818 = vmatmul.mubr.bf16.gmra.mxu0 %v1647
        %v1819 = vpop.f32.mrf.mxu0
        %v1820 = vadd.f32 0.0, %v1819
        %v1821 = vpop.f32.mrf.mxu0
        %v1822 = vadd.f32 0.0, %v1821
        %v1823 = vpop.f32.mrf.mxu0
        %v1824 = vadd.f32 0.0, %v1823
        %v1825 = vpop.f32.mrf.mxu0
        %v1826 = vadd.f32 0.0, %v1825
        %1827 = vmatprep.mubr.bf16.mxu0 0
        %1828 = vmatmul.mubr.bf16.gmra.mxu0 %v1650
        %v1829 = vpop.f32.mrf.mxu0
        %v1830 = vadd.f32 0.0, %v1829
        %v1831 = vpop.f32.mrf.mxu0
        %v1832 = vadd.f32 0.0, %v1831
        %v1833 = vpop.f32.mrf.mxu0
        %v1834 = vadd.f32 0.0, %v1833
        %v1835 = vpop.f32.mrf.mxu0
        %v1836 = vadd.f32 0.0, %v1835
        %1837 = vmatprep.mubr.bf16.mxu0 0
        %1838 = vmatmul.mubr.bf16.gmra.mxu0 %v1653
        %v1839 = vpop.f32.mrf.mxu0
        %v1840 = vadd.f32 0.0, %v1839
        %v1841 = vpop.f32.mrf.mxu0
        %v1842 = vadd.f32 0.0, %v1841
        %v1843 = vpop.f32.mrf.mxu0
        %v1844 = vadd.f32 0.0, %v1843
        %v1845 = vpop.f32.mrf.mxu0
        %v1846 = vadd.f32 0.0, %v1845
        %1847 = vdwg.mxu0
        %1848 = vxpose.xlu0.c.b16.start [1/8] %v1281, 128
        %1849 = vxpose.xlu0.c.b16.cont [2/8] 0, 128
        %1850 = vxpose.xlu0.c.b16.cont [3/8] 0, 128
        %1851 = vxpose.xlu0.c.b16.cont [4/8] 0, 128
        %1852 = vxpose.xlu0.c.b16.cont [5/8] 0, 128
        %1853 = vxpose.xlu0.c.b16.cont [6/8] 0, 128
        %1854 = vxpose.xlu0.c.b16.cont [7/8] 0, 128
        %1855 = vxpose.xlu0.c.b16.end [8/8] 0, 128
        %v1856 = vpop.trf.xlu0
        %v1857 = vpop.trf.xlu0
        %v1858 = vpop.trf.xlu0
        %v1859 = vpop.trf.xlu0
        %v1860 = vpop.trf.xlu0
        %v1861 = vpop.trf.xlu0
        %v1862 = vpop.trf.xlu0
        %v1863 = vpop.trf.xlu0
        %1864 = vxpose.xlu0.c.b16.start [1/8] %v1282, 128
        %1865 = vxpose.xlu0.c.b16.cont [2/8] 0, 128
        %1866 = vxpose.xlu0.c.b16.cont [3/8] 0, 128
        %1867 = vxpose.xlu0.c.b16.cont [4/8] 0, 128
        %1868 = vxpose.xlu0.c.b16.cont [5/8] 0, 128
        %1869 = vxpose.xlu0.c.b16.cont [6/8] 0, 128
        %1870 = vxpose.xlu0.c.b16.cont [7/8] 0, 128
        %1871 = vxpose.xlu0.c.b16.end [8/8] 0, 128
        %v1872 = vpop.trf.xlu0
        %v1873 = vpop.trf.xlu0
        %v1874 = vpop.trf.xlu0
        %v1875 = vpop.trf.xlu0
        %v1876 = vpop.trf.xlu0
        %v1877 = vpop.trf.xlu0
        %v1878 = vpop.trf.xlu0
        %v1879 = vpop.trf.xlu0
        %v1881 = vsel %vm1333, %v1856, 0
        %v1884 = vsel %vm1333, %v1857, 0
        %v1887 = vsel %vm1333, %v1858, 0
        %v1890 = vsel %vm1333, %v1859, 0
        %v1893 = vsel %vm1333, %v1860, 0
        %v1896 = vsel %vm1333, %v1861, 0
        %v1899 = vsel %vm1333, %v1862, 0
        %v1902 = vsel %vm1333, %v1863, 0
        %v1905 = vsel %vm1333, %v1872, 0
        %v1908 = vsel %vm1333, %v1873, 0
        %v1911 = vsel %vm1333, %v1874, 0
        %v1914 = vsel %vm1333, %v1875, 0
        %v1917 = vsel %vm1333, %v1876, 0
        %v1920 = vsel %vm1333, %v1877, 0
        %v1923 = vsel %vm1333, %v1878, 0
        %v1926 = vsel %vm1333, %v1879, 0
        %1928 = vmatprep.subr.bf16.mxu0 0
        %1929 = vmatpush1.bf16.msra.mxu0 0
        %1930 = vmatprep.subr.bf16.mxu0 0
        %1931 = vmatpush1.bf16.msra.mxu0 0
        %1932 = vmatprep.subr.bf16.mxu0 0
        %1933 = vmatpush1.bf16.msra.mxu0 0
        %1934 = vmatprep.subr.bf16.mxu0 0
        %1935 = vmatpush1.bf16.msra.mxu0 0
        %1936 = vmatprep.subr.bf16.mxu0 0
        %1937 = vmatpush1.bf16.msra.mxu0 0
        %1938 = vmatprep.subr.bf16.mxu0 0
        %1939 = vmatpush1.bf16.msra.mxu0 0
        %1940 = vmatprep.subr.bf16.mxu0 0
        %1941 = vmatpush1.bf16.msra.mxu0 0
        %1942 = vmatprep.subr.bf16.mxu0 %v1290
        %1943 = vmatpush1.bf16.msra.mxu0 %v1289
        %1944 = vmatprep.subr.bf16.mxu0 0
        %1945 = vmatpush2.bf16.msra.mxu0 0
        %1946 = vmatprep.subr.bf16.mxu0 0
        %1947 = vmatpush2.bf16.msra.mxu0 0
        %1948 = vmatprep.subr.bf16.mxu0 0
        %1949 = vmatpush2.bf16.msra.mxu0 0
        %1950 = vmatprep.subr.bf16.mxu0 0
        %1951 = vmatpush2.bf16.msra.mxu0 0
        %1952 = vmatprep.subr.bf16.mxu0 0
        %1953 = vmatpush2.bf16.msra.mxu0 0
        %1954 = vmatprep.subr.bf16.mxu0 0
        %1955 = vmatpush2.bf16.msra.mxu0 0
        %1956 = vmatprep.subr.bf16.mxu0 0
        %1957 = vmatpush2.bf16.msra.mxu0 0
        %1958 = vmatprep.subr.bf16.mxu0 0
        %1959 = vmatpush2.bf16.msra.mxu0 0
        %1960 = vmatprep.mubr.bf16.mxu0 0
        %1961 = vmatmul.mubr.bf16.gmra.mxu0 %v1881
        %v1962 = vpop.f32.mrf.mxu0
        %v1963 = vadd.f32 0.0, %v1962
        %v1964 = vpop.f32.mrf.mxu0
        %v1965 = vadd.f32 0.0, %v1964
        %v1966 = vpop.f32.mrf.mxu0
        %v1967 = vadd.f32 0.0, %v1966
        %v1968 = vpop.f32.mrf.mxu0
        %v1969 = vadd.f32 0.0, %v1968
        %1970 = vmatprep.mubr.bf16.mxu0 0
        %1971 = vmatmul.mubr.bf16.gmra.mxu0 %v1884
        %v1972 = vpop.f32.mrf.mxu0
        %v1973 = vadd.f32 0.0, %v1972
        %v1974 = vpop.f32.mrf.mxu0
        %v1975 = vadd.f32 0.0, %v1974
        %v1976 = vpop.f32.mrf.mxu0
        %v1977 = vadd.f32 0.0, %v1976
        %v1978 = vpop.f32.mrf.mxu0
        %v1979 = vadd.f32 0.0, %v1978
        %1980 = vmatprep.mubr.bf16.mxu0 0
        %1981 = vmatmul.mubr.bf16.gmra.mxu0 %v1887
        %v1982 = vpop.f32.mrf.mxu0
        %v1983 = vadd.f32 0.0, %v1982
        %v1984 = vpop.f32.mrf.mxu0
        %v1985 = vadd.f32 0.0, %v1984
        %v1986 = vpop.f32.mrf.mxu0
        %v1987 = vadd.f32 0.0, %v1986
        %v1988 = vpop.f32.mrf.mxu0
        %v1989 = vadd.f32 0.0, %v1988
        %1990 = vmatprep.mubr.bf16.mxu0 0
        %1991 = vmatmul.mubr.bf16.gmra.mxu0 %v1890
        %v1992 = vpop.f32.mrf.mxu0
        %v1993 = vadd.f32 0.0, %v1992
        %v1994 = vpop.f32.mrf.mxu0
        %v1995 = vadd.f32 0.0, %v1994
        %v1996 = vpop.f32.mrf.mxu0
        %v1997 = vadd.f32 0.0, %v1996
        %v1998 = vpop.f32.mrf.mxu0
        %v1999 = vadd.f32 0.0, %v1998
        %2000 = vmatprep.mubr.bf16.mxu0 0
        %2001 = vmatmul.mubr.bf16.gmra.mxu0 %v1893
        %v2002 = vpop.f32.mrf.mxu0
        %v2003 = vadd.f32 0.0, %v2002
        %v2004 = vpop.f32.mrf.mxu0
        %v2005 = vadd.f32 0.0, %v2004
        %v2006 = vpop.f32.mrf.mxu0
        %v2007 = vadd.f32 0.0, %v2006
        %v2008 = vpop.f32.mrf.mxu0
        %v2009 = vadd.f32 0.0, %v2008
        %2010 = vmatprep.mubr.bf16.mxu0 0
        %2011 = vmatmul.mubr.bf16.gmra.mxu0 %v1896
        %v2012 = vpop.f32.mrf.mxu0
        %v2013 = vadd.f32 0.0, %v2012
        %v2014 = vpop.f32.mrf.mxu0
        %v2015 = vadd.f32 0.0, %v2014
        %v2016 = vpop.f32.mrf.mxu0
        %v2017 = vadd.f32 0.0, %v2016
        %v2018 = vpop.f32.mrf.mxu0
        %v2019 = vadd.f32 0.0, %v2018
        %2020 = vmatprep.mubr.bf16.mxu0 0
        %2021 = vmatmul.mubr.bf16.gmra.mxu0 %v1899
        %v2022 = vpop.f32.mrf.mxu0
        %v2023 = vadd.f32 0.0, %v2022
        %v2024 = vpop.f32.mrf.mxu0
        %v2025 = vadd.f32 0.0, %v2024
        %v2026 = vpop.f32.mrf.mxu0
        %v2027 = vadd.f32 0.0, %v2026
        %v2028 = vpop.f32.mrf.mxu0
        %v2029 = vadd.f32 0.0, %v2028
        %2030 = vmatprep.mubr.bf16.mxu0 0
        %2031 = vmatmul.mubr.bf16.gmra.mxu0 %v1902
        %v2032 = vpop.f32.mrf.mxu0
        %v2033 = vadd.f32 0.0, %v2032
        %v2034 = vpop.f32.mrf.mxu0
        %v2035 = vadd.f32 0.0, %v2034
        %v2036 = vpop.f32.mrf.mxu0
        %v2037 = vadd.f32 0.0, %v2036
        %v2038 = vpop.f32.mrf.mxu0
        %v2039 = vadd.f32 0.0, %v2038
        %2040 = vmatprep.mubr.bf16.mxu0 0
        %2041 = vmatmul.mubr.bf16.gmra.mxu0 %v1905
        %v2042 = vpop.f32.mrf.mxu0
        %v2043 = vadd.f32 0.0, %v2042
        %v2044 = vpop.f32.mrf.mxu0
        %v2045 = vadd.f32 0.0, %v2044
        %v2046 = vpop.f32.mrf.mxu0
        %v2047 = vadd.f32 0.0, %v2046
        %v2048 = vpop.f32.mrf.mxu0
        %v2049 = vadd.f32 0.0, %v2048
        %2050 = vmatprep.mubr.bf16.mxu0 0
        %2051 = vmatmul.mubr.bf16.gmra.mxu0 %v1908
        %v2052 = vpop.f32.mrf.mxu0
        %v2053 = vadd.f32 0.0, %v2052
        %v2054 = vpop.f32.mrf.mxu0
        %v2055 = vadd.f32 0.0, %v2054
        %v2056 = vpop.f32.mrf.mxu0
        %v2057 = vadd.f32 0.0, %v2056
        %v2058 = vpop.f32.mrf.mxu0
        %v2059 = vadd.f32 0.0, %v2058
        %2060 = vmatprep.mubr.bf16.mxu0 0
        %2061 = vmatmul.mubr.bf16.gmra.mxu0 %v1911
        %v2062 = vpop.f32.mrf.mxu0
        %v2063 = vadd.f32 0.0, %v2062
        %v2064 = vpop.f32.mrf.mxu0
        %v2065 = vadd.f32 0.0, %v2064
        %v2066 = vpop.f32.mrf.mxu0
        %v2067 = vadd.f32 0.0, %v2066
        %v2068 = vpop.f32.mrf.mxu0
        %v2069 = vadd.f32 0.0, %v2068
        %2070 = vmatprep.mubr.bf16.mxu0 0
        %2071 = vmatmul.mubr.bf16.gmra.mxu0 %v1914
        %v2072 = vpop.f32.mrf.mxu0
        %v2073 = vadd.f32 0.0, %v2072
        %v2074 = vpop.f32.mrf.mxu0
        %v2075 = vadd.f32 0.0, %v2074
        %v2076 = vpop.f32.mrf.mxu0
        %v2077 = vadd.f32 0.0, %v2076
        %v2078 = vpop.f32.mrf.mxu0
        %v2079 = vadd.f32 0.0, %v2078
        %2080 = vmatprep.mubr.bf16.mxu0 0
        %2081 = vmatmul.mubr.bf16.gmra.mxu0 %v1917
        %v2082 = vpop.f32.mrf.mxu0
        %v2083 = vadd.f32 0.0, %v2082
        %v2084 = vpop.f32.mrf.mxu0
        %v2085 = vadd.f32 0.0, %v2084
        %v2086 = vpop.f32.mrf.mxu0
        %v2087 = vadd.f32 0.0, %v2086
        %v2088 = vpop.f32.mrf.mxu0
        %v2089 = vadd.f32 0.0, %v2088
        %2090 = vmatprep.mubr.bf16.mxu0 0
        %2091 = vmatmul.mubr.bf16.gmra.mxu0 %v1920
        %v2092 = vpop.f32.mrf.mxu0
        %v2093 = vadd.f32 0.0, %v2092
        %v2094 = vpop.f32.mrf.mxu0
        %v2095 = vadd.f32 0.0, %v2094
        %v2096 = vpop.f32.mrf.mxu0
        %v2097 = vadd.f32 0.0, %v2096
        %v2098 = vpop.f32.mrf.mxu0
        %v2099 = vadd.f32 0.0, %v2098
        %2100 = vmatprep.mubr.bf16.mxu0 0
        %2101 = vmatmul.mubr.bf16.gmra.mxu0 %v1923
        %v2102 = vpop.f32.mrf.mxu0
        %v2103 = vadd.f32 0.0, %v2102
        %v2104 = vpop.f32.mrf.mxu0
        %v2105 = vadd.f32 0.0, %v2104
        %v2106 = vpop.f32.mrf.mxu0
        %v2107 = vadd.f32 0.0, %v2106
        %v2108 = vpop.f32.mrf.mxu0
        %v2109 = vadd.f32 0.0, %v2108
        %2110 = vmatprep.mubr.bf16.mxu0 0
        %2111 = vmatmul.mubr.bf16.gmra.mxu0 %v1926
        %v2112 = vpop.f32.mrf.mxu0
        %v2113 = vadd.f32 0.0, %v2112
        %v2114 = vpop.f32.mrf.mxu0
        %v2115 = vadd.f32 0.0, %v2114
        %v2116 = vpop.f32.mrf.mxu0
        %v2117 = vadd.f32 0.0, %v2116
        %v2118 = vpop.f32.mrf.mxu0
        %v2119 = vadd.f32 0.0, %v2118
        %2120 = vdwg.mxu0
        %2121 = vxpose.xlu0.c.b16.start [1/8] %v1283, 128
        %2122 = vxpose.xlu0.c.b16.cont [2/8] 0, 128
        %2123 = vxpose.xlu0.c.b16.cont [3/8] 0, 128
        %2124 = vxpose.xlu0.c.b16.cont [4/8] 0, 128
        %2125 = vxpose.xlu0.c.b16.cont [5/8] 0, 128
        %2126 = vxpose.xlu0.c.b16.cont [6/8] 0, 128
        %2127 = vxpose.xlu0.c.b16.cont [7/8] 0, 128
        %2128 = vxpose.xlu0.c.b16.end [8/8] 0, 128
        %v2129 = vpop.trf.xlu0
        %v2130 = vpop.trf.xlu0
        %v2131 = vpop.trf.xlu0
        %v2132 = vpop.trf.xlu0
        %v2133 = vpop.trf.xlu0
        %v2134 = vpop.trf.xlu0
        %v2135 = vpop.trf.xlu0
        %v2136 = vpop.trf.xlu0
        %2137 = vxpose.xlu0.c.b16.start [1/8] %v1284, 128
        %2138 = vxpose.xlu0.c.b16.cont [2/8] 0, 128
        %2139 = vxpose.xlu0.c.b16.cont [3/8] 0, 128
        %2140 = vxpose.xlu0.c.b16.cont [4/8] 0, 128
        %2141 = vxpose.xlu0.c.b16.cont [5/8] 0, 128
        %2142 = vxpose.xlu0.c.b16.cont [6/8] 0, 128
        %2143 = vxpose.xlu0.c.b16.cont [7/8] 0, 128
        %2144 = vxpose.xlu0.c.b16.end [8/8] 0, 128
        %v2145 = vpop.trf.xlu0
        %v2146 = vpop.trf.xlu0
        %v2147 = vpop.trf.xlu0
        %v2148 = vpop.trf.xlu0
        %v2149 = vpop.trf.xlu0
        %v2150 = vpop.trf.xlu0
        %v2151 = vpop.trf.xlu0
        %v2152 = vpop.trf.xlu0
        %v2154 = vsel %vm1333, %v2129, 0
        %v2157 = vsel %vm1333, %v2130, 0
        %v2160 = vsel %vm1333, %v2131, 0
        %v2163 = vsel %vm1333, %v2132, 0
        %v2166 = vsel %vm1333, %v2133, 0
        %v2169 = vsel %vm1333, %v2134, 0
        %v2172 = vsel %vm1333, %v2135, 0
        %v2175 = vsel %vm1333, %v2136, 0
        %v2178 = vsel %vm1333, %v2145, 0
        %v2181 = vsel %vm1333, %v2146, 0
        %v2184 = vsel %vm1333, %v2147, 0
        %v2187 = vsel %vm1333, %v2148, 0
        %v2190 = vsel %vm1333, %v2149, 0
        %v2193 = vsel %vm1333, %v2150, 0
        %v2196 = vsel %vm1333, %v2151, 0
        %v2199 = vsel %vm1333, %v2152, 0
        %2201 = vmatprep.subr.bf16.mxu0 0
        %2202 = vmatpush1.bf16.msra.mxu0 0
        %2203 = vmatprep.subr.bf16.mxu0 0
        %2204 = vmatpush1.bf16.msra.mxu0 0
        %2205 = vmatprep.subr.bf16.mxu0 0
        %2206 = vmatpush1.bf16.msra.mxu0 0
        %2207 = vmatprep.subr.bf16.mxu0 0
        %2208 = vmatpush1.bf16.msra.mxu0 0
        %2209 = vmatprep.subr.bf16.mxu0 0
        %2210 = vmatpush1.bf16.msra.mxu0 0
        %2211 = vmatprep.subr.bf16.mxu0 0
        %2212 = vmatpush1.bf16.msra.mxu0 0
        %2213 = vmatprep.subr.bf16.mxu0 0
        %2214 = vmatpush1.bf16.msra.mxu0 0
        %2215 = vmatprep.subr.bf16.mxu0 %v1292
        %2216 = vmatpush1.bf16.msra.mxu0 %v1291
        %2217 = vmatprep.subr.bf16.mxu0 0
        %2218 = vmatpush2.bf16.msra.mxu0 0
        %2219 = vmatprep.subr.bf16.mxu0 0
        %2220 = vmatpush2.bf16.msra.mxu0 0
        %2221 = vmatprep.subr.bf16.mxu0 0
        %2222 = vmatpush2.bf16.msra.mxu0 0
        %2223 = vmatprep.subr.bf16.mxu0 0
        %2224 = vmatpush2.bf16.msra.mxu0 0
        %2225 = vmatprep.subr.bf16.mxu0 0
        %2226 = vmatpush2.bf16.msra.mxu0 0
        %2227 = vmatprep.subr.bf16.mxu0 0
        %2228 = vmatpush2.bf16.msra.mxu0 0
        %2229 = vmatprep.subr.bf16.mxu0 0
        %2230 = vmatpush2.bf16.msra.mxu0 0
        %2231 = vmatprep.subr.bf16.mxu0 0
        %2232 = vmatpush2.bf16.msra.mxu0 0
        %2233 = vmatprep.mubr.bf16.mxu0 0
        %2234 = vmatmul.mubr.bf16.gmra.mxu0 %v2154
        %v2235 = vpop.f32.mrf.mxu0
        %v2236 = vadd.f32 0.0, %v2235
        %v2237 = vpop.f32.mrf.mxu0
        %v2238 = vadd.f32 0.0, %v2237
        %v2239 = vpop.f32.mrf.mxu0
        %v2240 = vadd.f32 0.0, %v2239
        %v2241 = vpop.f32.mrf.mxu0
        %v2242 = vadd.f32 0.0, %v2241
        %2243 = vmatprep.mubr.bf16.mxu0 0
        %2244 = vmatmul.mubr.bf16.gmra.mxu0 %v2157
        %v2245 = vpop.f32.mrf.mxu0
        %v2246 = vadd.f32 0.0, %v2245
        %v2247 = vpop.f32.mrf.mxu0
        %v2248 = vadd.f32 0.0, %v2247
        %v2249 = vpop.f32.mrf.mxu0
        %v2250 = vadd.f32 0.0, %v2249
        %v2251 = vpop.f32.mrf.mxu0
        %v2252 = vadd.f32 0.0, %v2251
        %2253 = vmatprep.mubr.bf16.mxu0 0
        %2254 = vmatmul.mubr.bf16.gmra.mxu0 %v2160
        %v2255 = vpop.f32.mrf.mxu0
        %v2256 = vadd.f32 0.0, %v2255
        %v2257 = vpop.f32.mrf.mxu0
        %v2258 = vadd.f32 0.0, %v2257
        %v2259 = vpop.f32.mrf.mxu0
        %v2260 = vadd.f32 0.0, %v2259
        %v2261 = vpop.f32.mrf.mxu0
        %v2262 = vadd.f32 0.0, %v2261
        %2263 = vmatprep.mubr.bf16.mxu0 0
        %2264 = vmatmul.mubr.bf16.gmra.mxu0 %v2163
        %v2265 = vpop.f32.mrf.mxu0
        %v2266 = vadd.f32 0.0, %v2265
        %v2267 = vpop.f32.mrf.mxu0
        %v2268 = vadd.f32 0.0, %v2267
        %v2269 = vpop.f32.mrf.mxu0
        %v2270 = vadd.f32 0.0, %v2269
        %v2271 = vpop.f32.mrf.mxu0
        %v2272 = vadd.f32 0.0, %v2271
        %2273 = vmatprep.mubr.bf16.mxu0 0
        %2274 = vmatmul.mubr.bf16.gmra.mxu0 %v2166
        %v2275 = vpop.f32.mrf.mxu0
        %v2276 = vadd.f32 0.0, %v2275
        %v2277 = vpop.f32.mrf.mxu0
        %v2278 = vadd.f32 0.0, %v2277
        %v2279 = vpop.f32.mrf.mxu0
        %v2280 = vadd.f32 0.0, %v2279
        %v2281 = vpop.f32.mrf.mxu0
        %v2282 = vadd.f32 0.0, %v2281
        %2283 = vmatprep.mubr.bf16.mxu0 0
        %2284 = vmatmul.mubr.bf16.gmra.mxu0 %v2169
        %v2285 = vpop.f32.mrf.mxu0
        %v2286 = vadd.f32 0.0, %v2285
        %v2287 = vpop.f32.mrf.mxu0
        %v2288 = vadd.f32 0.0, %v2287
        %v2289 = vpop.f32.mrf.mxu0
        %v2290 = vadd.f32 0.0, %v2289
        %v2291 = vpop.f32.mrf.mxu0
        %v2292 = vadd.f32 0.0, %v2291
        %2293 = vmatprep.mubr.bf16.mxu0 0
        %2294 = vmatmul.mubr.bf16.gmra.mxu0 %v2172
        %v2295 = vpop.f32.mrf.mxu0
        %v2296 = vadd.f32 0.0, %v2295
        %v2297 = vpop.f32.mrf.mxu0
        %v2298 = vadd.f32 0.0, %v2297
        %v2299 = vpop.f32.mrf.mxu0
        %v2300 = vadd.f32 0.0, %v2299
        %v2301 = vpop.f32.mrf.mxu0
        %v2302 = vadd.f32 0.0, %v2301
        %2303 = vmatprep.mubr.bf16.mxu0 0
        %2304 = vmatmul.mubr.bf16.gmra.mxu0 %v2175
        %v2305 = vpop.f32.mrf.mxu0
        %v2306 = vadd.f32 0.0, %v2305
        %v2307 = vpop.f32.mrf.mxu0
        %v2308 = vadd.f32 0.0, %v2307
        %v2309 = vpop.f32.mrf.mxu0
        %v2310 = vadd.f32 0.0, %v2309
        %v2311 = vpop.f32.mrf.mxu0
        %v2312 = vadd.f32 0.0, %v2311
        %2313 = vmatprep.mubr.bf16.mxu0 0
        %2314 = vmatmul.mubr.bf16.gmra.mxu0 %v2178
        %v2315 = vpop.f32.mrf.mxu0
        %v2316 = vadd.f32 0.0, %v2315
        %v2317 = vpop.f32.mrf.mxu0
        %v2318 = vadd.f32 0.0, %v2317
        %v2319 = vpop.f32.mrf.mxu0
        %v2320 = vadd.f32 0.0, %v2319
        %v2321 = vpop.f32.mrf.mxu0
        %v2322 = vadd.f32 0.0, %v2321
        %2323 = vmatprep.mubr.bf16.mxu0 0
        %2324 = vmatmul.mubr.bf16.gmra.mxu0 %v2181
        %v2325 = vpop.f32.mrf.mxu0
        %v2326 = vadd.f32 0.0, %v2325
        %v2327 = vpop.f32.mrf.mxu0
        %v2328 = vadd.f32 0.0, %v2327
        %v2329 = vpop.f32.mrf.mxu0
        %v2330 = vadd.f32 0.0, %v2329
        %v2331 = vpop.f32.mrf.mxu0
        %v2332 = vadd.f32 0.0, %v2331
        %2333 = vmatprep.mubr.bf16.mxu0 0
        %2334 = vmatmul.mubr.bf16.gmra.mxu0 %v2184
        %v2335 = vpop.f32.mrf.mxu0
        %v2336 = vadd.f32 0.0, %v2335
        %v2337 = vpop.f32.mrf.mxu0
        %v2338 = vadd.f32 0.0, %v2337
        %v2339 = vpop.f32.mrf.mxu0
        %v2340 = vadd.f32 0.0, %v2339
        %v2341 = vpop.f32.mrf.mxu0
        %v2342 = vadd.f32 0.0, %v2341
        %2343 = vmatprep.mubr.bf16.mxu0 0
        %2344 = vmatmul.mubr.bf16.gmra.mxu0 %v2187
        %v2345 = vpop.f32.mrf.mxu0
        %v2346 = vadd.f32 0.0, %v2345
        %v2347 = vpop.f32.mrf.mxu0
        %v2348 = vadd.f32 0.0, %v2347
        %v2349 = vpop.f32.mrf.mxu0
        %v2350 = vadd.f32 0.0, %v2349
        %v2351 = vpop.f32.mrf.mxu0
        %v2352 = vadd.f32 0.0, %v2351
        %2353 = vmatprep.mubr.bf16.mxu0 0
        %2354 = vmatmul.mubr.bf16.gmra.mxu0 %v2190
        %v2355 = vpop.f32.mrf.mxu0
        %v2356 = vadd.f32 0.0, %v2355
        %v2357 = vpop.f32.mrf.mxu0
        %v2358 = vadd.f32 0.0, %v2357
        %v2359 = vpop.f32.mrf.mxu0
        %v2360 = vadd.f32 0.0, %v2359
        %v2361 = vpop.f32.mrf.mxu0
        %v2362 = vadd.f32 0.0, %v2361
        %2363 = vmatprep.mubr.bf16.mxu0 0
        %2364 = vmatmul.mubr.bf16.gmra.mxu0 %v2193
        %v2365 = vpop.f32.mrf.mxu0
        %v2366 = vadd.f32 0.0, %v2365
        %v2367 = vpop.f32.mrf.mxu0
        %v2368 = vadd.f32 0.0, %v2367
        %v2369 = vpop.f32.mrf.mxu0
        %v2370 = vadd.f32 0.0, %v2369
        %v2371 = vpop.f32.mrf.mxu0
        %v2372 = vadd.f32 0.0, %v2371
        %2373 = vmatprep.mubr.bf16.mxu0 0
        %2374 = vmatmul.mubr.bf16.gmra.mxu0 %v2196
        %v2375 = vpop.f32.mrf.mxu0
        %v2376 = vadd.f32 0.0, %v2375
        %v2377 = vpop.f32.mrf.mxu0
        %v2378 = vadd.f32 0.0, %v2377
        %v2379 = vpop.f32.mrf.mxu0
        %v2380 = vadd.f32 0.0, %v2379
        %v2381 = vpop.f32.mrf.mxu0
        %v2382 = vadd.f32 0.0, %v2381
        %2383 = vmatprep.mubr.bf16.mxu0 0
        %2384 = vmatmul.mubr.bf16.gmra.mxu0 %v2199
        %v2385 = vpop.f32.mrf.mxu0
        %v2386 = vadd.f32 0.0, %v2385
        %v2387 = vpop.f32.mrf.mxu0
        %v2388 = vadd.f32 0.0, %v2387
        %v2389 = vpop.f32.mrf.mxu0
        %v2390 = vadd.f32 0.0, %v2389
        %v2391 = vpop.f32.mrf.mxu0
        %v2392 = vadd.f32 0.0, %v2391
        %2393 = vdwg.mxu0
        %v2394 = vmax.f32 %v1417, %v1419
        %2395 = vmax.xlane.f32.xlu0 %v2394
        %v2396 = vpop.xlane.xlu0 %2395
        %v2397 = vmax.f32 %v1421, %v1423
        %2398 = vmax.xlane.f32.xlu0 %v2397
        %v2399 = vpop.xlane.xlu0 %2398
        %v2400 = vmax.f32 %v1427, %v1429
        %2401 = vmax.xlane.f32.xlu0 %v2400
        %v2402 = vpop.xlane.xlu0 %2401
        %v2403 = vmax.f32 %v1431, %v1433
        %2404 = vmax.xlane.f32.xlu0 %v2403
        %v2405 = vpop.xlane.xlu0 %2404
        %v2406 = vmax.f32 %v1437, %v1439
        %2407 = vmax.xlane.f32.xlu0 %v2406
        %v2408 = vpop.xlane.xlu0 %2407
        %v2409 = vmax.f32 %v1441, %v1443
        %2410 = vmax.xlane.f32.xlu0 %v2409
        %v2411 = vpop.xlane.xlu0 %2410
        %v2412 = vmax.f32 %v1447, %v1449
        %2413 = vmax.xlane.f32.xlu0 %v2412
        %v2414 = vpop.xlane.xlu0 %2413
        %v2415 = vmax.f32 %v1451, %v1453
        %2416 = vmax.xlane.f32.xlu0 %v2415
        %v2417 = vpop.xlane.xlu0 %2416
        %v2418 = vmax.f32 %v1457, %v1459
        %2419 = vmax.xlane.f32.xlu0 %v2418
        %v2420 = vpop.xlane.xlu0 %2419
        %v2421 = vmax.f32 %v1461, %v1463
        %2422 = vmax.xlane.f32.xlu0 %v2421
        %v2423 = vpop.xlane.xlu0 %2422
        %v2424 = vmax.f32 %v1467, %v1469
        %2425 = vmax.xlane.f32.xlu0 %v2424
        %v2426 = vpop.xlane.xlu0 %2425
        %v2427 = vmax.f32 %v1471, %v1473
        %2428 = vmax.xlane.f32.xlu0 %v2427
        %v2429 = vpop.xlane.xlu0 %2428
        %v2430 = vmax.f32 %v1477, %v1479
        %2431 = vmax.xlane.f32.xlu0 %v2430
        %v2432 = vpop.xlane.xlu0 %2431
        %v2433 = vmax.f32 %v1481, %v1483
        %2434 = vmax.xlane.f32.xlu0 %v2433
        %v2435 = vpop.xlane.xlu0 %2434
        %v2436 = vmax.f32 %v1487, %v1489
        %2437 = vmax.xlane.f32.xlu0 %v2436
        %v2438 = vpop.xlane.xlu0 %2437
        %v2439 = vmax.f32 %v1491, %v1493
        %2440 = vmax.xlane.f32.xlu0 %v2439
        %v2441 = vpop.xlane.xlu0 %2440
        %v2442 = vmax.f32 %v1497, %v1499
        %2443 = vmax.xlane.f32.xlu0 %v2442
        %v2444 = vpop.xlane.xlu0 %2443
        %v2445 = vmax.f32 %v1501, %v1503
        %2446 = vmax.xlane.f32.xlu0 %v2445
        %v2447 = vpop.xlane.xlu0 %2446
        %v2448 = vmax.f32 %v1507, %v1509
        %2449 = vmax.xlane.f32.xlu0 %v2448
        %v2450 = vpop.xlane.xlu0 %2449
        %v2451 = vmax.f32 %v1511, %v1513
        %2452 = vmax.xlane.f32.xlu0 %v2451
        %v2453 = vpop.xlane.xlu0 %2452
        %v2454 = vmax.f32 %v1517, %v1519
        %2455 = vmax.xlane.f32.xlu0 %v2454
        %v2456 = vpop.xlane.xlu0 %2455
        %v2457 = vmax.f32 %v1521, %v1523
        %2458 = vmax.xlane.f32.xlu0 %v2457
        %v2459 = vpop.xlane.xlu0 %2458
        %v2460 = vmax.f32 %v1527, %v1529
        %2461 = vmax.xlane.f32.xlu0 %v2460
        %v2462 = vpop.xlane.xlu0 %2461
        %v2463 = vmax.f32 %v1531, %v1533
        %2464 = vmax.xlane.f32.xlu0 %v2463
        %v2465 = vpop.xlane.xlu0 %2464
        %v2466 = vmax.f32 %v1537, %v1539
        %2467 = vmax.xlane.f32.xlu0 %v2466
        %v2468 = vpop.xlane.xlu0 %2467
        %v2469 = vmax.f32 %v1541, %v1543
        %2470 = vmax.xlane.f32.xlu0 %v2469
        %v2471 = vpop.xlane.xlu0 %2470
        %v2472 = vmax.f32 %v1547, %v1549
        %2473 = vmax.xlane.f32.xlu0 %v2472
        %v2474 = vpop.xlane.xlu0 %2473
        %v2475 = vmax.f32 %v1551, %v1553
        %2476 = vmax.xlane.f32.xlu0 %v2475
        %v2477 = vpop.xlane.xlu0 %2476
        %v2478 = vmax.f32 %v1557, %v1559
        %2479 = vmax.xlane.f32.xlu0 %v2478
        %v2480 = vpop.xlane.xlu0 %2479
        %v2481 = vmax.f32 %v1561, %v1563
        %2482 = vmax.xlane.f32.xlu0 %v2481
        %v2483 = vpop.xlane.xlu0 %2482
        %v2484 = vmax.f32 %v1567, %v1569
        %2485 = vmax.xlane.f32.xlu0 %v2484
        %v2486 = vpop.xlane.xlu0 %2485
        %v2487 = vmax.f32 %v1571, %v1573
        %2488 = vmax.xlane.f32.xlu0 %v2487
        %v2489 = vpop.xlane.xlu0 %2488
        %v2490 = vmax.f32 %v1690, %v1692
        %2491 = vmax.xlane.f32.xlu0 %v2490
        %v2492 = vpop.xlane.xlu0 %2491
        %v2493 = vmax.f32 %v1694, %v1696
        %2494 = vmax.xlane.f32.xlu0 %v2493
        %v2495 = vpop.xlane.xlu0 %2494
        %v2496 = vmax.f32 %v1700, %v1702
        %2497 = vmax.xlane.f32.xlu0 %v2496
        %v2498 = vpop.xlane.xlu0 %2497
        %v2499 = vmax.f32 %v1704, %v1706
        %2500 = vmax.xlane.f32.xlu0 %v2499
        %v2501 = vpop.xlane.xlu0 %2500
        %v2502 = vmax.f32 %v1710, %v1712
        %2503 = vmax.xlane.f32.xlu0 %v2502
        %v2504 = vpop.xlane.xlu0 %2503
        %v2505 = vmax.f32 %v1714, %v1716
        %2506 = vmax.xlane.f32.xlu0 %v2505
        %v2507 = vpop.xlane.xlu0 %2506
        %v2508 = vmax.f32 %v1720, %v1722
        %2509 = vmax.xlane.f32.xlu0 %v2508
        %v2510 = vpop.xlane.xlu0 %2509
        %v2511 = vmax.f32 %v1724, %v1726
        %2512 = vmax.xlane.f32.xlu0 %v2511
        %v2513 = vpop.xlane.xlu0 %2512
        %v2514 = vmax.f32 %v1730, %v1732
        %2515 = vmax.xlane.f32.xlu0 %v2514
        %v2516 = vpop.xlane.xlu0 %2515
        %v2517 = vmax.f32 %v1734, %v1736
        %2518 = vmax.xlane.f32.xlu0 %v2517
        %v2519 = vpop.xlane.xlu0 %2518
        %v2520 = vmax.f32 %v1740, %v1742
        %2521 = vmax.xlane.f32.xlu0 %v2520
        %v2522 = vpop.xlane.xlu0 %2521
        %v2523 = vmax.f32 %v1744, %v1746
        %2524 = vmax.xlane.f32.xlu0 %v2523
        %v2525 = vpop.xlane.xlu0 %2524
        %v2526 = vmax.f32 %v1750, %v1752
        %2527 = vmax.xlane.f32.xlu0 %v2526
        %v2528 = vpop.xlane.xlu0 %2527
        %v2529 = vmax.f32 %v1754, %v1756
        %2530 = vmax.xlane.f32.xlu0 %v2529
        %v2531 = vpop.xlane.xlu0 %2530
        %v2532 = vmax.f32 %v1760, %v1762
        %2533 = vmax.xlane.f32.xlu0 %v2532
        %v2534 = vpop.xlane.xlu0 %2533
        %v2535 = vmax.f32 %v1764, %v1766
        %2536 = vmax.xlane.f32.xlu0 %v2535
        %v2537 = vpop.xlane.xlu0 %2536
        %v2538 = vmax.f32 %v1770, %v1772
        %2539 = vmax.xlane.f32.xlu0 %v2538
        %v2540 = vpop.xlane.xlu0 %2539
        %v2541 = vmax.f32 %v1774, %v1776
        %2542 = vmax.xlane.f32.xlu0 %v2541
        %v2543 = vpop.xlane.xlu0 %2542
        %v2544 = vmax.f32 %v1780, %v1782
        %2545 = vmax.xlane.f32.xlu0 %v2544
        %v2546 = vpop.xlane.xlu0 %2545
        %v2547 = vmax.f32 %v1784, %v1786
        %2548 = vmax.xlane.f32.xlu0 %v2547
        %v2549 = vpop.xlane.xlu0 %2548
        %v2550 = vmax.f32 %v1790, %v1792
        %2551 = vmax.xlane.f32.xlu0 %v2550
        %v2552 = vpop.xlane.xlu0 %2551
        %v2553 = vmax.f32 %v1794, %v1796
        %2554 = vmax.xlane.f32.xlu0 %v2553
        %v2555 = vpop.xlane.xlu0 %2554
        %v2556 = vmax.f32 %v1800, %v1802
        %2557 = vmax.xlane.f32.xlu0 %v2556
        %v2558 = vpop.xlane.xlu0 %2557
        %v2559 = vmax.f32 %v1804, %v1806
        %2560 = vmax.xlane.f32.xlu0 %v2559
        %v2561 = vpop.xlane.xlu0 %2560
        %v2562 = vmax.f32 %v1810, %v1812
        %2563 = vmax.xlane.f32.xlu0 %v2562
        %v2564 = vpop.xlane.xlu0 %2563
        %v2565 = vmax.f32 %v1814, %v1816
        %2566 = vmax.xlane.f32.xlu0 %v2565
        %v2567 = vpop.xlane.xlu0 %2566
        %v2568 = vmax.f32 %v1820, %v1822
        %2569 = vmax.xlane.f32.xlu0 %v2568
        %v2570 = vpop.xlane.xlu0 %2569
        %v2571 = vmax.f32 %v1824, %v1826
        %2572 = vmax.xlane.f32.xlu0 %v2571
        %v2573 = vpop.xlane.xlu0 %2572
        %v2574 = vmax.f32 %v1830, %v1832
        %2575 = vmax.xlane.f32.xlu0 %v2574
        %v2576 = vpop.xlane.xlu0 %2575
        %v2577 = vmax.f32 %v1834, %v1836
        %2578 = vmax.xlane.f32.xlu0 %v2577
        %v2579 = vpop.xlane.xlu0 %2578
        %v2580 = vmax.f32 %v1840, %v1842
        %2581 = vmax.xlane.f32.xlu0 %v2580
        %v2582 = vpop.xlane.xlu0 %2581
        %v2583 = vmax.f32 %v1844, %v1846
        %2584 = vmax.xlane.f32.xlu0 %v2583
        %v2585 = vpop.xlane.xlu0 %2584
        %v2586 = vmax.f32 %v1963, %v1965
        %2587 = vmax.xlane.f32.xlu0 %v2586
        %v2588 = vpop.xlane.xlu0 %2587
        %v2589 = vmax.f32 %v1967, %v1969
        %2590 = vmax.xlane.f32.xlu0 %v2589
        %v2591 = vpop.xlane.xlu0 %2590
        %v2592 = vmax.f32 %v1973, %v1975
        %2593 = vmax.xlane.f32.xlu0 %v2592
        %v2594 = vpop.xlane.xlu0 %2593
        %v2595 = vmax.f32 %v1977, %v1979
        %2596 = vmax.xlane.f32.xlu0 %v2595
        %v2597 = vpop.xlane.xlu0 %2596
        %v2598 = vmax.f32 %v1983, %v1985
        %2599 = vmax.xlane.f32.xlu0 %v2598
        %v2600 = vpop.xlane.xlu0 %2599
        %v2601 = vmax.f32 %v1987, %v1989
        %2602 = vmax.xlane.f32.xlu0 %v2601
        %v2603 = vpop.xlane.xlu0 %2602
        %v2604 = vmax.f32 %v1993, %v1995
        %2605 = vmax.xlane.f32.xlu0 %v2604
        %v2606 = vpop.xlane.xlu0 %2605
        %v2607 = vmax.f32 %v1997, %v1999
        %2608 = vmax.xlane.f32.xlu0 %v2607
        %v2609 = vpop.xlane.xlu0 %2608
        %v2610 = vmax.f32 %v2003, %v2005
        %2611 = vmax.xlane.f32.xlu0 %v2610
        %v2612 = vpop.xlane.xlu0 %2611
        %v2613 = vmax.f32 %v2007, %v2009
        %2614 = vmax.xlane.f32.xlu0 %v2613
        %v2615 = vpop.xlane.xlu0 %2614
        %v2616 = vmax.f32 %v2013, %v2015
        %2617 = vmax.xlane.f32.xlu0 %v2616
        %v2618 = vpop.xlane.xlu0 %2617
        %v2619 = vmax.f32 %v2017, %v2019
        %2620 = vmax.xlane.f32.xlu0 %v2619
        %v2621 = vpop.xlane.xlu0 %2620
        %v2622 = vmax.f32 %v2023, %v2025
        %2623 = vmax.xlane.f32.xlu0 %v2622
        %v2624 = vpop.xlane.xlu0 %2623
        %v2625 = vmax.f32 %v2027, %v2029
        %2626 = vmax.xlane.f32.xlu0 %v2625
        %v2627 = vpop.xlane.xlu0 %2626
        %v2628 = vmax.f32 %v2033, %v2035
        %2629 = vmax.xlane.f32.xlu0 %v2628
        %v2630 = vpop.xlane.xlu0 %2629
        %v2631 = vmax.f32 %v2037, %v2039
        %2632 = vmax.xlane.f32.xlu0 %v2631
        %v2633 = vpop.xlane.xlu0 %2632
        %v2634 = vmax.f32 %v2043, %v2045
        %2635 = vmax.xlane.f32.xlu0 %v2634
        %v2636 = vpop.xlane.xlu0 %2635
        %v2637 = vmax.f32 %v2047, %v2049
        %2638 = vmax.xlane.f32.xlu0 %v2637
        %v2639 = vpop.xlane.xlu0 %2638
        %v2640 = vmax.f32 %v2053, %v2055
        %2641 = vmax.xlane.f32.xlu0 %v2640
        %v2642 = vpop.xlane.xlu0 %2641
        %v2643 = vmax.f32 %v2057, %v2059
        %2644 = vmax.xlane.f32.xlu0 %v2643
        %v2645 = vpop.xlane.xlu0 %2644
        %v2646 = vmax.f32 %v2063, %v2065
        %2647 = vmax.xlane.f32.xlu0 %v2646
        %v2648 = vpop.xlane.xlu0 %2647
        %v2649 = vmax.f32 %v2067, %v2069
        %2650 = vmax.xlane.f32.xlu0 %v2649
        %v2651 = vpop.xlane.xlu0 %2650
        %v2652 = vmax.f32 %v2073, %v2075
        %2653 = vmax.xlane.f32.xlu0 %v2652
        %v2654 = vpop.xlane.xlu0 %2653
        %v2655 = vmax.f32 %v2077, %v2079
        %2656 = vmax.xlane.f32.xlu0 %v2655
        %v2657 = vpop.xlane.xlu0 %2656
        %v2658 = vmax.f32 %v2083, %v2085
        %2659 = vmax.xlane.f32.xlu0 %v2658
        %v2660 = vpop.xlane.xlu0 %2659
        %v2661 = vmax.f32 %v2087, %v2089
        %2662 = vmax.xlane.f32.xlu0 %v2661
        %v2663 = vpop.xlane.xlu0 %2662
        %v2664 = vmax.f32 %v2093, %v2095
        %2665 = vmax.xlane.f32.xlu0 %v2664
        %v2666 = vpop.xlane.xlu0 %2665
        %v2667 = vmax.f32 %v2097, %v2099
        %2668 = vmax.xlane.f32.xlu0 %v2667
        %v2669 = vpop.xlane.xlu0 %2668
        %v2670 = vmax.f32 %v2103, %v2105
        %2671 = vmax.xlane.f32.xlu0 %v2670
        %v2672 = vpop.xlane.xlu0 %2671
        %v2673 = vmax.f32 %v2107, %v2109
        %2674 = vmax.xlane.f32.xlu0 %v2673
        %v2675 = vpop.xlane.xlu0 %2674
        %v2676 = vmax.f32 %v2113, %v2115
        %2677 = vmax.xlane.f32.xlu0 %v2676
        %v2678 = vpop.xlane.xlu0 %2677
        %v2679 = vmax.f32 %v2117, %v2119
        %2680 = vmax.xlane.f32.xlu0 %v2679
        %v2681 = vpop.xlane.xlu0 %2680
        %v2682 = vmax.f32 %v2236, %v2238
        %2683 = vmax.xlane.f32.xlu0 %v2682
        %v2684 = vpop.xlane.xlu0 %2683
        %v2685 = vmax.f32 %v2240, %v2242
        %2686 = vmax.xlane.f32.xlu0 %v2685
        %v2687 = vpop.xlane.xlu0 %2686
        %v2688 = vmax.f32 %v2246, %v2248
        %2689 = vmax.xlane.f32.xlu0 %v2688
        %v2690 = vpop.xlane.xlu0 %2689
        %v2691 = vmax.f32 %v2250, %v2252
        %2692 = vmax.xlane.f32.xlu0 %v2691
        %v2693 = vpop.xlane.xlu0 %2692
        %v2694 = vmax.f32 %v2256, %v2258
        %2695 = vmax.xlane.f32.xlu0 %v2694
        %v2696 = vpop.xlane.xlu0 %2695
        %v2697 = vmax.f32 %v2260, %v2262
        %2698 = vmax.xlane.f32.xlu0 %v2697
        %v2699 = vpop.xlane.xlu0 %2698
        %v2700 = vmax.f32 %v2266, %v2268
        %2701 = vmax.xlane.f32.xlu0 %v2700
        %v2702 = vpop.xlane.xlu0 %2701
        %v2703 = vmax.f32 %v2270, %v2272
        %2704 = vmax.xlane.f32.xlu0 %v2703
        %v2705 = vpop.xlane.xlu0 %2704
        %v2706 = vmax.f32 %v2276, %v2278
        %2707 = vmax.xlane.f32.xlu0 %v2706
        %v2708 = vpop.xlane.xlu0 %2707
        %v2709 = vmax.f32 %v2280, %v2282
        %2710 = vmax.xlane.f32.xlu0 %v2709
        %v2711 = vpop.xlane.xlu0 %2710
        %v2712 = vmax.f32 %v2286, %v2288
        %2713 = vmax.xlane.f32.xlu0 %v2712
        %v2714 = vpop.xlane.xlu0 %2713
        %v2715 = vmax.f32 %v2290, %v2292
        %2716 = vmax.xlane.f32.xlu0 %v2715
        %v2717 = vpop.xlane.xlu0 %2716
        %v2718 = vmax.f32 %v2296, %v2298
        %2719 = vmax.xlane.f32.xlu0 %v2718
        %v2720 = vpop.xlane.xlu0 %2719
        %v2721 = vmax.f32 %v2300, %v2302
        %2722 = vmax.xlane.f32.xlu0 %v2721
        %v2723 = vpop.xlane.xlu0 %2722
        %v2724 = vmax.f32 %v2306, %v2308
        %2725 = vmax.xlane.f32.xlu0 %v2724
        %v2726 = vpop.xlane.xlu0 %2725
        %v2727 = vmax.f32 %v2310, %v2312
        %2728 = vmax.xlane.f32.xlu0 %v2727
        %v2729 = vpop.xlane.xlu0 %2728
        %v2730 = vmax.f32 %v2316, %v2318
        %2731 = vmax.xlane.f32.xlu0 %v2730
        %v2732 = vpop.xlane.xlu0 %2731
        %v2733 = vmax.f32 %v2320, %v2322
        %2734 = vmax.xlane.f32.xlu0 %v2733
        %v2735 = vpop.xlane.xlu0 %2734
        %v2736 = vmax.f32 %v2326, %v2328
        %2737 = vmax.xlane.f32.xlu0 %v2736
        %v2738 = vpop.xlane.xlu0 %2737
        %v2739 = vmax.f32 %v2330, %v2332
        %2740 = vmax.xlane.f32.xlu0 %v2739
        %v2741 = vpop.xlane.xlu0 %2740
        %v2742 = vmax.f32 %v2336, %v2338
        %2743 = vmax.xlane.f32.xlu0 %v2742
        %v2744 = vpop.xlane.xlu0 %2743
        %v2745 = vmax.f32 %v2340, %v2342
        %2746 = vmax.xlane.f32.xlu0 %v2745
        %v2747 = vpop.xlane.xlu0 %2746
        %v2748 = vmax.f32 %v2346, %v2348
        %2749 = vmax.xlane.f32.xlu0 %v2748
        %v2750 = vpop.xlane.xlu0 %2749
        %v2751 = vmax.f32 %v2350, %v2352
        %2752 = vmax.xlane.f32.xlu0 %v2751
        %v2753 = vpop.xlane.xlu0 %2752
        %v2754 = vmax.f32 %v2356, %v2358
        %2755 = vmax.xlane.f32.xlu0 %v2754
        %v2756 = vpop.xlane.xlu0 %2755
        %v2757 = vmax.f32 %v2360, %v2362
        %2758 = vmax.xlane.f32.xlu0 %v2757
        %v2759 = vpop.xlane.xlu0 %2758
        %v2760 = vmax.f32 %v2366, %v2368
        %2761 = vmax.xlane.f32.xlu0 %v2760
        %v2762 = vpop.xlane.xlu0 %2761
        %v2763 = vmax.f32 %v2370, %v2372
        %2764 = vmax.xlane.f32.xlu0 %v2763
        %v2765 = vpop.xlane.xlu0 %2764
        %v2766 = vmax.f32 %v2376, %v2378
        %2767 = vmax.xlane.f32.xlu0 %v2766
        %v2768 = vpop.xlane.xlu0 %2767
        %v2769 = vmax.f32 %v2380, %v2382
        %2770 = vmax.xlane.f32.xlu0 %v2769
        %v2771 = vpop.xlane.xlu0 %2770
        %v2772 = vmax.f32 %v2386, %v2388
        %2773 = vmax.xlane.f32.xlu0 %v2772
        %v2774 = vpop.xlane.xlu0 %2773
        %v2775 = vmax.f32 %v2390, %v2392
        %2776 = vmax.xlane.f32.xlu0 %v2775
        %v2777 = vpop.xlane.xlu0 %2776
        %v2778 = vsub.f32 %v1417, %v2396
        %v2779 = vsub.f32 %v1419, %v2396
        %v2780 = vsub.f32 %v1421, %v2399
        %v2781 = vsub.f32 %v1423, %v2399
        %v2782 = vsub.f32 %v1427, %v2402
        %v2783 = vsub.f32 %v1429, %v2402
        %v2784 = vsub.f32 %v1431, %v2405
        %v2785 = vsub.f32 %v1433, %v2405
        %v2786 = vsub.f32 %v1437, %v2408
        %v2787 = vsub.f32 %v1439, %v2408
        %v2788 = vsub.f32 %v1441, %v2411
        %v2789 = vsub.f32 %v1443, %v2411
        %v2790 = vsub.f32 %v1447, %v2414
        %v2791 = vsub.f32 %v1449, %v2414
        %v2792 = vsub.f32 %v1451, %v2417
        %v2793 = vsub.f32 %v1453, %v2417
        %v2794 = vsub.f32 %v1457, %v2420
        %v2795 = vsub.f32 %v1459, %v2420
        %v2796 = vsub.f32 %v1461, %v2423
        %v2797 = vsub.f32 %v1463, %v2423
        %v2798 = vsub.f32 %v1467, %v2426
        %v2799 = vsub.f32 %v1469, %v2426
        %v2800 = vsub.f32 %v1471, %v2429
        %v2801 = vsub.f32 %v1473, %v2429
        %v2802 = vsub.f32 %v1477, %v2432
        %v2803 = vsub.f32 %v1479, %v2432
        %v2804 = vsub.f32 %v1481, %v2435
        %v2805 = vsub.f32 %v1483, %v2435
        %v2806 = vsub.f32 %v1487, %v2438
        %v2807 = vsub.f32 %v1489, %v2438
        %v2808 = vsub.f32 %v1491, %v2441
        %v2809 = vsub.f32 %v1493, %v2441
        %v2810 = vsub.f32 %v1497, %v2444
        %v2811 = vsub.f32 %v1499, %v2444
        %v2812 = vsub.f32 %v1501, %v2447
        %v2813 = vsub.f32 %v1503, %v2447
        %v2814 = vsub.f32 %v1507, %v2450
        %v2815 = vsub.f32 %v1509, %v2450
        %v2816 = vsub.f32 %v1511, %v2453
        %v2817 = vsub.f32 %v1513, %v2453
        %v2818 = vsub.f32 %v1517, %v2456
        %v2819 = vsub.f32 %v1519, %v2456
        %v2820 = vsub.f32 %v1521, %v2459
        %v2821 = vsub.f32 %v1523, %v2459
        %v2822 = vsub.f32 %v1527, %v2462
        %v2823 = vsub.f32 %v1529, %v2462
        %v2824 = vsub.f32 %v1531, %v2465
        %v2825 = vsub.f32 %v1533, %v2465
        %v2826 = vsub.f32 %v1537, %v2468
        %v2827 = vsub.f32 %v1539, %v2468
        %v2828 = vsub.f32 %v1541, %v2471
        %v2829 = vsub.f32 %v1543, %v2471
        %v2830 = vsub.f32 %v1547, %v2474
        %v2831 = vsub.f32 %v1549, %v2474
        %v2832 = vsub.f32 %v1551, %v2477
        %v2833 = vsub.f32 %v1553, %v2477
        %v2834 = vsub.f32 %v1557, %v2480
        %v2835 = vsub.f32 %v1559, %v2480
        %v2836 = vsub.f32 %v1561, %v2483
        %v2837 = vsub.f32 %v1563, %v2483
        %v2838 = vsub.f32 %v1567, %v2486
        %v2839 = vsub.f32 %v1569, %v2486
        %v2840 = vsub.f32 %v1571, %v2489
        %v2841 = vsub.f32 %v1573, %v2489
        %v2842 = vsub.f32 %v1690, %v2492
        %v2843 = vsub.f32 %v1692, %v2492
        %v2844 = vsub.f32 %v1694, %v2495
        %v2845 = vsub.f32 %v1696, %v2495
        %v2846 = vsub.f32 %v1700, %v2498
        %v2847 = vsub.f32 %v1702, %v2498
        %v2848 = vsub.f32 %v1704, %v2501
        %v2849 = vsub.f32 %v1706, %v2501
        %v2850 = vsub.f32 %v1710, %v2504
        %v2851 = vsub.f32 %v1712, %v2504
        %v2852 = vsub.f32 %v1714, %v2507
        %v2853 = vsub.f32 %v1716, %v2507
        %v2854 = vsub.f32 %v1720, %v2510
        %v2855 = vsub.f32 %v1722, %v2510
        %v2856 = vsub.f32 %v1724, %v2513
        %v2857 = vsub.f32 %v1726, %v2513
        %v2858 = vsub.f32 %v1730, %v2516
        %v2859 = vsub.f32 %v1732, %v2516
        %v2860 = vsub.f32 %v1734, %v2519
        %v2861 = vsub.f32 %v1736, %v2519
        %v2862 = vsub.f32 %v1740, %v2522
        %v2863 = vsub.f32 %v1742, %v2522
        %v2864 = vsub.f32 %v1744, %v2525
        %v2865 = vsub.f32 %v1746, %v2525
        %v2866 = vsub.f32 %v1750, %v2528
        %v2867 = vsub.f32 %v1752, %v2528
        %v2868 = vsub.f32 %v1754, %v2531
        %v2869 = vsub.f32 %v1756, %v2531
        %v2870 = vsub.f32 %v1760, %v2534
        %v2871 = vsub.f32 %v1762, %v2534
        %v2872 = vsub.f32 %v1764, %v2537
        %v2873 = vsub.f32 %v1766, %v2537
        %v2874 = vsub.f32 %v1770, %v2540
        %v2875 = vsub.f32 %v1772, %v2540
        %v2876 = vsub.f32 %v1774, %v2543
        %v2877 = vsub.f32 %v1776, %v2543
        %v2878 = vsub.f32 %v1780, %v2546
        %v2879 = vsub.f32 %v1782, %v2546
        %v2880 = vsub.f32 %v1784, %v2549
        %v2881 = vsub.f32 %v1786, %v2549
        %v2882 = vsub.f32 %v1790, %v2552
        %v2883 = vsub.f32 %v1792, %v2552
        %v2884 = vsub.f32 %v1794, %v2555
        %v2885 = vsub.f32 %v1796, %v2555
        %v2886 = vsub.f32 %v1800, %v2558
        %v2887 = vsub.f32 %v1802, %v2558
        %v2888 = vsub.f32 %v1804, %v2561
        %v2889 = vsub.f32 %v1806, %v2561
        %v2890 = vsub.f32 %v1810, %v2564
        %v2891 = vsub.f32 %v1812, %v2564
        %v2892 = vsub.f32 %v1814, %v2567
        %v2893 = vsub.f32 %v1816, %v2567
        %v2894 = vsub.f32 %v1820, %v2570
        %v2895 = vsub.f32 %v1822, %v2570
        %v2896 = vsub.f32 %v1824, %v2573
        %v2897 = vsub.f32 %v1826, %v2573
        %v2898 = vsub.f32 %v1830, %v2576
        %v2899 = vsub.f32 %v1832, %v2576
        %v2900 = vsub.f32 %v1834, %v2579
        %v2901 = vsub.f32 %v1836, %v2579
        %v2902 = vsub.f32 %v1840, %v2582
        %v2903 = vsub.f32 %v1842, %v2582
        %v2904 = vsub.f32 %v1844, %v2585
        %v2905 = vsub.f32 %v1846, %v2585
        %v2906 = vsub.f32 %v1963, %v2588
        %v2907 = vsub.f32 %v1965, %v2588
        %v2908 = vsub.f32 %v1967, %v2591
        %v2909 = vsub.f32 %v1969, %v2591
        %v2910 = vsub.f32 %v1973, %v2594
        %v2911 = vsub.f32 %v1975, %v2594
        %v2912 = vsub.f32 %v1977, %v2597
        %v2913 = vsub.f32 %v1979, %v2597
        %v2914 = vsub.f32 %v1983, %v2600
        %v2915 = vsub.f32 %v1985, %v2600
        %v2916 = vsub.f32 %v1987, %v2603
        %v2917 = vsub.f32 %v1989, %v2603
        %v2918 = vsub.f32 %v1993, %v2606
        %v2919 = vsub.f32 %v1995, %v2606
        %v2920 = vsub.f32 %v1997, %v2609
        %v2921 = vsub.f32 %v1999, %v2609
        %v2922 = vsub.f32 %v2003, %v2612
        %v2923 = vsub.f32 %v2005, %v2612
        %v2924 = vsub.f32 %v2007, %v2615
        %v2925 = vsub.f32 %v2009, %v2615
        %v2926 = vsub.f32 %v2013, %v2618
        %v2927 = vsub.f32 %v2015, %v2618
        %v2928 = vsub.f32 %v2017, %v2621
        %v2929 = vsub.f32 %v2019, %v2621
        %v2930 = vsub.f32 %v2023, %v2624
        %v2931 = vsub.f32 %v2025, %v2624
        %v2932 = vsub.f32 %v2027, %v2627
        %v2933 = vsub.f32 %v2029, %v2627
        %v2934 = vsub.f32 %v2033, %v2630
        %v2935 = vsub.f32 %v2035, %v2630
        %v2936 = vsub.f32 %v2037, %v2633
        %v2937 = vsub.f32 %v2039, %v2633
        %v2938 = vsub.f32 %v2043, %v2636
        %v2939 = vsub.f32 %v2045, %v2636
        %v2940 = vsub.f32 %v2047, %v2639
        %v2941 = vsub.f32 %v2049, %v2639
        %v2942 = vsub.f32 %v2053, %v2642
        %v2943 = vsub.f32 %v2055, %v2642
        %v2944 = vsub.f32 %v2057, %v2645
        %v2945 = vsub.f32 %v2059, %v2645
        %v2946 = vsub.f32 %v2063, %v2648
        %v2947 = vsub.f32 %v2065, %v2648
        %v2948 = vsub.f32 %v2067, %v2651
        %v2949 = vsub.f32 %v2069, %v2651
        %v2950 = vsub.f32 %v2073, %v2654
        %v2951 = vsub.f32 %v2075, %v2654
        %v2952 = vsub.f32 %v2077, %v2657
        %v2953 = vsub.f32 %v2079, %v2657
        %v2954 = vsub.f32 %v2083, %v2660
        %v2955 = vsub.f32 %v2085, %v2660
        %v2956 = vsub.f32 %v2087, %v2663
        %v2957 = vsub.f32 %v2089, %v2663
        %v2958 = vsub.f32 %v2093, %v2666
        %v2959 = vsub.f32 %v2095, %v2666
        %v2960 = vsub.f32 %v2097, %v2669
        %v2961 = vsub.f32 %v2099, %v2669
        %v2962 = vsub.f32 %v2103, %v2672
        %v2963 = vsub.f32 %v2105, %v2672
        %v2964 = vsub.f32 %v2107, %v2675
        %v2965 = vsub.f32 %v2109, %v2675
        %v2966 = vsub.f32 %v2113, %v2678
        %v2967 = vsub.f32 %v2115, %v2678
        %v2968 = vsub.f32 %v2117, %v2681
        %v2969 = vsub.f32 %v2119, %v2681
        %v2970 = vsub.f32 %v2236, %v2684
        %v2971 = vsub.f32 %v2238, %v2684
        %v2972 = vsub.f32 %v2240, %v2687
        %v2973 = vsub.f32 %v2242, %v2687
        %v2974 = vsub.f32 %v2246, %v2690
        %v2975 = vsub.f32 %v2248, %v2690
        %v2976 = vsub.f32 %v2250, %v2693
        %v2977 = vsub.f32 %v2252, %v2693
        %v2978 = vsub.f32 %v2256, %v2696
        %v2979 = vsub.f32 %v2258, %v2696
        %v2980 = vsub.f32 %v2260, %v2699
        %v2981 = vsub.f32 %v2262, %v2699
        %v2982 = vsub.f32 %v2266, %v2702
        %v2983 = vsub.f32 %v2268, %v2702
        %v2984 = vsub.f32 %v2270, %v2705
        %v2985 = vsub.f32 %v2272, %v2705
        %v2986 = vsub.f32 %v2276, %v2708
        %v2987 = vsub.f32 %v2278, %v2708
        %v2988 = vsub.f32 %v2280, %v2711
        %v2989 = vsub.f32 %v2282, %v2711
        %v2990 = vsub.f32 %v2286, %v2714
        %v2991 = vsub.f32 %v2288, %v2714
        %v2992 = vsub.f32 %v2290, %v2717
        %v2993 = vsub.f32 %v2292, %v2717
        %v2994 = vsub.f32 %v2296, %v2720
        %v2995 = vsub.f32 %v2298, %v2720
        %v2996 = vsub.f32 %v2300, %v2723
        %v2997 = vsub.f32 %v2302, %v2723
        %v2998 = vsub.f32 %v2306, %v2726
        %v2999 = vsub.f32 %v2308, %v2726
        %v3000 = vsub.f32 %v2310, %v2729
        %v3001 = vsub.f32 %v2312, %v2729
        %v3002 = vsub.f32 %v2316, %v2732
        %v3003 = vsub.f32 %v2318, %v2732
        %v3004 = vsub.f32 %v2320, %v2735
        %v3005 = vsub.f32 %v2322, %v2735
        %v3006 = vsub.f32 %v2326, %v2738
        %v3007 = vsub.f32 %v2328, %v2738
        %v3008 = vsub.f32 %v2330, %v2741
        %v3009 = vsub.f32 %v2332, %v2741
        %v3010 = vsub.f32 %v2336, %v2744
        %v3011 = vsub.f32 %v2338, %v2744
        %v3012 = vsub.f32 %v2340, %v2747
        %v3013 = vsub.f32 %v2342, %v2747
        %v3014 = vsub.f32 %v2346, %v2750
        %v3015 = vsub.f32 %v2348, %v2750
        %v3016 = vsub.f32 %v2350, %v2753
        %v3017 = vsub.f32 %v2352, %v2753
        %v3018 = vsub.f32 %v2356, %v2756
        %v3019 = vsub.f32 %v2358, %v2756
        %v3020 = vsub.f32 %v2360, %v2759
        %v3021 = vsub.f32 %v2362, %v2759
        %v3022 = vsub.f32 %v2366, %v2762
        %v3023 = vsub.f32 %v2368, %v2762
        %v3024 = vsub.f32 %v2370, %v2765
        %v3025 = vsub.f32 %v2372, %v2765
        %v3026 = vsub.f32 %v2376, %v2768
        %v3027 = vsub.f32 %v2378, %v2768
        %v3028 = vsub.f32 %v2380, %v2771
        %v3029 = vsub.f32 %v2382, %v2771
        %v3030 = vsub.f32 %v2386, %v2774
        %v3031 = vsub.f32 %v2388, %v2774
        %v3032 = vsub.f32 %v2390, %v2777
        %v3033 = vsub.f32 %v2392, %v2777
        %v3034 = vmul.f32 %v2778, 1.442695
        %v3035 = vpow.pop %v3034
        %v3036 = vmul.f32 %v2779, 1.442695
        %v3037 = vpow.pop %v3036
        %v3038 = vmul.f32 %v2780, 1.442695
        %v3039 = vpow.pop %v3038
        %v3040 = vmul.f32 %v2781, 1.442695
        %v3041 = vpow.pop %v3040
        %v3042 = vmul.f32 %v2782, 1.442695
        %v3043 = vpow.pop %v3042
        %v3044 = vmul.f32 %v2783, 1.442695
        %v3045 = vpow.pop %v3044
        %v3046 = vmul.f32 %v2784, 1.442695
        %v3047 = vpow.pop %v3046
        %v3048 = vmul.f32 %v2785, 1.442695
        %v3049 = vpow.pop %v3048
        %v3050 = vmul.f32 %v2786, 1.442695
        %v3051 = vpow.pop %v3050
        %v3052 = vmul.f32 %v2787, 1.442695
        %v3053 = vpow.pop %v3052
        %v3054 = vmul.f32 %v2788, 1.442695
        %v3055 = vpow.pop %v3054
        %v3056 = vmul.f32 %v2789, 1.442695
        %v3057 = vpow.pop %v3056
        %v3058 = vmul.f32 %v2790, 1.442695
        %v3059 = vpow.pop %v3058
        %v3060 = vmul.f32 %v2791, 1.442695
        %v3061 = vpow.pop %v3060
        %v3062 = vmul.f32 %v2792, 1.442695
        %v3063 = vpow.pop %v3062
        %v3064 = vmul.f32 %v2793, 1.442695
        %v3065 = vpow.pop %v3064
        %v3066 = vmul.f32 %v2794, 1.442695
        %v3067 = vpow.pop %v3066
        %v3068 = vmul.f32 %v2795, 1.442695
        %v3069 = vpow.pop %v3068
        %v3070 = vmul.f32 %v2796, 1.442695
        %v3071 = vpow.pop %v3070
        %v3072 = vmul.f32 %v2797, 1.442695
        %v3073 = vpow.pop %v3072
        %v3074 = vmul.f32 %v2798, 1.442695
        %v3075 = vpow.pop %v3074
        %v3076 = vmul.f32 %v2799, 1.442695
        %v3077 = vpow.pop %v3076
        %v3078 = vmul.f32 %v2800, 1.442695
        %v3079 = vpow.pop %v3078
        %v3080 = vmul.f32 %v2801, 1.442695
        %v3081 = vpow.pop %v3080
        %v3082 = vmul.f32 %v2802, 1.442695
        %v3083 = vpow.pop %v3082
        %v3084 = vmul.f32 %v2803, 1.442695
        %v3085 = vpow.pop %v3084
        %v3086 = vmul.f32 %v2804, 1.442695
        %v3087 = vpow.pop %v3086
        %v3088 = vmul.f32 %v2805, 1.442695
        %v3089 = vpow.pop %v3088
        %v3090 = vmul.f32 %v2806, 1.442695
        %v3091 = vpow.pop %v3090
        %v3092 = vmul.f32 %v2807, 1.442695
        %v3093 = vpow.pop %v3092
        %v3094 = vmul.f32 %v2808, 1.442695
        %v3095 = vpow.pop %v3094
        %v3096 = vmul.f32 %v2809, 1.442695
        %v3097 = vpow.pop %v3096
        %v3098 = vmul.f32 %v2810, 1.442695
        %v3099 = vpow.pop %v3098
        %v3100 = vmul.f32 %v2811, 1.442695
        %v3101 = vpow.pop %v3100
        %v3102 = vmul.f32 %v2812, 1.442695
        %v3103 = vpow.pop %v3102
        %v3104 = vmul.f32 %v2813, 1.442695
        %v3105 = vpow.pop %v3104
        %v3106 = vmul.f32 %v2814, 1.442695
        %v3107 = vpow.pop %v3106
        %v3108 = vmul.f32 %v2815, 1.442695
        %v3109 = vpow.pop %v3108
        %v3110 = vmul.f32 %v2816, 1.442695
        %v3111 = vpow.pop %v3110
        %v3112 = vmul.f32 %v2817, 1.442695
        %v3113 = vpow.pop %v3112
        %v3114 = vmul.f32 %v2818, 1.442695
        %v3115 = vpow.pop %v3114
        %v3116 = vmul.f32 %v2819, 1.442695
        %v3117 = vpow.pop %v3116
        %v3118 = vmul.f32 %v2820, 1.442695
        %v3119 = vpow.pop %v3118
        %v3120 = vmul.f32 %v2821, 1.442695
        %v3121 = vpow.pop %v3120
        %v3122 = vmul.f32 %v2822, 1.442695
        %v3123 = vpow.pop %v3122
        %v3124 = vmul.f32 %v2823, 1.442695
        %v3125 = vpow.pop %v3124
        %v3126 = vmul.f32 %v2824, 1.442695
        %v3127 = vpow.pop %v3126
        %v3128 = vmul.f32 %v2825, 1.442695
        %v3129 = vpow.pop %v3128
        %v3130 = vmul.f32 %v2826, 1.442695
        %v3131 = vpow.pop %v3130
        %v3132 = vmul.f32 %v2827, 1.442695
        %v3133 = vpow.pop %v3132
        %v3134 = vmul.f32 %v2828, 1.442695
        %v3135 = vpow.pop %v3134
        %v3136 = vmul.f32 %v2829, 1.442695
        %v3137 = vpow.pop %v3136
        %v3138 = vmul.f32 %v2830, 1.442695
        %v3139 = vpow.pop %v3138
        %v3140 = vmul.f32 %v2831, 1.442695
        %v3141 = vpow.pop %v3140
        %v3142 = vmul.f32 %v2832, 1.442695
        %v3143 = vpow.pop %v3142
        %v3144 = vmul.f32 %v2833, 1.442695
        %v3145 = vpow.pop %v3144
        %v3146 = vmul.f32 %v2834, 1.442695
        %v3147 = vpow.pop %v3146
        %v3148 = vmul.f32 %v2835, 1.442695
        %v3149 = vpow.pop %v3148
        %v3150 = vmul.f32 %v2836, 1.442695
        %v3151 = vpow.pop %v3150
        %v3152 = vmul.f32 %v2837, 1.442695
        %v3153 = vpow.pop %v3152
        %v3154 = vmul.f32 %v2838, 1.442695
        %v3155 = vpow.pop %v3154
        %v3156 = vmul.f32 %v2839, 1.442695
        %v3157 = vpow.pop %v3156
        %v3158 = vmul.f32 %v2840, 1.442695
        %v3159 = vpow.pop %v3158
        %v3160 = vmul.f32 %v2841, 1.442695
        %v3161 = vpow.pop %v3160
        %v3162 = vmul.f32 %v2842, 1.442695
        %v3163 = vpow.pop %v3162
        %v3164 = vmul.f32 %v2843, 1.442695
        %v3165 = vpow.pop %v3164
        %v3166 = vmul.f32 %v2844, 1.442695
        %v3167 = vpow.pop %v3166
        %v3168 = vmul.f32 %v2845, 1.442695
        %v3169 = vpow.pop %v3168
        %v3170 = vmul.f32 %v2846, 1.442695
        %v3171 = vpow.pop %v3170
        %v3172 = vmul.f32 %v2847, 1.442695
        %v3173 = vpow.pop %v3172
        %v3174 = vmul.f32 %v2848, 1.442695
        %v3175 = vpow.pop %v3174
        %v3176 = vmul.f32 %v2849, 1.442695
        %v3177 = vpow.pop %v3176
        %v3178 = vmul.f32 %v2850, 1.442695
        %v3179 = vpow.pop %v3178
        %v3180 = vmul.f32 %v2851, 1.442695
        %v3181 = vpow.pop %v3180
        %v3182 = vmul.f32 %v2852, 1.442695
        %v3183 = vpow.pop %v3182
        %v3184 = vmul.f32 %v2853, 1.442695
        %v3185 = vpow.pop %v3184
        %v3186 = vmul.f32 %v2854, 1.442695
        %v3187 = vpow.pop %v3186
        %v3188 = vmul.f32 %v2855, 1.442695
        %v3189 = vpow.pop %v3188
        %v3190 = vmul.f32 %v2856, 1.442695
        %v3191 = vpow.pop %v3190
        %v3192 = vmul.f32 %v2857, 1.442695
        %v3193 = vpow.pop %v3192
        %v3194 = vmul.f32 %v2858, 1.442695
        %v3195 = vpow.pop %v3194
        %v3196 = vmul.f32 %v2859, 1.442695
        %v3197 = vpow.pop %v3196
        %v3198 = vmul.f32 %v2860, 1.442695
        %v3199 = vpow.pop %v3198
        %v3200 = vmul.f32 %v2861, 1.442695
        %v3201 = vpow.pop %v3200
        %v3202 = vmul.f32 %v2862, 1.442695
        %v3203 = vpow.pop %v3202
        %v3204 = vmul.f32 %v2863, 1.442695
        %v3205 = vpow.pop %v3204
        %v3206 = vmul.f32 %v2864, 1.442695
        %v3207 = vpow.pop %v3206
        %v3208 = vmul.f32 %v2865, 1.442695
        %v3209 = vpow.pop %v3208
        %v3210 = vmul.f32 %v2866, 1.442695
        %v3211 = vpow.pop %v3210
        %v3212 = vmul.f32 %v2867, 1.442695
        %v3213 = vpow.pop %v3212
        %v3214 = vmul.f32 %v2868, 1.442695
        %v3215 = vpow.pop %v3214
        %v3216 = vmul.f32 %v2869, 1.442695
        %v3217 = vpow.pop %v3216
        %v3218 = vmul.f32 %v2870, 1.442695
        %v3219 = vpow.pop %v3218
        %v3220 = vmul.f32 %v2871, 1.442695
        %v3221 = vpow.pop %v3220
        %v3222 = vmul.f32 %v2872, 1.442695
        %v3223 = vpow.pop %v3222
        %v3224 = vmul.f32 %v2873, 1.442695
        %v3225 = vpow.pop %v3224
        %v3226 = vmul.f32 %v2874, 1.442695
        %v3227 = vpow.pop %v3226
        %v3228 = vmul.f32 %v2875, 1.442695
        %v3229 = vpow.pop %v3228
        %v3230 = vmul.f32 %v2876, 1.442695
        %v3231 = vpow.pop %v3230
        %v3232 = vmul.f32 %v2877, 1.442695
        %v3233 = vpow.pop %v3232
        %v3234 = vmul.f32 %v2878, 1.442695
        %v3235 = vpow.pop %v3234
        %v3236 = vmul.f32 %v2879, 1.442695
        %v3237 = vpow.pop %v3236
        %v3238 = vmul.f32 %v2880, 1.442695
        %v3239 = vpow.pop %v3238
        %v3240 = vmul.f32 %v2881, 1.442695
        %v3241 = vpow.pop %v3240
        %v3242 = vmul.f32 %v2882, 1.442695
        %v3243 = vpow.pop %v3242
        %v3244 = vmul.f32 %v2883, 1.442695
        %v3245 = vpow.pop %v3244
        %v3246 = vmul.f32 %v2884, 1.442695
        %v3247 = vpow.pop %v3246
        %v3248 = vmul.f32 %v2885, 1.442695
        %v3249 = vpow.pop %v3248
        %v3250 = vmul.f32 %v2886, 1.442695
        %v3251 = vpow.pop %v3250
        %v3252 = vmul.f32 %v2887, 1.442695
        %v3253 = vpow.pop %v3252
        %v3254 = vmul.f32 %v2888, 1.442695
        %v3255 = vpow.pop %v3254
        %v3256 = vmul.f32 %v2889, 1.442695
        %v3257 = vpow.pop %v3256
        %v3258 = vmul.f32 %v2890, 1.442695
        %v3259 = vpow.pop %v3258
        %v3260 = vmul.f32 %v2891, 1.442695
        %v3261 = vpow.pop %v3260
        %v3262 = vmul.f32 %v2892, 1.442695
        %v3263 = vpow.pop %v3262
        %v3264 = vmul.f32 %v2893, 1.442695
        %v3265 = vpow.pop %v3264
        %v3266 = vmul.f32 %v2894, 1.442695
        %v3267 = vpow.pop %v3266
        %v3268 = vmul.f32 %v2895, 1.442695
        %v3269 = vpow.pop %v3268
        %v3270 = vmul.f32 %v2896, 1.442695
        %v3271 = vpow.pop %v3270
        %v3272 = vmul.f32 %v2897, 1.442695
        %v3273 = vpow.pop %v3272
        %v3274 = vmul.f32 %v2898, 1.442695
        %v3275 = vpow.pop %v3274
        %v3276 = vmul.f32 %v2899, 1.442695
        %v3277 = vpow.pop %v3276
        %v3278 = vmul.f32 %v2900, 1.442695
        %v3279 = vpow.pop %v3278
        %v3280 = vmul.f32 %v2901, 1.442695
        %v3281 = vpow.pop %v3280
        %v3282 = vmul.f32 %v2902, 1.442695
        %v3283 = vpow.pop %v3282
        %v3284 = vmul.f32 %v2903, 1.442695
        %v3285 = vpow.pop %v3284
        %v3286 = vmul.f32 %v2904, 1.442695
        %v3287 = vpow.pop %v3286
        %v3288 = vmul.f32 %v2905, 1.442695
        %v3289 = vpow.pop %v3288
        %v3290 = vmul.f32 %v2906, 1.442695
        %v3291 = vpow.pop %v3290
        %v3292 = vmul.f32 %v2907, 1.442695
        %v3293 = vpow.pop %v3292
        %v3294 = vmul.f32 %v2908, 1.442695
        %v3295 = vpow.pop %v3294
        %v3296 = vmul.f32 %v2909, 1.442695
        %v3297 = vpow.pop %v3296
        %v3298 = vmul.f32 %v2910, 1.442695
        %v3299 = vpow.pop %v3298
        %v3300 = vmul.f32 %v2911, 1.442695
        %v3301 = vpow.pop %v3300
        %v3302 = vmul.f32 %v2912, 1.442695
        %v3303 = vpow.pop %v3302
        %v3304 = vmul.f32 %v2913, 1.442695
        %v3305 = vpow.pop %v3304
        %v3306 = vmul.f32 %v2914, 1.442695
        %v3307 = vpow.pop %v3306
        %v3308 = vmul.f32 %v2915, 1.442695
        %v3309 = vpow.pop %v3308
        %v3310 = vmul.f32 %v2916, 1.442695
        %v3311 = vpow.pop %v3310
        %v3312 = vmul.f32 %v2917, 1.442695
        %v3313 = vpow.pop %v3312
        %v3314 = vmul.f32 %v2918, 1.442695
        %v3315 = vpow.pop %v3314
        %v3316 = vmul.f32 %v2919, 1.442695
        %v3317 = vpow.pop %v3316
        %v3318 = vmul.f32 %v2920, 1.442695
        %v3319 = vpow.pop %v3318
        %v3320 = vmul.f32 %v2921, 1.442695
        %v3321 = vpow.pop %v3320
        %v3322 = vmul.f32 %v2922, 1.442695
        %v3323 = vpow.pop %v3322
        %v3324 = vmul.f32 %v2923, 1.442695
        %v3325 = vpow.pop %v3324
        %v3326 = vmul.f32 %v2924, 1.442695
        %v3327 = vpow.pop %v3326
        %v3328 = vmul.f32 %v2925, 1.442695
        %v3329 = vpow.pop %v3328
        %v3330 = vmul.f32 %v2926, 1.442695
        %v3331 = vpow.pop %v3330
        %v3332 = vmul.f32 %v2927, 1.442695
        %v3333 = vpow.pop %v3332
        %v3334 = vmul.f32 %v2928, 1.442695
        %v3335 = vpow.pop %v3334
        %v3336 = vmul.f32 %v2929, 1.442695
        %v3337 = vpow.pop %v3336
        %v3338 = vmul.f32 %v2930, 1.442695
        %v3339 = vpow.pop %v3338
        %v3340 = vmul.f32 %v2931, 1.442695
        %v3341 = vpow.pop %v3340
        %v3342 = vmul.f32 %v2932, 1.442695
        %v3343 = vpow.pop %v3342
        %v3344 = vmul.f32 %v2933, 1.442695
        %v3345 = vpow.pop %v3344
        %v3346 = vmul.f32 %v2934, 1.442695
        %v3347 = vpow.pop %v3346
        %v3348 = vmul.f32 %v2935, 1.442695
        %v3349 = vpow.pop %v3348
        %v3350 = vmul.f32 %v2936, 1.442695
        %v3351 = vpow.pop %v3350
        %v3352 = vmul.f32 %v2937, 1.442695
        %v3353 = vpow.pop %v3352
        %v3354 = vmul.f32 %v2938, 1.442695
        %v3355 = vpow.pop %v3354
        %v3356 = vmul.f32 %v2939, 1.442695
        %v3357 = vpow.pop %v3356
        %v3358 = vmul.f32 %v2940, 1.442695
        %v3359 = vpow.pop %v3358
        %v3360 = vmul.f32 %v2941, 1.442695
        %v3361 = vpow.pop %v3360
        %v3362 = vmul.f32 %v2942, 1.442695
        %v3363 = vpow.pop %v3362
        %v3364 = vmul.f32 %v2943, 1.442695
        %v3365 = vpow.pop %v3364
        %v3366 = vmul.f32 %v2944, 1.442695
        %v3367 = vpow.pop %v3366
        %v3368 = vmul.f32 %v2945, 1.442695
        %v3369 = vpow.pop %v3368
        %v3370 = vmul.f32 %v2946, 1.442695
        %v3371 = vpow.pop %v3370
        %v3372 = vmul.f32 %v2947, 1.442695
        %v3373 = vpow.pop %v3372
        %v3374 = vmul.f32 %v2948, 1.442695
        %v3375 = vpow.pop %v3374
        %v3376 = vmul.f32 %v2949, 1.442695
        %v3377 = vpow.pop %v3376
        %v3378 = vmul.f32 %v2950, 1.442695
        %v3379 = vpow.pop %v3378
        %v3380 = vmul.f32 %v2951, 1.442695
        %v3381 = vpow.pop %v3380
        %v3382 = vmul.f32 %v2952, 1.442695
        %v3383 = vpow.pop %v3382
        %v3384 = vmul.f32 %v2953, 1.442695
        %v3385 = vpow.pop %v3384
        %v3386 = vmul.f32 %v2954, 1.442695
        %v3387 = vpow.pop %v3386
        %v3388 = vmul.f32 %v2955, 1.442695
        %v3389 = vpow.pop %v3388
        %v3390 = vmul.f32 %v2956, 1.442695
        %v3391 = vpow.pop %v3390
        %v3392 = vmul.f32 %v2957, 1.442695
        %v3393 = vpow.pop %v3392
        %v3394 = vmul.f32 %v2958, 1.442695
        %v3395 = vpow.pop %v3394
        %v3396 = vmul.f32 %v2959, 1.442695
        %v3397 = vpow.pop %v3396
        %v3398 = vmul.f32 %v2960, 1.442695
        %v3399 = vpow.pop %v3398
        %v3400 = vmul.f32 %v2961, 1.442695
        %v3401 = vpow.pop %v3400
        %v3402 = vmul.f32 %v2962, 1.442695
        %v3403 = vpow.pop %v3402
        %v3404 = vmul.f32 %v2963, 1.442695
        %v3405 = vpow.pop %v3404
        %v3406 = vmul.f32 %v2964, 1.442695
        %v3407 = vpow.pop %v3406
        %v3408 = vmul.f32 %v2965, 1.442695
        %v3409 = vpow.pop %v3408
        %v3410 = vmul.f32 %v2966, 1.442695
        %v3411 = vpow.pop %v3410
        %v3412 = vmul.f32 %v2967, 1.442695
        %v3413 = vpow.pop %v3412
        %v3414 = vmul.f32 %v2968, 1.442695
        %v3415 = vpow.pop %v3414
        %v3416 = vmul.f32 %v2969, 1.442695
        %v3417 = vpow.pop %v3416
        %v3418 = vmul.f32 %v2970, 1.442695
        %v3419 = vpow.pop %v3418
        %v3420 = vmul.f32 %v2971, 1.442695
        %v3421 = vpow.pop %v3420
        %v3422 = vmul.f32 %v2972, 1.442695
        %v3423 = vpow.pop %v3422
        %v3424 = vmul.f32 %v2973, 1.442695
        %v3425 = vpow.pop %v3424
        %v3426 = vmul.f32 %v2974, 1.442695
        %v3427 = vpow.pop %v3426
        %v3428 = vmul.f32 %v2975, 1.442695
        %v3429 = vpow.pop %v3428
        %v3430 = vmul.f32 %v2976, 1.442695
        %v3431 = vpow.pop %v3430
        %v3432 = vmul.f32 %v2977, 1.442695
        %v3433 = vpow.pop %v3432
        %v3434 = vmul.f32 %v2978, 1.442695
        %v3435 = vpow.pop %v3434
        %v3436 = vmul.f32 %v2979, 1.442695
        %v3437 = vpow.pop %v3436
        %v3438 = vmul.f32 %v2980, 1.442695
        %v3439 = vpow.pop %v3438
        %v3440 = vmul.f32 %v2981, 1.442695
        %v3441 = vpow.pop %v3440
        %v3442 = vmul.f32 %v2982, 1.442695
        %v3443 = vpow.pop %v3442
        %v3444 = vmul.f32 %v2983, 1.442695
        %v3445 = vpow.pop %v3444
        %v3446 = vmul.f32 %v2984, 1.442695
        %v3447 = vpow.pop %v3446
        %v3448 = vmul.f32 %v2985, 1.442695
        %v3449 = vpow.pop %v3448
        %v3450 = vmul.f32 %v2986, 1.442695
        %v3451 = vpow.pop %v3450
        %v3452 = vmul.f32 %v2987, 1.442695
        %v3453 = vpow.pop %v3452
        %v3454 = vmul.f32 %v2988, 1.442695
        %v3455 = vpow.pop %v3454
        %v3456 = vmul.f32 %v2989, 1.442695
        %v3457 = vpow.pop %v3456
        %v3458 = vmul.f32 %v2990, 1.442695
        %v3459 = vpow.pop %v3458
        %v3460 = vmul.f32 %v2991, 1.442695
        %v3461 = vpow.pop %v3460
        %v3462 = vmul.f32 %v2992, 1.442695
        %v3463 = vpow.pop %v3462
        %v3464 = vmul.f32 %v2993, 1.442695
        %v3465 = vpow.pop %v3464
        %v3466 = vmul.f32 %v2994, 1.442695
        %v3467 = vpow.pop %v3466
        %v3468 = vmul.f32 %v2995, 1.442695
        %v3469 = vpow.pop %v3468
        %v3470 = vmul.f32 %v2996, 1.442695
        %v3471 = vpow.pop %v3470
        %v3472 = vmul.f32 %v2997, 1.442695
        %v3473 = vpow.pop %v3472
        %v3474 = vmul.f32 %v2998, 1.442695
        %v3475 = vpow.pop %v3474
        %v3476 = vmul.f32 %v2999, 1.442695
        %v3477 = vpow.pop %v3476
        %v3478 = vmul.f32 %v3000, 1.442695
        %v3479 = vpow.pop %v3478
        %v3480 = vmul.f32 %v3001, 1.442695
        %v3481 = vpow.pop %v3480
        %v3482 = vmul.f32 %v3002, 1.442695
        %v3483 = vpow.pop %v3482
        %v3484 = vmul.f32 %v3003, 1.442695
        %v3485 = vpow.pop %v3484
        %v3486 = vmul.f32 %v3004, 1.442695
        %v3487 = vpow.pop %v3486
        %v3488 = vmul.f32 %v3005, 1.442695
        %v3489 = vpow.pop %v3488
        %v3490 = vmul.f32 %v3006, 1.442695
        %v3491 = vpow.pop %v3490
        %v3492 = vmul.f32 %v3007, 1.442695
        %v3493 = vpow.pop %v3492
        %v3494 = vmul.f32 %v3008, 1.442695
        %v3495 = vpow.pop %v3494
        %v3496 = vmul.f32 %v3009, 1.442695
        %v3497 = vpow.pop %v3496
        %v3498 = vmul.f32 %v3010, 1.442695
        %v3499 = vpow.pop %v3498
        %v3500 = vmul.f32 %v3011, 1.442695
        %v3501 = vpow.pop %v3500
        %v3502 = vmul.f32 %v3012, 1.442695
        %v3503 = vpow.pop %v3502
        %v3504 = vmul.f32 %v3013, 1.442695
        %v3505 = vpow.pop %v3504
        %v3506 = vmul.f32 %v3014, 1.442695
        %v3507 = vpow.pop %v3506
        %v3508 = vmul.f32 %v3015, 1.442695
        %v3509 = vpow.pop %v3508
        %v3510 = vmul.f32 %v3016, 1.442695
        %v3511 = vpow.pop %v3510
        %v3512 = vmul.f32 %v3017, 1.442695
        %v3513 = vpow.pop %v3512
        %v3514 = vmul.f32 %v3018, 1.442695
        %v3515 = vpow.pop %v3514
        %v3516 = vmul.f32 %v3019, 1.442695
        %v3517 = vpow.pop %v3516
        %v3518 = vmul.f32 %v3020, 1.442695
        %v3519 = vpow.pop %v3518
        %v3520 = vmul.f32 %v3021, 1.442695
        %v3521 = vpow.pop %v3520
        %v3522 = vmul.f32 %v3022, 1.442695
        %v3523 = vpow.pop %v3522
        %v3524 = vmul.f32 %v3023, 1.442695
        %v3525 = vpow.pop %v3524
        %v3526 = vmul.f32 %v3024, 1.442695
        %v3527 = vpow.pop %v3526
        %v3528 = vmul.f32 %v3025, 1.442695
        %v3529 = vpow.pop %v3528
        %v3530 = vmul.f32 %v3026, 1.442695
        %v3531 = vpow.pop %v3530
        %v3532 = vmul.f32 %v3027, 1.442695
        %v3533 = vpow.pop %v3532
        %v3534 = vmul.f32 %v3028, 1.442695
        %v3535 = vpow.pop %v3534
        %v3536 = vmul.f32 %v3029, 1.442695
        %v3537 = vpow.pop %v3536
        %v3538 = vmul.f32 %v3030, 1.442695
        %v3539 = vpow.pop %v3538
        %v3540 = vmul.f32 %v3031, 1.442695
        %v3541 = vpow.pop %v3540
        %v3542 = vmul.f32 %v3032, 1.442695
        %v3543 = vpow.pop %v3542
        %v3544 = vmul.f32 %v3033, 1.442695
        %v3545 = vpow.pop %v3544
        %v3546 = vadd.f32 %v3035, %v3037
        %3547 = vadd.xlane.f32.xlu0 %v3546
        %v3548 = vpop.xlane.xlu0 %3547
        %v3549 = vadd.f32 %v3039, %v3041
        %3550 = vadd.xlane.f32.xlu0 %v3549
        %v3551 = vpop.xlane.xlu0 %3550
        %v3552 = vadd.f32 %v3043, %v3045
        %3553 = vadd.xlane.f32.xlu0 %v3552
        %v3554 = vpop.xlane.xlu0 %3553
        %v3555 = vadd.f32 %v3047, %v3049
        %3556 = vadd.xlane.f32.xlu0 %v3555
        %v3557 = vpop.xlane.xlu0 %3556
        %v3558 = vadd.f32 %v3051, %v3053
        %3559 = vadd.xlane.f32.xlu0 %v3558
        %v3560 = vpop.xlane.xlu0 %3559
        %v3561 = vadd.f32 %v3055, %v3057
        %3562 = vadd.xlane.f32.xlu0 %v3561
        %v3563 = vpop.xlane.xlu0 %3562
        %v3564 = vadd.f32 %v3059, %v3061
        %3565 = vadd.xlane.f32.xlu0 %v3564
        %v3566 = vpop.xlane.xlu0 %3565
        %v3567 = vadd.f32 %v3063, %v3065
        %3568 = vadd.xlane.f32.xlu0 %v3567
        %v3569 = vpop.xlane.xlu0 %3568
        %v3570 = vadd.f32 %v3067, %v3069
        %3571 = vadd.xlane.f32.xlu0 %v3570
        %v3572 = vpop.xlane.xlu0 %3571
        %v3573 = vadd.f32 %v3071, %v3073
        %3574 = vadd.xlane.f32.xlu0 %v3573
        %v3575 = vpop.xlane.xlu0 %3574
        %v3576 = vadd.f32 %v3075, %v3077
        %3577 = vadd.xlane.f32.xlu0 %v3576
        %v3578 = vpop.xlane.xlu0 %3577
        %v3579 = vadd.f32 %v3079, %v3081
        %3580 = vadd.xlane.f32.xlu0 %v3579
        %v3581 = vpop.xlane.xlu0 %3580
        %v3582 = vadd.f32 %v3083, %v3085
        %3583 = vadd.xlane.f32.xlu0 %v3582
        %v3584 = vpop.xlane.xlu0 %3583
        %v3585 = vadd.f32 %v3087, %v3089
        %3586 = vadd.xlane.f32.xlu0 %v3585
        %v3587 = vpop.xlane.xlu0 %3586
        %v3588 = vadd.f32 %v3091, %v3093
        %3589 = vadd.xlane.f32.xlu0 %v3588
        %v3590 = vpop.xlane.xlu0 %3589
        %v3591 = vadd.f32 %v3095, %v3097
        %3592 = vadd.xlane.f32.xlu0 %v3591
        %v3593 = vpop.xlane.xlu0 %3592
        %v3594 = vadd.f32 %v3099, %v3101
        %3595 = vadd.xlane.f32.xlu0 %v3594
        %v3596 = vpop.xlane.xlu0 %3595
        %v3597 = vadd.f32 %v3103, %v3105
        %3598 = vadd.xlane.f32.xlu0 %v3597
        %v3599 = vpop.xlane.xlu0 %3598
        %v3600 = vadd.f32 %v3107, %v3109
        %3601 = vadd.xlane.f32.xlu0 %v3600
        %v3602 = vpop.xlane.xlu0 %3601
        %v3603 = vadd.f32 %v3111, %v3113
        %3604 = vadd.xlane.f32.xlu0 %v3603
        %v3605 = vpop.xlane.xlu0 %3604
        %v3606 = vadd.f32 %v3115, %v3117
        %3607 = vadd.xlane.f32.xlu0 %v3606
        %v3608 = vpop.xlane.xlu0 %3607
        %v3609 = vadd.f32 %v3119, %v3121
        %3610 = vadd.xlane.f32.xlu0 %v3609
        %v3611 = vpop.xlane.xlu0 %3610
        %v3612 = vadd.f32 %v3123, %v3125
        %3613 = vadd.xlane.f32.xlu0 %v3612
        %v3614 = vpop.xlane.xlu0 %3613
        %v3615 = vadd.f32 %v3127, %v3129
        %3616 = vadd.xlane.f32.xlu0 %v3615
        %v3617 = vpop.xlane.xlu0 %3616
        %v3618 = vadd.f32 %v3131, %v3133
        %3619 = vadd.xlane.f32.xlu0 %v3618
        %v3620 = vpop.xlane.xlu0 %3619
        %v3621 = vadd.f32 %v3135, %v3137
        %3622 = vadd.xlane.f32.xlu0 %v3621
        %v3623 = vpop.xlane.xlu0 %3622
        %v3624 = vadd.f32 %v3139, %v3141
        %3625 = vadd.xlane.f32.xlu0 %v3624
        %v3626 = vpop.xlane.xlu0 %3625
        %v3627 = vadd.f32 %v3143, %v3145
        %3628 = vadd.xlane.f32.xlu0 %v3627
        %v3629 = vpop.xlane.xlu0 %3628
        %v3630 = vadd.f32 %v3147, %v3149
        %3631 = vadd.xlane.f32.xlu0 %v3630
        %v3632 = vpop.xlane.xlu0 %3631
        %v3633 = vadd.f32 %v3151, %v3153
        %3634 = vadd.xlane.f32.xlu0 %v3633
        %v3635 = vpop.xlane.xlu0 %3634
        %v3636 = vadd.f32 %v3155, %v3157
        %3637 = vadd.xlane.f32.xlu0 %v3636
        %v3638 = vpop.xlane.xlu0 %3637
        %v3639 = vadd.f32 %v3159, %v3161
        %3640 = vadd.xlane.f32.xlu0 %v3639
        %v3641 = vpop.xlane.xlu0 %3640
        %v3642 = vadd.f32 %v3163, %v3165
        %3643 = vadd.xlane.f32.xlu0 %v3642
        %v3644 = vpop.xlane.xlu0 %3643
        %v3645 = vadd.f32 %v3167, %v3169
        %3646 = vadd.xlane.f32.xlu0 %v3645
        %v3647 = vpop.xlane.xlu0 %3646
        %v3648 = vadd.f32 %v3171, %v3173
        %3649 = vadd.xlane.f32.xlu0 %v3648
        %v3650 = vpop.xlane.xlu0 %3649
        %v3651 = vadd.f32 %v3175, %v3177
        %3652 = vadd.xlane.f32.xlu0 %v3651
        %v3653 = vpop.xlane.xlu0 %3652
        %v3654 = vadd.f32 %v3179, %v3181
        %3655 = vadd.xlane.f32.xlu0 %v3654
        %v3656 = vpop.xlane.xlu0 %3655
        %v3657 = vadd.f32 %v3183, %v3185
        %3658 = vadd.xlane.f32.xlu0 %v3657
        %v3659 = vpop.xlane.xlu0 %3658
        %v3660 = vadd.f32 %v3187, %v3189
        %3661 = vadd.xlane.f32.xlu0 %v3660
        %v3662 = vpop.xlane.xlu0 %3661
        %v3663 = vadd.f32 %v3191, %v3193
        %3664 = vadd.xlane.f32.xlu0 %v3663
        %v3665 = vpop.xlane.xlu0 %3664
        %v3666 = vadd.f32 %v3195, %v3197
        %3667 = vadd.xlane.f32.xlu0 %v3666
        %v3668 = vpop.xlane.xlu0 %3667
        %v3669 = vadd.f32 %v3199, %v3201
        %3670 = vadd.xlane.f32.xlu0 %v3669
        %v3671 = vpop.xlane.xlu0 %3670
        %v3672 = vadd.f32 %v3203, %v3205
        %3673 = vadd.xlane.f32.xlu0 %v3672
        %v3674 = vpop.xlane.xlu0 %3673
        %v3675 = vadd.f32 %v3207, %v3209
        %3676 = vadd.xlane.f32.xlu0 %v3675
        %v3677 = vpop.xlane.xlu0 %3676
        %v3678 = vadd.f32 %v3211, %v3213
        %3679 = vadd.xlane.f32.xlu0 %v3678
        %v3680 = vpop.xlane.xlu0 %3679
        %v3681 = vadd.f32 %v3215, %v3217
        %3682 = vadd.xlane.f32.xlu0 %v3681
        %v3683 = vpop.xlane.xlu0 %3682
        %v3684 = vadd.f32 %v3219, %v3221
        %3685 = vadd.xlane.f32.xlu0 %v3684
        %v3686 = vpop.xlane.xlu0 %3685
        %v3687 = vadd.f32 %v3223, %v3225
        %3688 = vadd.xlane.f32.xlu0 %v3687
        %v3689 = vpop.xlane.xlu0 %3688
        %v3690 = vadd.f32 %v3227, %v3229
        %3691 = vadd.xlane.f32.xlu0 %v3690
        %v3692 = vpop.xlane.xlu0 %3691
        %v3693 = vadd.f32 %v3231, %v3233
        %3694 = vadd.xlane.f32.xlu0 %v3693
        %v3695 = vpop.xlane.xlu0 %3694
        %v3696 = vadd.f32 %v3235, %v3237
        %3697 = vadd.xlane.f32.xlu0 %v3696
        %v3698 = vpop.xlane.xlu0 %3697
        %v3699 = vadd.f32 %v3239, %v3241
        %3700 = vadd.xlane.f32.xlu0 %v3699
        %v3701 = vpop.xlane.xlu0 %3700
        %v3702 = vadd.f32 %v3243, %v3245
        %3703 = vadd.xlane.f32.xlu0 %v3702
        %v3704 = vpop.xlane.xlu0 %3703
        %v3705 = vadd.f32 %v3247, %v3249
        %3706 = vadd.xlane.f32.xlu0 %v3705
        %v3707 = vpop.xlane.xlu0 %3706
        %v3708 = vadd.f32 %v3251, %v3253
        %3709 = vadd.xlane.f32.xlu0 %v3708
        %v3710 = vpop.xlane.xlu0 %3709
        %v3711 = vadd.f32 %v3255, %v3257
        %3712 = vadd.xlane.f32.xlu0 %v3711
        %v3713 = vpop.xlane.xlu0 %3712
        %v3714 = vadd.f32 %v3259, %v3261
        %3715 = vadd.xlane.f32.xlu0 %v3714
        %v3716 = vpop.xlane.xlu0 %3715
        %v3717 = vadd.f32 %v3263, %v3265
        %3718 = vadd.xlane.f32.xlu0 %v3717
        %v3719 = vpop.xlane.xlu0 %3718
        %v3720 = vadd.f32 %v3267, %v3269
        %3721 = vadd.xlane.f32.xlu0 %v3720
        %v3722 = vpop.xlane.xlu0 %3721
        %v3723 = vadd.f32 %v3271, %v3273
        %3724 = vadd.xlane.f32.xlu0 %v3723
        %v3725 = vpop.xlane.xlu0 %3724
        %v3726 = vadd.f32 %v3275, %v3277
        %3727 = vadd.xlane.f32.xlu0 %v3726
        %v3728 = vpop.xlane.xlu0 %3727
        %v3729 = vadd.f32 %v3279, %v3281
        %3730 = vadd.xlane.f32.xlu0 %v3729
        %v3731 = vpop.xlane.xlu0 %3730
        %v3732 = vadd.f32 %v3283, %v3285
        %3733 = vadd.xlane.f32.xlu0 %v3732
        %v3734 = vpop.xlane.xlu0 %3733
        %v3735 = vadd.f32 %v3287, %v3289
        %3736 = vadd.xlane.f32.xlu0 %v3735
        %v3737 = vpop.xlane.xlu0 %3736
        %v3738 = vadd.f32 %v3291, %v3293
        %3739 = vadd.xlane.f32.xlu0 %v3738
        %v3740 = vpop.xlane.xlu0 %3739
        %v3741 = vadd.f32 %v3295, %v3297
        %3742 = vadd.xlane.f32.xlu0 %v3741
        %v3743 = vpop.xlane.xlu0 %3742
        %v3744 = vadd.f32 %v3299, %v3301
        %3745 = vadd.xlane.f32.xlu0 %v3744
        %v3746 = vpop.xlane.xlu0 %3745
        %v3747 = vadd.f32 %v3303, %v3305
        %3748 = vadd.xlane.f32.xlu0 %v3747
        %v3749 = vpop.xlane.xlu0 %3748
        %v3750 = vadd.f32 %v3307, %v3309
        %3751 = vadd.xlane.f32.xlu0 %v3750
        %v3752 = vpop.xlane.xlu0 %3751
        %v3753 = vadd.f32 %v3311, %v3313
        %3754 = vadd.xlane.f32.xlu0 %v3753
        %v3755 = vpop.xlane.xlu0 %3754
        %v3756 = vadd.f32 %v3315, %v3317
        %3757 = vadd.xlane.f32.xlu0 %v3756
        %v3758 = vpop.xlane.xlu0 %3757
        %v3759 = vadd.f32 %v3319, %v3321
        %3760 = vadd.xlane.f32.xlu0 %v3759
        %v3761 = vpop.xlane.xlu0 %3760
        %v3762 = vadd.f32 %v3323, %v3325
        %3763 = vadd.xlane.f32.xlu0 %v3762
        %v3764 = vpop.xlane.xlu0 %3763
        %v3765 = vadd.f32 %v3327, %v3329
        %3766 = vadd.xlane.f32.xlu0 %v3765
        %v3767 = vpop.xlane.xlu0 %3766
        %v3768 = vadd.f32 %v3331, %v3333
        %3769 = vadd.xlane.f32.xlu0 %v3768
        %v3770 = vpop.xlane.xlu0 %3769
        %v3771 = vadd.f32 %v3335, %v3337
        %3772 = vadd.xlane.f32.xlu0 %v3771
        %v3773 = vpop.xlane.xlu0 %3772
        %v3774 = vadd.f32 %v3339, %v3341
        %3775 = vadd.xlane.f32.xlu0 %v3774
        %v3776 = vpop.xlane.xlu0 %3775
        %v3777 = vadd.f32 %v3343, %v3345
        %3778 = vadd.xlane.f32.xlu0 %v3777
        %v3779 = vpop.xlane.xlu0 %3778
        %v3780 = vadd.f32 %v3347, %v3349
        %3781 = vadd.xlane.f32.xlu0 %v3780
        %v3782 = vpop.xlane.xlu0 %3781
        %v3783 = vadd.f32 %v3351, %v3353
        %3784 = vadd.xlane.f32.xlu0 %v3783
        %v3785 = vpop.xlane.xlu0 %3784
        %v3786 = vadd.f32 %v3355, %v3357
        %3787 = vadd.xlane.f32.xlu0 %v3786
        %v3788 = vpop.xlane.xlu0 %3787
        %v3789 = vadd.f32 %v3359, %v3361
        %3790 = vadd.xlane.f32.xlu0 %v3789
        %v3791 = vpop.xlane.xlu0 %3790
        %v3792 = vadd.f32 %v3363, %v3365
        %3793 = vadd.xlane.f32.xlu0 %v3792
        %v3794 = vpop.xlane.xlu0 %3793
        %v3795 = vadd.f32 %v3367, %v3369
        %3796 = vadd.xlane.f32.xlu0 %v3795
        %v3797 = vpop.xlane.xlu0 %3796
        %v3798 = vadd.f32 %v3371, %v3373
        %3799 = vadd.xlane.f32.xlu0 %v3798
        %v3800 = vpop.xlane.xlu0 %3799
        %v3801 = vadd.f32 %v3375, %v3377
        %3802 = vadd.xlane.f32.xlu0 %v3801
        %v3803 = vpop.xlane.xlu0 %3802
        %v3804 = vadd.f32 %v3379, %v3381
        %3805 = vadd.xlane.f32.xlu0 %v3804
        %v3806 = vpop.xlane.xlu0 %3805
        %v3807 = vadd.f32 %v3383, %v3385
        %3808 = vadd.xlane.f32.xlu0 %v3807
        %v3809 = vpop.xlane.xlu0 %3808
        %v3810 = vadd.f32 %v3387, %v3389
        %3811 = vadd.xlane.f32.xlu0 %v3810
        %v3812 = vpop.xlane.xlu0 %3811
        %v3813 = vadd.f32 %v3391, %v3393
        %3814 = vadd.xlane.f32.xlu0 %v3813
        %v3815 = vpop.xlane.xlu0 %3814
        %v3816 = vadd.f32 %v3395, %v3397
        %3817 = vadd.xlane.f32.xlu0 %v3816
        %v3818 = vpop.xlane.xlu0 %3817
        %v3819 = vadd.f32 %v3399, %v3401
        %3820 = vadd.xlane.f32.xlu0 %v3819
        %v3821 = vpop.xlane.xlu0 %3820
        %v3822 = vadd.f32 %v3403, %v3405
        %3823 = vadd.xlane.f32.xlu0 %v3822
        %v3824 = vpop.xlane.xlu0 %3823
        %v3825 = vadd.f32 %v3407, %v3409
        %3826 = vadd.xlane.f32.xlu0 %v3825
        %v3827 = vpop.xlane.xlu0 %3826
        %v3828 = vadd.f32 %v3411, %v3413
        %3829 = vadd.xlane.f32.xlu0 %v3828
        %v3830 = vpop.xlane.xlu0 %3829
        %v3831 = vadd.f32 %v3415, %v3417
        %3832 = vadd.xlane.f32.xlu0 %v3831
        %v3833 = vpop.xlane.xlu0 %3832
        %v3834 = vadd.f32 %v3419, %v3421
        %3835 = vadd.xlane.f32.xlu0 %v3834
        %v3836 = vpop.xlane.xlu0 %3835
        %v3837 = vadd.f32 %v3423, %v3425
        %3838 = vadd.xlane.f32.xlu0 %v3837
        %v3839 = vpop.xlane.xlu0 %3838
        %v3840 = vadd.f32 %v3427, %v3429
        %3841 = vadd.xlane.f32.xlu0 %v3840
        %v3842 = vpop.xlane.xlu0 %3841
        %v3843 = vadd.f32 %v3431, %v3433
        %3844 = vadd.xlane.f32.xlu0 %v3843
        %v3845 = vpop.xlane.xlu0 %3844
        %v3846 = vadd.f32 %v3435, %v3437
        %3847 = vadd.xlane.f32.xlu0 %v3846
        %v3848 = vpop.xlane.xlu0 %3847
        %v3849 = vadd.f32 %v3439, %v3441
        %3850 = vadd.xlane.f32.xlu0 %v3849
        %v3851 = vpop.xlane.xlu0 %3850
        %v3852 = vadd.f32 %v3443, %v3445
        %3853 = vadd.xlane.f32.xlu0 %v3852
        %v3854 = vpop.xlane.xlu0 %3853
        %v3855 = vadd.f32 %v3447, %v3449
        %3856 = vadd.xlane.f32.xlu0 %v3855
        %v3857 = vpop.xlane.xlu0 %3856
        %v3858 = vadd.f32 %v3451, %v3453
        %3859 = vadd.xlane.f32.xlu0 %v3858
        %v3860 = vpop.xlane.xlu0 %3859
        %v3861 = vadd.f32 %v3455, %v3457
        %3862 = vadd.xlane.f32.xlu0 %v3861
        %v3863 = vpop.xlane.xlu0 %3862
        %v3864 = vadd.f32 %v3459, %v3461
        %3865 = vadd.xlane.f32.xlu0 %v3864
        %v3866 = vpop.xlane.xlu0 %3865
        %v3867 = vadd.f32 %v3463, %v3465
        %3868 = vadd.xlane.f32.xlu0 %v3867
        %v3869 = vpop.xlane.xlu0 %3868
        %v3870 = vadd.f32 %v3467, %v3469
        %3871 = vadd.xlane.f32.xlu0 %v3870
        %v3872 = vpop.xlane.xlu0 %3871
        %v3873 = vadd.f32 %v3471, %v3473
        %3874 = vadd.xlane.f32.xlu0 %v3873
        %v3875 = vpop.xlane.xlu0 %3874
        %v3876 = vadd.f32 %v3475, %v3477
        %3877 = vadd.xlane.f32.xlu0 %v3876
        %v3878 = vpop.xlane.xlu0 %3877
        %v3879 = vadd.f32 %v3479, %v3481
        %3880 = vadd.xlane.f32.xlu0 %v3879
        %v3881 = vpop.xlane.xlu0 %3880
        %v3882 = vadd.f32 %v3483, %v3485
        %3883 = vadd.xlane.f32.xlu0 %v3882
        %v3884 = vpop.xlane.xlu0 %3883
        %v3885 = vadd.f32 %v3487, %v3489
        %3886 = vadd.xlane.f32.xlu0 %v3885
        %v3887 = vpop.xlane.xlu0 %3886
        %v3888 = vadd.f32 %v3491, %v3493
        %3889 = vadd.xlane.f32.xlu0 %v3888
        %v3890 = vpop.xlane.xlu0 %3889
        %v3891 = vadd.f32 %v3495, %v3497
        %3892 = vadd.xlane.f32.xlu0 %v3891
        %v3893 = vpop.xlane.xlu0 %3892
        %v3894 = vadd.f32 %v3499, %v3501
        %3895 = vadd.xlane.f32.xlu0 %v3894
        %v3896 = vpop.xlane.xlu0 %3895
        %v3897 = vadd.f32 %v3503, %v3505
        %3898 = vadd.xlane.f32.xlu0 %v3897
        %v3899 = vpop.xlane.xlu0 %3898
        %v3900 = vadd.f32 %v3507, %v3509
        %3901 = vadd.xlane.f32.xlu0 %v3900
        %v3902 = vpop.xlane.xlu0 %3901
        %v3903 = vadd.f32 %v3511, %v3513
        %3904 = vadd.xlane.f32.xlu0 %v3903
        %v3905 = vpop.xlane.xlu0 %3904
        %v3906 = vadd.f32 %v3515, %v3517
        %3907 = vadd.xlane.f32.xlu0 %v3906
        %v3908 = vpop.xlane.xlu0 %3907
        %v3909 = vadd.f32 %v3519, %v3521
        %3910 = vadd.xlane.f32.xlu0 %v3909
        %v3911 = vpop.xlane.xlu0 %3910
        %v3912 = vadd.f32 %v3523, %v3525
        %3913 = vadd.xlane.f32.xlu0 %v3912
        %v3914 = vpop.xlane.xlu0 %3913
        %v3915 = vadd.f32 %v3527, %v3529
        %3916 = vadd.xlane.f32.xlu0 %v3915
        %v3917 = vpop.xlane.xlu0 %3916
        %v3918 = vadd.f32 %v3531, %v3533
        %3919 = vadd.xlane.f32.xlu0 %v3918
        %v3920 = vpop.xlane.xlu0 %3919
        %v3921 = vadd.f32 %v3535, %v3537
        %3922 = vadd.xlane.f32.xlu0 %v3921
        %v3923 = vpop.xlane.xlu0 %3922
        %v3924 = vadd.f32 %v3539, %v3541
        %3925 = vadd.xlane.f32.xlu0 %v3924
        %v3926 = vpop.xlane.xlu0 %3925
        %v3927 = vadd.f32 %v3543, %v3545
        %3928 = vadd.xlane.f32.xlu0 %v3927
        %v3929 = vpop.xlane.xlu0 %3928
        %v3930 = vpack.c.bf16 %v3039, %v3035
        %v3931 = vpack.c.bf16 %v3041, %v3037
        %v3932 = vpack.c.bf16 %v3047, %v3043
        %v3933 = vpack.c.bf16 %v3049, %v3045
        %v3934 = vpack.c.bf16 %v3055, %v3051
        %v3935 = vpack.c.bf16 %v3057, %v3053
        %v3936 = vpack.c.bf16 %v3063, %v3059
        %v3937 = vpack.c.bf16 %v3065, %v3061
        %v3938 = vpack.c.bf16 %v3071, %v3067
        %v3939 = vpack.c.bf16 %v3073, %v3069
        %v3940 = vpack.c.bf16 %v3079, %v3075
        %v3941 = vpack.c.bf16 %v3081, %v3077
        %v3942 = vpack.c.bf16 %v3087, %v3083
        %v3943 = vpack.c.bf16 %v3089, %v3085
        %v3944 = vpack.c.bf16 %v3095, %v3091
        %v3945 = vpack.c.bf16 %v3097, %v3093
        %v3946 = vpack.c.bf16 %v3103, %v3099
        %v3947 = vpack.c.bf16 %v3105, %v3101
        %v3948 = vpack.c.bf16 %v3111, %v3107
        %v3949 = vpack.c.bf16 %v3113, %v3109
        %v3950 = vpack.c.bf16 %v3119, %v3115
        %v3951 = vpack.c.bf16 %v3121, %v3117
        %v3952 = vpack.c.bf16 %v3127, %v3123
        %v3953 = vpack.c.bf16 %v3129, %v3125
        %v3954 = vpack.c.bf16 %v3135, %v3131
        %v3955 = vpack.c.bf16 %v3137, %v3133
        %v3956 = vpack.c.bf16 %v3143, %v3139
        %v3957 = vpack.c.bf16 %v3145, %v3141
        %v3958 = vpack.c.bf16 %v3151, %v3147
        %v3959 = vpack.c.bf16 %v3153, %v3149
        %v3960 = vpack.c.bf16 %v3159, %v3155
        %v3961 = vpack.c.bf16 %v3161, %v3157
        %v3962 = vpack.c.bf16 %v3167, %v3163
        %v3963 = vpack.c.bf16 %v3169, %v3165
        %v3964 = vpack.c.bf16 %v3175, %v3171
        %v3965 = vpack.c.bf16 %v3177, %v3173
        %v3966 = vpack.c.bf16 %v3183, %v3179
        %v3967 = vpack.c.bf16 %v3185, %v3181
        %v3968 = vpack.c.bf16 %v3191, %v3187
        %v3969 = vpack.c.bf16 %v3193, %v3189
        %v3970 = vpack.c.bf16 %v3199, %v3195
        %v3971 = vpack.c.bf16 %v3201, %v3197
        %v3972 = vpack.c.bf16 %v3207, %v3203
        %v3973 = vpack.c.bf16 %v3209, %v3205
        %v3974 = vpack.c.bf16 %v3215, %v3211
        %v3975 = vpack.c.bf16 %v3217, %v3213
        %v3976 = vpack.c.bf16 %v3223, %v3219
        %v3977 = vpack.c.bf16 %v3225, %v3221
        %v3978 = vpack.c.bf16 %v3231, %v3227
        %v3979 = vpack.c.bf16 %v3233, %v3229
        %v3980 = vpack.c.bf16 %v3239, %v3235
        %v3981 = vpack.c.bf16 %v3241, %v3237
        %v3982 = vpack.c.bf16 %v3247, %v3243
        %v3983 = vpack.c.bf16 %v3249, %v3245
        %v3984 = vpack.c.bf16 %v3255, %v3251
        %v3985 = vpack.c.bf16 %v3257, %v3253
        %v3986 = vpack.c.bf16 %v3263, %v3259
        %v3987 = vpack.c.bf16 %v3265, %v3261
        %v3988 = vpack.c.bf16 %v3271, %v3267
        %v3989 = vpack.c.bf16 %v3273, %v3269
        %v3990 = vpack.c.bf16 %v3279, %v3275
        %v3991 = vpack.c.bf16 %v3281, %v3277
        %v3992 = vpack.c.bf16 %v3287, %v3283
        %v3993 = vpack.c.bf16 %v3289, %v3285
        %v3994 = vpack.c.bf16 %v3295, %v3291
        %v3995 = vpack.c.bf16 %v3297, %v3293
        %v3996 = vpack.c.bf16 %v3303, %v3299
        %v3997 = vpack.c.bf16 %v3305, %v3301
        %v3998 = vpack.c.bf16 %v3311, %v3307
        %v3999 = vpack.c.bf16 %v3313, %v3309
        %v4000 = vpack.c.bf16 %v3319, %v3315
        %v4001 = vpack.c.bf16 %v3321, %v3317
        %v4002 = vpack.c.bf16 %v3327, %v3323
        %v4003 = vpack.c.bf16 %v3329, %v3325
        %v4004 = vpack.c.bf16 %v3335, %v3331
        %v4005 = vpack.c.bf16 %v3337, %v3333
        %v4006 = vpack.c.bf16 %v3343, %v3339
        %v4007 = vpack.c.bf16 %v3345, %v3341
        %v4008 = vpack.c.bf16 %v3351, %v3347
        %v4009 = vpack.c.bf16 %v3353, %v3349
        %v4010 = vpack.c.bf16 %v3359, %v3355
        %v4011 = vpack.c.bf16 %v3361, %v3357
        %v4012 = vpack.c.bf16 %v3367, %v3363
        %v4013 = vpack.c.bf16 %v3369, %v3365
        %v4014 = vpack.c.bf16 %v3375, %v3371
        %v4015 = vpack.c.bf16 %v3377, %v3373
        %v4016 = vpack.c.bf16 %v3383, %v3379
        %v4017 = vpack.c.bf16 %v3385, %v3381
        %v4018 = vpack.c.bf16 %v3391, %v3387
        %v4019 = vpack.c.bf16 %v3393, %v3389
        %v4020 = vpack.c.bf16 %v3399, %v3395
        %v4021 = vpack.c.bf16 %v3401, %v3397
        %v4022 = vpack.c.bf16 %v3407, %v3403
        %v4023 = vpack.c.bf16 %v3409, %v3405
        %v4024 = vpack.c.bf16 %v3415, %v3411
        %v4025 = vpack.c.bf16 %v3417, %v3413
        %v4026 = vpack.c.bf16 %v3423, %v3419
        %v4027 = vpack.c.bf16 %v3425, %v3421
        %v4028 = vpack.c.bf16 %v3431, %v3427
        %v4029 = vpack.c.bf16 %v3433, %v3429
        %v4030 = vpack.c.bf16 %v3439, %v3435
        %v4031 = vpack.c.bf16 %v3441, %v3437
        %v4032 = vpack.c.bf16 %v3447, %v3443
        %v4033 = vpack.c.bf16 %v3449, %v3445
        %v4034 = vpack.c.bf16 %v3455, %v3451
        %v4035 = vpack.c.bf16 %v3457, %v3453
        %v4036 = vpack.c.bf16 %v3463, %v3459
        %v4037 = vpack.c.bf16 %v3465, %v3461
        %v4038 = vpack.c.bf16 %v3471, %v3467
        %v4039 = vpack.c.bf16 %v3473, %v3469
        %v4040 = vpack.c.bf16 %v3479, %v3475
        %v4041 = vpack.c.bf16 %v3481, %v3477
        %v4042 = vpack.c.bf16 %v3487, %v3483
        %v4043 = vpack.c.bf16 %v3489, %v3485
        %v4044 = vpack.c.bf16 %v3495, %v3491
        %v4045 = vpack.c.bf16 %v3497, %v3493
        %v4046 = vpack.c.bf16 %v3503, %v3499
        %v4047 = vpack.c.bf16 %v3505, %v3501
        %v4048 = vpack.c.bf16 %v3511, %v3507
        %v4049 = vpack.c.bf16 %v3513, %v3509
        %v4050 = vpack.c.bf16 %v3519, %v3515
        %v4051 = vpack.c.bf16 %v3521, %v3517
        %v4052 = vpack.c.bf16 %v3527, %v3523
        %v4053 = vpack.c.bf16 %v3529, %v3525
        %v4054 = vpack.c.bf16 %v3535, %v3531
        %v4055 = vpack.c.bf16 %v3537, %v3533
        %v4056 = vpack.c.bf16 %v3543, %v3539
        %v4057 = vpack.c.bf16 %v3545, %v3541
        %4058 = vmatprep.subr.bf16.mxu0 %v3945
        %4059 = vmatpush1.bf16.xpose.msra.mxu0 %v3944
        %4060 = vmatprep.subr.bf16.mxu0 %v3943
        %4061 = vmatpush1.bf16.xpose.msra.mxu0 %v3942
        %4062 = vmatprep.subr.bf16.mxu0 %v3941
        %4063 = vmatpush1.bf16.xpose.msra.mxu0 %v3940
        %4064 = vmatprep.subr.bf16.mxu0 %v3939
        %4065 = vmatpush1.bf16.xpose.msra.mxu0 %v3938
        %4066 = vmatprep.subr.bf16.mxu0 %v3937
        %4067 = vmatpush1.bf16.xpose.msra.mxu0 %v3936
        %4068 = vmatprep.subr.bf16.mxu0 %v3935
        %4069 = vmatpush1.bf16.xpose.msra.mxu0 %v3934
        %4070 = vmatprep.subr.bf16.mxu0 %v3933
        %4071 = vmatpush1.bf16.xpose.msra.mxu0 %v3932
        %4072 = vmatprep.subr.bf16.mxu0 %v3931
        %4073 = vmatpush1.bf16.xpose.msra.mxu0 %v3930
        %4074 = vmatprep.subr.bf16.mxu0 %v3961
        %4075 = vmatpush2.bf16.xpose.msra.mxu0 %v3960
        %4076 = vmatprep.subr.bf16.mxu0 %v3959
        %4077 = vmatpush2.bf16.xpose.msra.mxu0 %v3958
        %4078 = vmatprep.subr.bf16.mxu0 %v3957
        %4079 = vmatpush2.bf16.xpose.msra.mxu0 %v3956
        %4080 = vmatprep.subr.bf16.mxu0 %v3955
        %4081 = vmatpush2.bf16.xpose.msra.mxu0 %v3954
        %4082 = vmatprep.subr.bf16.mxu0 %v3953
        %4083 = vmatpush2.bf16.xpose.msra.mxu0 %v3952
        %4084 = vmatprep.subr.bf16.mxu0 %v3951
        %4085 = vmatpush2.bf16.xpose.msra.mxu0 %v3950
        %4086 = vmatprep.subr.bf16.mxu0 %v3949
        %4087 = vmatpush2.bf16.xpose.msra.mxu0 %v3948
        %4088 = vmatprep.subr.bf16.mxu0 %v3947
        %4089 = vmatpush2.bf16.xpose.msra.mxu0 %v3946
        %4090 = vmatprep.mubr.bf16.mxu0 %v1294
        %4091 = vmatmul.mubr.bf16.gmra.mxu0 %v1293
        %v4092 = vpop.f32.mrf.mxu0
        %v4093 = vadd.f32 0.0, %v4092
        %v4094 = vpop.f32.mrf.mxu0
        %v4095 = vadd.f32 0.0, %v4094
        %v4096 = vpop.f32.mrf.mxu0
        %v4097 = vadd.f32 0.0, %v4096
        %v4098 = vpop.f32.mrf.mxu0
        %v4099 = vadd.f32 0.0, %v4098
        %4100 = vdwg.mxu0
        %4101 = vmatprep.subr.bf16.mxu0 %v3977
        %4102 = vmatpush1.bf16.xpose.msra.mxu0 %v3976
        %4103 = vmatprep.subr.bf16.mxu0 %v3975
        %4104 = vmatpush1.bf16.xpose.msra.mxu0 %v3974
        %4105 = vmatprep.subr.bf16.mxu0 %v3973
        %4106 = vmatpush1.bf16.xpose.msra.mxu0 %v3972
        %4107 = vmatprep.subr.bf16.mxu0 %v3971
        %4108 = vmatpush1.bf16.xpose.msra.mxu0 %v3970
        %4109 = vmatprep.subr.bf16.mxu0 %v3969
        %4110 = vmatpush1.bf16.xpose.msra.mxu0 %v3968
        %4111 = vmatprep.subr.bf16.mxu0 %v3967
        %4112 = vmatpush1.bf16.xpose.msra.mxu0 %v3966
        %4113 = vmatprep.subr.bf16.mxu0 %v3965
        %4114 = vmatpush1.bf16.xpose.msra.mxu0 %v3964
        %4115 = vmatprep.subr.bf16.mxu0 %v3963
        %4116 = vmatpush1.bf16.xpose.msra.mxu0 %v3962
        %4117 = vmatprep.subr.bf16.mxu0 %v3993
        %4118 = vmatpush2.bf16.xpose.msra.mxu0 %v3992
        %4119 = vmatprep.subr.bf16.mxu0 %v3991
        %4120 = vmatpush2.bf16.xpose.msra.mxu0 %v3990
        %4121 = vmatprep.subr.bf16.mxu0 %v3989
        %4122 = vmatpush2.bf16.xpose.msra.mxu0 %v3988
        %4123 = vmatprep.subr.bf16.mxu0 %v3987
        %4124 = vmatpush2.bf16.xpose.msra.mxu0 %v3986
        %4125 = vmatprep.subr.bf16.mxu0 %v3985
        %4126 = vmatpush2.bf16.xpose.msra.mxu0 %v3984
        %4127 = vmatprep.subr.bf16.mxu0 %v3983
        %4128 = vmatpush2.bf16.xpose.msra.mxu0 %v3982
        %4129 = vmatprep.subr.bf16.mxu0 %v3981
        %4130 = vmatpush2.bf16.xpose.msra.mxu0 %v3980
        %4131 = vmatprep.subr.bf16.mxu0 %v3979
        %4132 = vmatpush2.bf16.xpose.msra.mxu0 %v3978
        %4133 = vmatprep.mubr.bf16.mxu0 %v1296
        %4134 = vmatmul.mubr.bf16.gmra.mxu0 %v1295
        %v4135 = vpop.f32.mrf.mxu0
        %v4136 = vadd.f32 0.0, %v4135
        %v4137 = vpop.f32.mrf.mxu0
        %v4138 = vadd.f32 0.0, %v4137
        %v4139 = vpop.f32.mrf.mxu0
        %v4140 = vadd.f32 0.0, %v4139
        %v4141 = vpop.f32.mrf.mxu0
        %v4142 = vadd.f32 0.0, %v4141
        %4143 = vdwg.mxu0
        %4144 = vmatprep.subr.bf16.mxu0 %v4009
        %4145 = vmatpush1.bf16.xpose.msra.mxu0 %v4008
        %4146 = vmatprep.subr.bf16.mxu0 %v4007
        %4147 = vmatpush1.bf16.xpose.msra.mxu0 %v4006
        %4148 = vmatprep.subr.bf16.mxu0 %v4005
        %4149 = vmatpush1.bf16.xpose.msra.mxu0 %v4004
        %4150 = vmatprep.subr.bf16.mxu0 %v4003
        %4151 = vmatpush1.bf16.xpose.msra.mxu0 %v4002
        %4152 = vmatprep.subr.bf16.mxu0 %v4001
        %4153 = vmatpush1.bf16.xpose.msra.mxu0 %v4000
        %4154 = vmatprep.subr.bf16.mxu0 %v3999
        %4155 = vmatpush1.bf16.xpose.msra.mxu0 %v3998
        %4156 = vmatprep.subr.bf16.mxu0 %v3997
        %4157 = vmatpush1.bf16.xpose.msra.mxu0 %v3996
        %4158 = vmatprep.subr.bf16.mxu0 %v3995
        %4159 = vmatpush1.bf16.xpose.msra.mxu0 %v3994
        %4160 = vmatprep.subr.bf16.mxu0 %v4025
        %4161 = vmatpush2.bf16.xpose.msra.mxu0 %v4024
        %4162 = vmatprep.subr.bf16.mxu0 %v4023
        %4163 = vmatpush2.bf16.xpose.msra.mxu0 %v4022
        %4164 = vmatprep.subr.bf16.mxu0 %v4021
        %4165 = vmatpush2.bf16.xpose.msra.mxu0 %v4020
        %4166 = vmatprep.subr.bf16.mxu0 %v4019
        %4167 = vmatpush2.bf16.xpose.msra.mxu0 %v4018
        %4168 = vmatprep.subr.bf16.mxu0 %v4017
        %4169 = vmatpush2.bf16.xpose.msra.mxu0 %v4016
        %4170 = vmatprep.subr.bf16.mxu0 %v4015
        %4171 = vmatpush2.bf16.xpose.msra.mxu0 %v4014
        %4172 = vmatprep.subr.bf16.mxu0 %v4013
        %4173 = vmatpush2.bf16.xpose.msra.mxu0 %v4012
        %4174 = vmatprep.subr.bf16.mxu0 %v4011
        %4175 = vmatpush2.bf16.xpose.msra.mxu0 %v4010
        %4176 = vmatprep.mubr.bf16.mxu0 %v1298
        %4177 = vmatmul.mubr.bf16.gmra.mxu0 %v1297
        %v4178 = vpop.f32.mrf.mxu0
        %v4179 = vadd.f32 0.0, %v4178
        %v4180 = vpop.f32.mrf.mxu0
        %v4181 = vadd.f32 0.0, %v4180
        %v4182 = vpop.f32.mrf.mxu0
        %v4183 = vadd.f32 0.0, %v4182
        %v4184 = vpop.f32.mrf.mxu0
        %v4185 = vadd.f32 0.0, %v4184
        %4186 = vdwg.mxu0
        %4187 = vmatprep.subr.bf16.mxu0 %v4041
        %4188 = vmatpush1.bf16.xpose.msra.mxu0 %v4040
        %4189 = vmatprep.subr.bf16.mxu0 %v4039
        %4190 = vmatpush1.bf16.xpose.msra.mxu0 %v4038
        %4191 = vmatprep.subr.bf16.mxu0 %v4037
        %4192 = vmatpush1.bf16.xpose.msra.mxu0 %v4036
        %4193 = vmatprep.subr.bf16.mxu0 %v4035
        %4194 = vmatpush1.bf16.xpose.msra.mxu0 %v4034
        %4195 = vmatprep.subr.bf16.mxu0 %v4033
        %4196 = vmatpush1.bf16.xpose.msra.mxu0 %v4032
        %4197 = vmatprep.subr.bf16.mxu0 %v4031
        %4198 = vmatpush1.bf16.xpose.msra.mxu0 %v4030
        %4199 = vmatprep.subr.bf16.mxu0 %v4029
        %4200 = vmatpush1.bf16.xpose.msra.mxu0 %v4028
        %4201 = vmatprep.subr.bf16.mxu0 %v4027
        %4202 = vmatpush1.bf16.xpose.msra.mxu0 %v4026
        %4203 = vmatprep.subr.bf16.mxu0 %v4057
        %4204 = vmatpush2.bf16.xpose.msra.mxu0 %v4056
        %4205 = vmatprep.subr.bf16.mxu0 %v4055
        %4206 = vmatpush2.bf16.xpose.msra.mxu0 %v4054
        %4207 = vmatprep.subr.bf16.mxu0 %v4053
        %4208 = vmatpush2.bf16.xpose.msra.mxu0 %v4052
        %4209 = vmatprep.subr.bf16.mxu0 %v4051
        %4210 = vmatpush2.bf16.xpose.msra.mxu0 %v4050
        %4211 = vmatprep.subr.bf16.mxu0 %v4049
        %4212 = vmatpush2.bf16.xpose.msra.mxu0 %v4048
        %4213 = vmatprep.subr.bf16.mxu0 %v4047
        %4214 = vmatpush2.bf16.xpose.msra.mxu0 %v4046
        %4215 = vmatprep.subr.bf16.mxu0 %v4045
        %4216 = vmatpush2.bf16.xpose.msra.mxu0 %v4044
        %4217 = vmatprep.subr.bf16.mxu0 %v4043
        %4218 = vmatpush2.bf16.xpose.msra.mxu0 %v4042
        %4219 = vmatprep.mubr.bf16.mxu0 %v1300
        %4220 = vmatmul.mubr.bf16.gmra.mxu0 %v1299
        %v4221 = vpop.f32.mrf.mxu0
        %v4222 = vadd.f32 0.0, %v4221
        %v4223 = vpop.f32.mrf.mxu0
        %v4224 = vadd.f32 0.0, %v4223
        %v4225 = vpop.f32.mrf.mxu0
        %v4226 = vadd.f32 0.0, %v4225
        %v4227 = vpop.f32.mrf.mxu0
        %v4228 = vadd.f32 0.0, %v4227
        %4229 = vdwg.mxu0
        %v4230 = vrcp.pop %v3548
        %v4231 = vrcp.pop %v3551
        %v4232 = vrcp.pop %v3554
        %v4233 = vrcp.pop %v3557
        %v4234 = vrcp.pop %v3560
        %v4235 = vrcp.pop %v3563
        %v4236 = vrcp.pop %v3566
        %v4237 = vrcp.pop %v3569
        %v4238 = vrcp.pop %v3572
        %v4239 = vrcp.pop %v3575
        %v4240 = vrcp.pop %v3578
        %v4241 = vrcp.pop %v3581
        %v4242 = vrcp.pop %v3584
        %v4243 = vrcp.pop %v3587
        %v4244 = vrcp.pop %v3590
        %v4245 = vrcp.pop %v3593
        %v4246 = vrcp.pop %v3596
        %v4247 = vrcp.pop %v3599
        %v4248 = vrcp.pop %v3602
        %v4249 = vrcp.pop %v3605
        %v4250 = vrcp.pop %v3608
        %v4251 = vrcp.pop %v3611
        %v4252 = vrcp.pop %v3614
        %v4253 = vrcp.pop %v3617
        %v4254 = vrcp.pop %v3620
        %v4255 = vrcp.pop %v3623
        %v4256 = vrcp.pop %v3626
        %v4257 = vrcp.pop %v3629
        %v4258 = vrcp.pop %v3632
        %v4259 = vrcp.pop %v3635
        %v4260 = vrcp.pop %v3638
        %v4261 = vrcp.pop %v3641
        %v4262 = vrcp.pop %v3644
        %v4263 = vrcp.pop %v3647
        %v4264 = vrcp.pop %v3650
        %v4265 = vrcp.pop %v3653
        %v4266 = vrcp.pop %v3656
        %v4267 = vrcp.pop %v3659
        %v4268 = vrcp.pop %v3662
        %v4269 = vrcp.pop %v3665
        %v4270 = vrcp.pop %v3668
        %v4271 = vrcp.pop %v3671
        %v4272 = vrcp.pop %v3674
        %v4273 = vrcp.pop %v3677
        %v4274 = vrcp.pop %v3680
        %v4275 = vrcp.pop %v3683
        %v4276 = vrcp.pop %v3686
        %v4277 = vrcp.pop %v3689
        %v4278 = vrcp.pop %v3692
        %v4279 = vrcp.pop %v3695
        %v4280 = vrcp.pop %v3698
        %v4281 = vrcp.pop %v3701
        %v4282 = vrcp.pop %v3704
        %v4283 = vrcp.pop %v3707
        %v4284 = vrcp.pop %v3710
        %v4285 = vrcp.pop %v3713
        %v4286 = vrcp.pop %v3716
        %v4287 = vrcp.pop %v3719
        %v4288 = vrcp.pop %v3722
        %v4289 = vrcp.pop %v3725
        %v4290 = vrcp.pop %v3728
        %v4291 = vrcp.pop %v3731
        %v4292 = vrcp.pop %v3734
        %v4293 = vrcp.pop %v3737
        %v4294 = vrcp.pop %v3740
        %v4295 = vrcp.pop %v3743
        %v4296 = vrcp.pop %v3746
        %v4297 = vrcp.pop %v3749
        %v4298 = vrcp.pop %v3752
        %v4299 = vrcp.pop %v3755
        %v4300 = vrcp.pop %v3758
        %v4301 = vrcp.pop %v3761
        %v4302 = vrcp.pop %v3764
        %v4303 = vrcp.pop %v3767
        %v4304 = vrcp.pop %v3770
        %v4305 = vrcp.pop %v3773
        %v4306 = vrcp.pop %v3776
        %v4307 = vrcp.pop %v3779
        %v4308 = vrcp.pop %v3782
        %v4309 = vrcp.pop %v3785
        %v4310 = vrcp.pop %v3788
        %v4311 = vrcp.pop %v3791
        %v4312 = vrcp.pop %v3794
        %v4313 = vrcp.pop %v3797
        %v4314 = vrcp.pop %v3800
        %v4315 = vrcp.pop %v3803
        %v4316 = vrcp.pop %v3806
        %v4317 = vrcp.pop %v3809
        %v4318 = vrcp.pop %v3812
        %v4319 = vrcp.pop %v3815
        %v4320 = vrcp.pop %v3818
        %v4321 = vrcp.pop %v3821
        %v4322 = vrcp.pop %v3824
        %v4323 = vrcp.pop %v3827
        %v4324 = vrcp.pop %v3830
        %v4325 = vrcp.pop %v3833
        %v4326 = vrcp.pop %v3836
        %v4327 = vrcp.pop %v3839
        %v4328 = vrcp.pop %v3842
        %v4329 = vrcp.pop %v3845
        %v4330 = vrcp.pop %v3848
        %v4331 = vrcp.pop %v3851
        %v4332 = vrcp.pop %v3854
        %v4333 = vrcp.pop %v3857
        %v4334 = vrcp.pop %v3860
        %v4335 = vrcp.pop %v3863
        %v4336 = vrcp.pop %v3866
        %v4337 = vrcp.pop %v3869
        %v4338 = vrcp.pop %v3872
        %v4339 = vrcp.pop %v3875
        %v4340 = vrcp.pop %v3878
        %v4341 = vrcp.pop %v3881
        %v4342 = vrcp.pop %v3884
        %v4343 = vrcp.pop %v3887
        %v4344 = vrcp.pop %v3890
        %v4345 = vrcp.pop %v3893
        %v4346 = vrcp.pop %v3896
        %v4347 = vrcp.pop %v3899
        %v4348 = vrcp.pop %v3902
        %v4349 = vrcp.pop %v3905
        %v4350 = vrcp.pop %v3908
        %v4351 = vrcp.pop %v3911
        %v4352 = vrcp.pop %v3914
        %v4353 = vrcp.pop %v3917
        %v4354 = vrcp.pop %v3920
        %v4355 = vrcp.pop %v3923
        %v4356 = vrcp.pop %v3926
        %v4357 = vrcp.pop %v3929
        %v4486 = vlaneseq
        %v4487 = vand.u32 %v4486, 127
        %v4488 = vlaneseq
        %v4489 = vshrl.u32 %v4488, 7
        %v4490 = vsub.s32 %v4487, %v4489
        %v4491 = vrot.slane %v4230, %v4490
        %v4492 = vadd.s32 %v4487, 4294967288
        %v4493 = vlaneseq
        %v4494 = vshrl.u32 %v4493, 7
        %v4495 = vsub.s32 %v4492, %v4494
        %v4496 = vrot.slane %v4231, %v4495
        %vm4497 = vcmask 130112
        %v4498 = vsel %vm4497, %v4496, %v4491
        %v4499 = vadd.s32 %v4487, 4294967280
        %v4500 = vlaneseq
        %v4501 = vshrl.u32 %v4500, 7
        %v4502 = vsub.s32 %v4499, %v4501
        %v4503 = vrot.slane %v4232, %v4502
        %vm4504 = vcmask 195712
        %v4505 = vsel %vm4504, %v4503, %v4498
        %v4506 = vadd.s32 %v4487, 4294967272
        %v4507 = vlaneseq
        %v4508 = vshrl.u32 %v4507, 7
        %v4509 = vsub.s32 %v4506, %v4508
        %v4510 = vrot.slane %v4233, %v4509
        %vm4511 = vcmask 261312
        %v4512 = vsel %vm4511, %v4510, %v4505
        %v4513 = vadd.s32 %v4487, 4294967264
        %v4514 = vlaneseq
        %v4515 = vshrl.u32 %v4514, 7
        %v4516 = vsub.s32 %v4513, %v4515
        %v4517 = vrot.slane %v4234, %v4516
        %vm4518 = vcmask 326912
        %v4519 = vsel %vm4518, %v4517, %v4512
        %v4520 = vadd.s32 %v4487, 4294967256
        %v4521 = vlaneseq
        %v4522 = vshrl.u32 %v4521, 7
        %v4523 = vsub.s32 %v4520, %v4522
        %v4524 = vrot.slane %v4235, %v4523
        %vm4525 = vcmask 392512
        %v4526 = vsel %vm4525, %v4524, %v4519
        %v4527 = vadd.s32 %v4487, 4294967248
        %v4528 = vlaneseq
        %v4529 = vshrl.u32 %v4528, 7
        %v4530 = vsub.s32 %v4527, %v4529
        %v4531 = vrot.slane %v4236, %v4530
        %vm4532 = vcmask 458112
        %v4533 = vsel %vm4532, %v4531, %v4526
        %v4534 = vadd.s32 %v4487, 4294967240
        %v4535 = vlaneseq
        %v4536 = vshrl.u32 %v4535, 7
        %v4537 = vsub.s32 %v4534, %v4536
        %v4538 = vrot.slane %v4237, %v4537
        %vm4539 = vcmask 523712
        %v4540 = vsel %vm4539, %v4538, %v4533
        %v4541 = vadd.s32 %v4487, 4294967232
        %v4542 = vlaneseq
        %v4543 = vshrl.u32 %v4542, 7
        %v4544 = vsub.s32 %v4541, %v4543
        %v4545 = vrot.slane %v4238, %v4544
        %vm4546 = vcmask 589312
        %v4547 = vsel %vm4546, %v4545, %v4540
        %v4548 = vadd.s32 %v4487, 4294967224
        %v4549 = vlaneseq
        %v4550 = vshrl.u32 %v4549, 7
        %v4551 = vsub.s32 %v4548, %v4550
        %v4552 = vrot.slane %v4239, %v4551
        %vm4553 = vcmask 654912
        %v4554 = vsel %vm4553, %v4552, %v4547
        %v4555 = vadd.s32 %v4487, 4294967216
        %v4556 = vlaneseq
        %v4557 = vshrl.u32 %v4556, 7
        %v4558 = vsub.s32 %v4555, %v4557
        %v4559 = vrot.slane %v4240, %v4558
        %vm4560 = vcmask 720512
        %v4561 = vsel %vm4560, %v4559, %v4554
        %v4562 = vadd.s32 %v4487, 4294967208
        %v4563 = vlaneseq
        %v4564 = vshrl.u32 %v4563, 7
        %v4565 = vsub.s32 %v4562, %v4564
        %v4566 = vrot.slane %v4241, %v4565
        %vm4567 = vcmask 786112
        %v4568 = vsel %vm4567, %v4566, %v4561
        %v4569 = vadd.s32 %v4487, 4294967200
        %v4570 = vlaneseq
        %v4571 = vshrl.u32 %v4570, 7
        %v4572 = vsub.s32 %v4569, %v4571
        %v4573 = vrot.slane %v4242, %v4572
        %vm4574 = vcmask 851712
        %v4575 = vsel %vm4574, %v4573, %v4568
        %v4576 = vadd.s32 %v4487, 4294967192
        %v4577 = vlaneseq
        %v4578 = vshrl.u32 %v4577, 7
        %v4579 = vsub.s32 %v4576, %v4578
        %v4580 = vrot.slane %v4243, %v4579
        %vm4581 = vcmask 917312
        %v4582 = vsel %vm4581, %v4580, %v4575
        %v4583 = vadd.s32 %v4487, 4294967184
        %v4584 = vlaneseq
        %v4585 = vshrl.u32 %v4584, 7
        %v4586 = vsub.s32 %v4583, %v4585
        %v4587 = vrot.slane %v4244, %v4586
        %vm4588 = vcmask 982912
        %v4589 = vsel %vm4588, %v4587, %v4582
        %v4590 = vadd.s32 %v4487, 4294967176
        %v4591 = vlaneseq
        %v4592 = vshrl.u32 %v4591, 7
        %v4593 = vsub.s32 %v4590, %v4592
        %v4594 = vrot.slane %v4245, %v4593
        %vm4595 = vcmask 1048512
        %v4596 = vsel %vm4595, %v4594, %v4589
        %v4597 = vlaneseq
        %v4598 = vshrl.u32 %v4597, 7
        %v4599 = vsub.s32 %v4487, %v4598
        %v4600 = vrot.slane %v4246, %v4599
        %v4601 = vlaneseq
        %v4602 = vshrl.u32 %v4601, 7
        %v4603 = vsub.s32 %v4492, %v4602
        %v4604 = vrot.slane %v4247, %v4603
        %v4605 = vsel %vm4497, %v4604, %v4600
        %v4606 = vlaneseq
        %v4607 = vshrl.u32 %v4606, 7
        %v4608 = vsub.s32 %v4499, %v4607
        %v4609 = vrot.slane %v4248, %v4608
        %v4610 = vsel %vm4504, %v4609, %v4605
        %v4611 = vlaneseq
        %v4612 = vshrl.u32 %v4611, 7
        %v4613 = vsub.s32 %v4506, %v4612
        %v4614 = vrot.slane %v4249, %v4613
        %v4615 = vsel %vm4511, %v4614, %v4610
        %v4616 = vlaneseq
        %v4617 = vshrl.u32 %v4616, 7
        %v4618 = vsub.s32 %v4513, %v4617
        %v4619 = vrot.slane %v4250, %v4618
        %v4620 = vsel %vm4518, %v4619, %v4615
        %v4621 = vlaneseq
        %v4622 = vshrl.u32 %v4621, 7
        %v4623 = vsub.s32 %v4520, %v4622
        %v4624 = vrot.slane %v4251, %v4623
        %v4625 = vsel %vm4525, %v4624, %v4620
        %v4626 = vlaneseq
        %v4627 = vshrl.u32 %v4626, 7
        %v4628 = vsub.s32 %v4527, %v4627
        %v4629 = vrot.slane %v4252, %v4628
        %v4630 = vsel %vm4532, %v4629, %v4625
        %v4631 = vlaneseq
        %v4632 = vshrl.u32 %v4631, 7
        %v4633 = vsub.s32 %v4534, %v4632
        %v4634 = vrot.slane %v4253, %v4633
        %v4635 = vsel %vm4539, %v4634, %v4630
        %v4636 = vlaneseq
        %v4637 = vshrl.u32 %v4636, 7
        %v4638 = vsub.s32 %v4541, %v4637
        %v4639 = vrot.slane %v4254, %v4638
        %v4640 = vsel %vm4546, %v4639, %v4635
        %v4641 = vlaneseq
        %v4642 = vshrl.u32 %v4641, 7
        %v4643 = vsub.s32 %v4548, %v4642
        %v4644 = vrot.slane %v4255, %v4643
        %v4645 = vsel %vm4553, %v4644, %v4640
        %v4646 = vlaneseq
        %v4647 = vshrl.u32 %v4646, 7
        %v4648 = vsub.s32 %v4555, %v4647
        %v4649 = vrot.slane %v4256, %v4648
        %v4650 = vsel %vm4560, %v4649, %v4645
        %v4651 = vlaneseq
        %v4652 = vshrl.u32 %v4651, 7
        %v4653 = vsub.s32 %v4562, %v4652
        %v4654 = vrot.slane %v4257, %v4653
        %v4655 = vsel %vm4567, %v4654, %v4650
        %v4656 = vlaneseq
        %v4657 = vshrl.u32 %v4656, 7
        %v4658 = vsub.s32 %v4569, %v4657
        %v4659 = vrot.slane %v4258, %v4658
        %v4660 = vsel %vm4574, %v4659, %v4655
        %v4661 = vlaneseq
        %v4662 = vshrl.u32 %v4661, 7
        %v4663 = vsub.s32 %v4576, %v4662
        %v4664 = vrot.slane %v4259, %v4663
        %v4665 = vsel %vm4581, %v4664, %v4660
        %v4666 = vlaneseq
        %v4667 = vshrl.u32 %v4666, 7
        %v4668 = vsub.s32 %v4583, %v4667
        %v4669 = vrot.slane %v4260, %v4668
        %v4670 = vsel %vm4588, %v4669, %v4665
        %v4671 = vlaneseq
        %v4672 = vshrl.u32 %v4671, 7
        %v4673 = vsub.s32 %v4590, %v4672
        %v4674 = vrot.slane %v4261, %v4673
        %v4675 = vsel %vm4595, %v4674, %v4670
        %v4676 = vlaneseq
        %v4677 = vshrl.u32 %v4676, 7
        %v4678 = vsub.s32 %v4487, %v4677
        %v4679 = vrot.slane %v4262, %v4678
        %v4680 = vlaneseq
        %v4681 = vshrl.u32 %v4680, 7
        %v4682 = vsub.s32 %v4492, %v4681
        %v4683 = vrot.slane %v4263, %v4682
        %v4684 = vsel %vm4497, %v4683, %v4679
        %v4685 = vlaneseq
        %v4686 = vshrl.u32 %v4685, 7
        %v4687 = vsub.s32 %v4499, %v4686
        %v4688 = vrot.slane %v4264, %v4687
        %v4689 = vsel %vm4504, %v4688, %v4684
        %v4690 = vlaneseq
        %v4691 = vshrl.u32 %v4690, 7
        %v4692 = vsub.s32 %v4506, %v4691
        %v4693 = vrot.slane %v4265, %v4692
        %v4694 = vsel %vm4511, %v4693, %v4689
        %v4695 = vlaneseq
        %v4696 = vshrl.u32 %v4695, 7
        %v4697 = vsub.s32 %v4513, %v4696
        %v4698 = vrot.slane %v4266, %v4697
        %v4699 = vsel %vm4518, %v4698, %v4694
        %v4700 = vlaneseq
        %v4701 = vshrl.u32 %v4700, 7
        %v4702 = vsub.s32 %v4520, %v4701
        %v4703 = vrot.slane %v4267, %v4702
        %v4704 = vsel %vm4525, %v4703, %v4699
        %v4705 = vlaneseq
        %v4706 = vshrl.u32 %v4705, 7
        %v4707 = vsub.s32 %v4527, %v4706
        %v4708 = vrot.slane %v4268, %v4707
        %v4709 = vsel %vm4532, %v4708, %v4704
        %v4710 = vlaneseq
        %v4711 = vshrl.u32 %v4710, 7
        %v4712 = vsub.s32 %v4534, %v4711
        %v4713 = vrot.slane %v4269, %v4712
        %v4714 = vsel %vm4539, %v4713, %v4709
        %v4715 = vlaneseq
        %v4716 = vshrl.u32 %v4715, 7
        %v4717 = vsub.s32 %v4541, %v4716
        %v4718 = vrot.slane %v4270, %v4717
        %v4719 = vsel %vm4546, %v4718, %v4714
        %v4720 = vlaneseq
        %v4721 = vshrl.u32 %v4720, 7
        %v4722 = vsub.s32 %v4548, %v4721
        %v4723 = vrot.slane %v4271, %v4722
        %v4724 = vsel %vm4553, %v4723, %v4719
        %v4725 = vlaneseq
        %v4726 = vshrl.u32 %v4725, 7
        %v4727 = vsub.s32 %v4555, %v4726
        %v4728 = vrot.slane %v4272, %v4727
        %v4729 = vsel %vm4560, %v4728, %v4724
        %v4730 = vlaneseq
        %v4731 = vshrl.u32 %v4730, 7
        %v4732 = vsub.s32 %v4562, %v4731
        %v4733 = vrot.slane %v4273, %v4732
        %v4734 = vsel %vm4567, %v4733, %v4729
        %v4735 = vlaneseq
        %v4736 = vshrl.u32 %v4735, 7
        %v4737 = vsub.s32 %v4569, %v4736
        %v4738 = vrot.slane %v4274, %v4737
        %v4739 = vsel %vm4574, %v4738, %v4734
        %v4740 = vlaneseq
        %v4741 = vshrl.u32 %v4740, 7
        %v4742 = vsub.s32 %v4576, %v4741
        %v4743 = vrot.slane %v4275, %v4742
        %v4744 = vsel %vm4581, %v4743, %v4739
        %v4745 = vlaneseq
        %v4746 = vshrl.u32 %v4745, 7
        %v4747 = vsub.s32 %v4583, %v4746
        %v4748 = vrot.slane %v4276, %v4747
        %v4749 = vsel %vm4588, %v4748, %v4744
        %v4750 = vlaneseq
        %v4751 = vshrl.u32 %v4750, 7
        %v4752 = vsub.s32 %v4590, %v4751
        %v4753 = vrot.slane %v4277, %v4752
        %v4754 = vsel %vm4595, %v4753, %v4749
        %v4755 = vlaneseq
        %v4756 = vshrl.u32 %v4755, 7
        %v4757 = vsub.s32 %v4487, %v4756
        %v4758 = vrot.slane %v4278, %v4757
        %v4759 = vlaneseq
        %v4760 = vshrl.u32 %v4759, 7
        %v4761 = vsub.s32 %v4492, %v4760
        %v4762 = vrot.slane %v4279, %v4761
        %v4763 = vsel %vm4497, %v4762, %v4758
        %v4764 = vlaneseq
        %v4765 = vshrl.u32 %v4764, 7
        %v4766 = vsub.s32 %v4499, %v4765
        %v4767 = vrot.slane %v4280, %v4766
        %v4768 = vsel %vm4504, %v4767, %v4763
        %v4769 = vlaneseq
        %v4770 = vshrl.u32 %v4769, 7
        %v4771 = vsub.s32 %v4506, %v4770
        %v4772 = vrot.slane %v4281, %v4771
        %v4773 = vsel %vm4511, %v4772, %v4768
        %v4774 = vlaneseq
        %v4775 = vshrl.u32 %v4774, 7
        %v4776 = vsub.s32 %v4513, %v4775
        %v4777 = vrot.slane %v4282, %v4776
        %v4778 = vsel %vm4518, %v4777, %v4773
        %v4779 = vlaneseq
        %v4780 = vshrl.u32 %v4779, 7
        %v4781 = vsub.s32 %v4520, %v4780
        %v4782 = vrot.slane %v4283, %v4781
        %v4783 = vsel %vm4525, %v4782, %v4778
        %v4784 = vlaneseq
        %v4785 = vshrl.u32 %v4784, 7
        %v4786 = vsub.s32 %v4527, %v4785
        %v4787 = vrot.slane %v4284, %v4786
        %v4788 = vsel %vm4532, %v4787, %v4783
        %v4789 = vlaneseq
        %v4790 = vshrl.u32 %v4789, 7
        %v4791 = vsub.s32 %v4534, %v4790
        %v4792 = vrot.slane %v4285, %v4791
        %v4793 = vsel %vm4539, %v4792, %v4788
        %v4794 = vlaneseq
        %v4795 = vshrl.u32 %v4794, 7
        %v4796 = vsub.s32 %v4541, %v4795
        %v4797 = vrot.slane %v4286, %v4796
        %v4798 = vsel %vm4546, %v4797, %v4793
        %v4799 = vlaneseq
        %v4800 = vshrl.u32 %v4799, 7
        %v4801 = vsub.s32 %v4548, %v4800
        %v4802 = vrot.slane %v4287, %v4801
        %v4803 = vsel %vm4553, %v4802, %v4798
        %v4804 = vlaneseq
        %v4805 = vshrl.u32 %v4804, 7
        %v4806 = vsub.s32 %v4555, %v4805
        %v4807 = vrot.slane %v4288, %v4806
        %v4808 = vsel %vm4560, %v4807, %v4803
        %v4809 = vlaneseq
        %v4810 = vshrl.u32 %v4809, 7
        %v4811 = vsub.s32 %v4562, %v4810
        %v4812 = vrot.slane %v4289, %v4811
        %v4813 = vsel %vm4567, %v4812, %v4808
        %v4814 = vlaneseq
        %v4815 = vshrl.u32 %v4814, 7
        %v4816 = vsub.s32 %v4569, %v4815
        %v4817 = vrot.slane %v4290, %v4816
        %v4818 = vsel %vm4574, %v4817, %v4813
        %v4819 = vlaneseq
        %v4820 = vshrl.u32 %v4819, 7
        %v4821 = vsub.s32 %v4576, %v4820
        %v4822 = vrot.slane %v4291, %v4821
        %v4823 = vsel %vm4581, %v4822, %v4818
        %v4824 = vlaneseq
        %v4825 = vshrl.u32 %v4824, 7
        %v4826 = vsub.s32 %v4583, %v4825
        %v4827 = vrot.slane %v4292, %v4826
        %v4828 = vsel %vm4588, %v4827, %v4823
        %v4829 = vlaneseq
        %v4830 = vshrl.u32 %v4829, 7
        %v4831 = vsub.s32 %v4590, %v4830
        %v4832 = vrot.slane %v4293, %v4831
        %v4833 = vsel %vm4595, %v4832, %v4828
        %v4834 = vlaneseq
        %v4835 = vshrl.u32 %v4834, 7
        %v4836 = vsub.s32 %v4487, %v4835
        %v4837 = vrot.slane %v4294, %v4836
        %v4838 = vlaneseq
        %v4839 = vshrl.u32 %v4838, 7
        %v4840 = vsub.s32 %v4492, %v4839
        %v4841 = vrot.slane %v4295, %v4840
        %v4842 = vsel %vm4497, %v4841, %v4837
        %v4843 = vlaneseq
        %v4844 = vshrl.u32 %v4843, 7
        %v4845 = vsub.s32 %v4499, %v4844
        %v4846 = vrot.slane %v4296, %v4845
        %v4847 = vsel %vm4504, %v4846, %v4842
        %v4848 = vlaneseq
        %v4849 = vshrl.u32 %v4848, 7
        %v4850 = vsub.s32 %v4506, %v4849
        %v4851 = vrot.slane %v4297, %v4850
        %v4852 = vsel %vm4511, %v4851, %v4847
        %v4853 = vlaneseq
        %v4854 = vshrl.u32 %v4853, 7
        %v4855 = vsub.s32 %v4513, %v4854
        %v4856 = vrot.slane %v4298, %v4855
        %v4857 = vsel %vm4518, %v4856, %v4852
        %v4858 = vlaneseq
        %v4859 = vshrl.u32 %v4858, 7
        %v4860 = vsub.s32 %v4520, %v4859
        %v4861 = vrot.slane %v4299, %v4860
        %v4862 = vsel %vm4525, %v4861, %v4857
        %v4863 = vlaneseq
        %v4864 = vshrl.u32 %v4863, 7
        %v4865 = vsub.s32 %v4527, %v4864
        %v4866 = vrot.slane %v4300, %v4865
        %v4867 = vsel %vm4532, %v4866, %v4862
        %v4868 = vlaneseq
        %v4869 = vshrl.u32 %v4868, 7
        %v4870 = vsub.s32 %v4534, %v4869
        %v4871 = vrot.slane %v4301, %v4870
        %v4872 = vsel %vm4539, %v4871, %v4867
        %v4873 = vlaneseq
        %v4874 = vshrl.u32 %v4873, 7
        %v4875 = vsub.s32 %v4541, %v4874
        %v4876 = vrot.slane %v4302, %v4875
        %v4877 = vsel %vm4546, %v4876, %v4872
        %v4878 = vlaneseq
        %v4879 = vshrl.u32 %v4878, 7
        %v4880 = vsub.s32 %v4548, %v4879
        %v4881 = vrot.slane %v4303, %v4880
        %v4882 = vsel %vm4553, %v4881, %v4877
        %v4883 = vlaneseq
        %v4884 = vshrl.u32 %v4883, 7
        %v4885 = vsub.s32 %v4555, %v4884
        %v4886 = vrot.slane %v4304, %v4885
        %v4887 = vsel %vm4560, %v4886, %v4882
        %v4888 = vlaneseq
        %v4889 = vshrl.u32 %v4888, 7
        %v4890 = vsub.s32 %v4562, %v4889
        %v4891 = vrot.slane %v4305, %v4890
        %v4892 = vsel %vm4567, %v4891, %v4887
        %v4893 = vlaneseq
        %v4894 = vshrl.u32 %v4893, 7
        %v4895 = vsub.s32 %v4569, %v4894
        %v4896 = vrot.slane %v4306, %v4895
        %v4897 = vsel %vm4574, %v4896, %v4892
        %v4898 = vlaneseq
        %v4899 = vshrl.u32 %v4898, 7
        %v4900 = vsub.s32 %v4576, %v4899
        %v4901 = vrot.slane %v4307, %v4900
        %v4902 = vsel %vm4581, %v4901, %v4897
        %v4903 = vlaneseq
        %v4904 = vshrl.u32 %v4903, 7
        %v4905 = vsub.s32 %v4583, %v4904
        %v4906 = vrot.slane %v4308, %v4905
        %v4907 = vsel %vm4588, %v4906, %v4902
        %v4908 = vlaneseq
        %v4909 = vshrl.u32 %v4908, 7
        %v4910 = vsub.s32 %v4590, %v4909
        %v4911 = vrot.slane %v4309, %v4910
        %v4912 = vsel %vm4595, %v4911, %v4907
        %v4913 = vlaneseq
        %v4914 = vshrl.u32 %v4913, 7
        %v4915 = vsub.s32 %v4487, %v4914
        %v4916 = vrot.slane %v4310, %v4915
        %v4917 = vlaneseq
        %v4918 = vshrl.u32 %v4917, 7
        %v4919 = vsub.s32 %v4492, %v4918
        %v4920 = vrot.slane %v4311, %v4919
        %v4921 = vsel %vm4497, %v4920, %v4916
        %v4922 = vlaneseq
        %v4923 = vshrl.u32 %v4922, 7
        %v4924 = vsub.s32 %v4499, %v4923
        %v4925 = vrot.slane %v4312, %v4924
        %v4926 = vsel %vm4504, %v4925, %v4921
        %v4927 = vlaneseq
        %v4928 = vshrl.u32 %v4927, 7
        %v4929 = vsub.s32 %v4506, %v4928
        %v4930 = vrot.slane %v4313, %v4929
        %v4931 = vsel %vm4511, %v4930, %v4926
        %v4932 = vlaneseq
        %v4933 = vshrl.u32 %v4932, 7
        %v4934 = vsub.s32 %v4513, %v4933
        %v4935 = vrot.slane %v4314, %v4934
        %v4936 = vsel %vm4518, %v4935, %v4931
        %v4937 = vlaneseq
        %v4938 = vshrl.u32 %v4937, 7
        %v4939 = vsub.s32 %v4520, %v4938
        %v4940 = vrot.slane %v4315, %v4939
        %v4941 = vsel %vm4525, %v4940, %v4936
        %v4942 = vlaneseq
        %v4943 = vshrl.u32 %v4942, 7
        %v4944 = vsub.s32 %v4527, %v4943
        %v4945 = vrot.slane %v4316, %v4944
        %v4946 = vsel %vm4532, %v4945, %v4941
        %v4947 = vlaneseq
        %v4948 = vshrl.u32 %v4947, 7
        %v4949 = vsub.s32 %v4534, %v4948
        %v4950 = vrot.slane %v4317, %v4949
        %v4951 = vsel %vm4539, %v4950, %v4946
        %v4952 = vlaneseq
        %v4953 = vshrl.u32 %v4952, 7
        %v4954 = vsub.s32 %v4541, %v4953
        %v4955 = vrot.slane %v4318, %v4954
        %v4956 = vsel %vm4546, %v4955, %v4951
        %v4957 = vlaneseq
        %v4958 = vshrl.u32 %v4957, 7
        %v4959 = vsub.s32 %v4548, %v4958
        %v4960 = vrot.slane %v4319, %v4959
        %v4961 = vsel %vm4553, %v4960, %v4956
        %v4962 = vlaneseq
        %v4963 = vshrl.u32 %v4962, 7
        %v4964 = vsub.s32 %v4555, %v4963
        %v4965 = vrot.slane %v4320, %v4964
        %v4966 = vsel %vm4560, %v4965, %v4961
        %v4967 = vlaneseq
        %v4968 = vshrl.u32 %v4967, 7
        %v4969 = vsub.s32 %v4562, %v4968
        %v4970 = vrot.slane %v4321, %v4969
        %v4971 = vsel %vm4567, %v4970, %v4966
        %v4972 = vlaneseq
        %v4973 = vshrl.u32 %v4972, 7
        %v4974 = vsub.s32 %v4569, %v4973
        %v4975 = vrot.slane %v4322, %v4974
        %v4976 = vsel %vm4574, %v4975, %v4971
        %v4977 = vlaneseq
        %v4978 = vshrl.u32 %v4977, 7
        %v4979 = vsub.s32 %v4576, %v4978
        %v4980 = vrot.slane %v4323, %v4979
        %v4981 = vsel %vm4581, %v4980, %v4976
        %v4982 = vlaneseq
        %v4983 = vshrl.u32 %v4982, 7
        %v4984 = vsub.s32 %v4583, %v4983
        %v4985 = vrot.slane %v4324, %v4984
        %v4986 = vsel %vm4588, %v4985, %v4981
        %v4987 = vlaneseq
        %v4988 = vshrl.u32 %v4987, 7
        %v4989 = vsub.s32 %v4590, %v4988
        %v4990 = vrot.slane %v4325, %v4989
        %v4991 = vsel %vm4595, %v4990, %v4986
        %v4992 = vlaneseq
        %v4993 = vshrl.u32 %v4992, 7
        %v4994 = vsub.s32 %v4487, %v4993
        %v4995 = vrot.slane %v4326, %v4994
        %v4996 = vlaneseq
        %v4997 = vshrl.u32 %v4996, 7
        %v4998 = vsub.s32 %v4492, %v4997
        %v4999 = vrot.slane %v4327, %v4998
        %v5000 = vsel %vm4497, %v4999, %v4995
        %v5001 = vlaneseq
        %v5002 = vshrl.u32 %v5001, 7
        %v5003 = vsub.s32 %v4499, %v5002
        %v5004 = vrot.slane %v4328, %v5003
        %v5005 = vsel %vm4504, %v5004, %v5000
        %v5006 = vlaneseq
        %v5007 = vshrl.u32 %v5006, 7
        %v5008 = vsub.s32 %v4506, %v5007
        %v5009 = vrot.slane %v4329, %v5008
        %v5010 = vsel %vm4511, %v5009, %v5005
        %v5011 = vlaneseq
        %v5012 = vshrl.u32 %v5011, 7
        %v5013 = vsub.s32 %v4513, %v5012
        %v5014 = vrot.slane %v4330, %v5013
        %v5015 = vsel %vm4518, %v5014, %v5010
        %v5016 = vlaneseq
        %v5017 = vshrl.u32 %v5016, 7
        %v5018 = vsub.s32 %v4520, %v5017
        %v5019 = vrot.slane %v4331, %v5018
        %v5020 = vsel %vm4525, %v5019, %v5015
        %v5021 = vlaneseq
        %v5022 = vshrl.u32 %v5021, 7
        %v5023 = vsub.s32 %v4527, %v5022
        %v5024 = vrot.slane %v4332, %v5023
        %v5025 = vsel %vm4532, %v5024, %v5020
        %v5026 = vlaneseq
        %v5027 = vshrl.u32 %v5026, 7
        %v5028 = vsub.s32 %v4534, %v5027
        %v5029 = vrot.slane %v4333, %v5028
        %v5030 = vsel %vm4539, %v5029, %v5025
        %v5031 = vlaneseq
        %v5032 = vshrl.u32 %v5031, 7
        %v5033 = vsub.s32 %v4541, %v5032
        %v5034 = vrot.slane %v4334, %v5033
        %v5035 = vsel %vm4546, %v5034, %v5030
        %v5036 = vlaneseq
        %v5037 = vshrl.u32 %v5036, 7
        %v5038 = vsub.s32 %v4548, %v5037
        %v5039 = vrot.slane %v4335, %v5038
        %v5040 = vsel %vm4553, %v5039, %v5035
        %v5041 = vlaneseq
        %v5042 = vshrl.u32 %v5041, 7
        %v5043 = vsub.s32 %v4555, %v5042
        %v5044 = vrot.slane %v4336, %v5043
        %v5045 = vsel %vm4560, %v5044, %v5040
        %v5046 = vlaneseq
        %v5047 = vshrl.u32 %v5046, 7
        %v5048 = vsub.s32 %v4562, %v5047
        %v5049 = vrot.slane %v4337, %v5048
        %v5050 = vsel %vm4567, %v5049, %v5045
        %v5051 = vlaneseq
        %v5052 = vshrl.u32 %v5051, 7
        %v5053 = vsub.s32 %v4569, %v5052
        %v5054 = vrot.slane %v4338, %v5053
        %v5055 = vsel %vm4574, %v5054, %v5050
        %v5056 = vlaneseq
        %v5057 = vshrl.u32 %v5056, 7
        %v5058 = vsub.s32 %v4576, %v5057
        %v5059 = vrot.slane %v4339, %v5058
        %v5060 = vsel %vm4581, %v5059, %v5055
        %v5061 = vlaneseq
        %v5062 = vshrl.u32 %v5061, 7
        %v5063 = vsub.s32 %v4583, %v5062
        %v5064 = vrot.slane %v4340, %v5063
        %v5065 = vsel %vm4588, %v5064, %v5060
        %v5066 = vlaneseq
        %v5067 = vshrl.u32 %v5066, 7
        %v5068 = vsub.s32 %v4590, %v5067
        %v5069 = vrot.slane %v4341, %v5068
        %v5070 = vsel %vm4595, %v5069, %v5065
        %v5071 = vlaneseq
        %v5072 = vshrl.u32 %v5071, 7
        %v5073 = vsub.s32 %v4487, %v5072
        %v5074 = vrot.slane %v4342, %v5073
        %v5075 = vlaneseq
        %v5076 = vshrl.u32 %v5075, 7
        %v5077 = vsub.s32 %v4492, %v5076
        %v5078 = vrot.slane %v4343, %v5077
        %v5079 = vsel %vm4497, %v5078, %v5074
        %v5080 = vlaneseq
        %v5081 = vshrl.u32 %v5080, 7
        %v5082 = vsub.s32 %v4499, %v5081
        %v5083 = vrot.slane %v4344, %v5082
        %v5084 = vsel %vm4504, %v5083, %v5079
        %v5085 = vlaneseq
        %v5086 = vshrl.u32 %v5085, 7
        %v5087 = vsub.s32 %v4506, %v5086
        %v5088 = vrot.slane %v4345, %v5087
        %v5089 = vsel %vm4511, %v5088, %v5084
        %v5090 = vlaneseq
        %v5091 = vshrl.u32 %v5090, 7
        %v5092 = vsub.s32 %v4513, %v5091
        %v5093 = vrot.slane %v4346, %v5092
        %v5094 = vsel %vm4518, %v5093, %v5089
        %v5095 = vlaneseq
        %v5096 = vshrl.u32 %v5095, 7
        %v5097 = vsub.s32 %v4520, %v5096
        %v5098 = vrot.slane %v4347, %v5097
        %v5099 = vsel %vm4525, %v5098, %v5094
        %v5100 = vlaneseq
        %v5101 = vshrl.u32 %v5100, 7
        %v5102 = vsub.s32 %v4527, %v5101
        %v5103 = vrot.slane %v4348, %v5102
        %v5104 = vsel %vm4532, %v5103, %v5099
        %v5105 = vlaneseq
        %v5106 = vshrl.u32 %v5105, 7
        %v5107 = vsub.s32 %v4534, %v5106
        %v5108 = vrot.slane %v4349, %v5107
        %v5109 = vsel %vm4539, %v5108, %v5104
        %v5110 = vlaneseq
        %v5111 = vshrl.u32 %v5110, 7
        %v5112 = vsub.s32 %v4541, %v5111
        %v5113 = vrot.slane %v4350, %v5112
        %v5114 = vsel %vm4546, %v5113, %v5109
        %v5115 = vlaneseq
        %v5116 = vshrl.u32 %v5115, 7
        %v5117 = vsub.s32 %v4548, %v5116
        %v5118 = vrot.slane %v4351, %v5117
        %v5119 = vsel %vm4553, %v5118, %v5114
        %v5120 = vlaneseq
        %v5121 = vshrl.u32 %v5120, 7
        %v5122 = vsub.s32 %v4555, %v5121
        %v5123 = vrot.slane %v4352, %v5122
        %v5124 = vsel %vm4560, %v5123, %v5119
        %v5125 = vlaneseq
        %v5126 = vshrl.u32 %v5125, 7
        %v5127 = vsub.s32 %v4562, %v5126
        %v5128 = vrot.slane %v4353, %v5127
        %v5129 = vsel %vm4567, %v5128, %v5124
        %v5130 = vlaneseq
        %v5131 = vshrl.u32 %v5130, 7
        %v5132 = vsub.s32 %v4569, %v5131
        %v5133 = vrot.slane %v4354, %v5132
        %v5134 = vsel %vm4574, %v5133, %v5129
        %v5135 = vlaneseq
        %v5136 = vshrl.u32 %v5135, 7
        %v5137 = vsub.s32 %v4576, %v5136
        %v5138 = vrot.slane %v4355, %v5137
        %v5139 = vsel %vm4581, %v5138, %v5134
        %v5140 = vlaneseq
        %v5141 = vshrl.u32 %v5140, 7
        %v5142 = vsub.s32 %v4583, %v5141
        %v5143 = vrot.slane %v4356, %v5142
        %v5144 = vsel %vm4588, %v5143, %v5139
        %v5145 = vlaneseq
        %v5146 = vshrl.u32 %v5145, 7
        %v5147 = vsub.s32 %v4590, %v5146
        %v5148 = vrot.slane %v4357, %v5147
        %v5149 = vsel %vm4595, %v5148, %v5144
        %vm5150 = vcmask 1042434
        %v5151 = vsel %vm5150, %v4596, %v4596
        %vm5152 = vcmask 1043459
        %v5153 = vsel %vm5152, %v4596, %v5151
        %vm5154 = vcmask 1044484
        %v5155 = vsel %vm5154, %v4596, %v5153
        %vm5156 = vcmask 1045509
        %v5157 = vsel %vm5156, %v4596, %v5155
        %vm5158 = vcmask 1046534
        %v5159 = vsel %vm5158, %v4596, %v5157
        %vm5160 = vcmask 1047559
        %v5161 = vsel %vm5160, %v4596, %v5159
        %v5162 = vsel %vm5150, %v4675, %v4675
        %v5163 = vsel %vm5152, %v4675, %v5162
        %v5164 = vsel %vm5154, %v4675, %v5163
        %v5165 = vsel %vm5156, %v4675, %v5164
        %v5166 = vsel %vm5158, %v4675, %v5165
        %v5167 = vsel %vm5160, %v4675, %v5166
        %v5168 = vsel %vm5150, %v4754, %v4754
        %v5169 = vsel %vm5152, %v4754, %v5168
        %v5170 = vsel %vm5154, %v4754, %v5169
        %v5171 = vsel %vm5156, %v4754, %v5170
        %v5172 = vsel %vm5158, %v4754, %v5171
        %v5173 = vsel %vm5160, %v4754, %v5172
        %v5174 = vsel %vm5150, %v4833, %v4833
        %v5175 = vsel %vm5152, %v4833, %v5174
        %v5176 = vsel %vm5154, %v4833, %v5175
        %v5177 = vsel %vm5156, %v4833, %v5176
        %v5178 = vsel %vm5158, %v4833, %v5177
        %v5179 = vsel %vm5160, %v4833, %v5178
        %v5180 = vsel %vm5150, %v4912, %v4912
        %v5181 = vsel %vm5152, %v4912, %v5180
        %v5182 = vsel %vm5154, %v4912, %v5181
        %v5183 = vsel %vm5156, %v4912, %v5182
        %v5184 = vsel %vm5158, %v4912, %v5183
        %v5185 = vsel %vm5160, %v4912, %v5184
        %v5186 = vsel %vm5150, %v4991, %v4991
        %v5187 = vsel %vm5152, %v4991, %v5186
        %v5188 = vsel %vm5154, %v4991, %v5187
        %v5189 = vsel %vm5156, %v4991, %v5188
        %v5190 = vsel %vm5158, %v4991, %v5189
        %v5191 = vsel %vm5160, %v4991, %v5190
        %v5192 = vsel %vm5150, %v5070, %v5070
        %v5193 = vsel %vm5152, %v5070, %v5192
        %v5194 = vsel %vm5154, %v5070, %v5193
        %v5195 = vsel %vm5156, %v5070, %v5194
        %v5196 = vsel %vm5158, %v5070, %v5195
        %v5197 = vsel %vm5160, %v5070, %v5196
        %v5198 = vsel %vm5150, %v5149, %v5149
        %v5199 = vsel %vm5152, %v5149, %v5198
        %v5200 = vsel %vm5154, %v5149, %v5199
        %v5201 = vsel %vm5156, %v5149, %v5200
        %v5202 = vsel %vm5158, %v5149, %v5201
        %v5203 = vsel %vm5160, %v5149, %v5202
        %v5212 = vmul.f32 %v4093, %v5161
        %v5213 = vmul.f32 %v4095, %v5167
        %v5214 = vmul.f32 %v4097, %v5161
        %v5215 = vmul.f32 %v4099, %v5167
        %v5216 = vmul.f32 %v4136, %v5173
        %v5217 = vmul.f32 %v4138, %v5179
        %v5218 = vmul.f32 %v4140, %v5173
        %v5219 = vmul.f32 %v4142, %v5179
        %v5220 = vmul.f32 %v4179, %v5185
        %v5221 = vmul.f32 %v4181, %v5191
        %v5222 = vmul.f32 %v4183, %v5185
        %v5223 = vmul.f32 %v4185, %v5191
        %v5224 = vmul.f32 %v4222, %v5197
        %v5225 = vmul.f32 %v4224, %v5203
        %v5226 = vmul.f32 %v4226, %v5197
        %v5227 = vmul.f32 %v4228, %v5203
        %v5228 = vld [vmem:[%s6] sm:$0xf]
        %v5229 = vld [vmem:[%s6 + $0x4] sm:$0xf]
        %v5230 = vld [vmem:[%s6 + $0x8] sm:$0xf]
        %v5231 = vld [vmem:[%s6 + $0xc] sm:$0xf]
        %v5232 = vld [vmem:[%s6 + $0x10] sm:$0xf]
        %v5233 = vld [vmem:[%s6 + $0x14] sm:$0xf]
        %v5234 = vld [vmem:[%s6 + $0x18] sm:$0xf]
        %v5235 = vld [vmem:[%s6 + $0x1c] sm:$0xf]
        %v5236 = vpack.c.bf16 %v5214, %v5212
        %v5237 = vpack.c.bf16 %v5215, %v5213
        %v5238 = vpack.c.bf16 %v5218, %v5216
        %v5239 = vpack.c.bf16 %v5219, %v5217
        %v5240 = vpack.c.bf16 %v5222, %v5220
        %v5241 = vpack.c.bf16 %v5223, %v5221
        %v5242 = vpack.c.bf16 %v5226, %v5224
        %v5243 = vpack.c.bf16 %v5227, %v5225
        %v5244 = vld [vmem:[%s7] sm:$0xff]
        %v5245 = vld [vmem:[%s7 + $0x8] sm:$0xff]
        %v5246 = vld [vmem:[%s7 + $0x10] sm:$0xff]
        %v5247 = vld [vmem:[%s7 + $0x18] sm:$0xff]
        %v5248 = vld [vmem:[%s7 + $0x20] sm:$0xff]
        %v5249 = vld [vmem:[%s7 + $0x28] sm:$0xff]
        %v5250 = vld [vmem:[%s7 + $0x30] sm:$0xff]
        %v5251 = vld [vmem:[%s7 + $0x38] sm:$0xff]
        %5253 = vset.pattern.permute.xlu0 0
        %5254 = vperm.xlu0 %5253, %v5244
        %v5255 = vpop.permute.xlu0 %5254
        %5258 = vset.pattern.permute.xlu0 0
        %5259 = vperm.xlu0 %5258, %v5245
        %v5260 = vpop.permute.xlu0 %5259
        %5263 = vset.pattern.permute.xlu0 0
        %5264 = vperm.xlu0 %5263, %v5246
        %v5265 = vpop.permute.xlu0 %5264
        %5268 = vset.pattern.permute.xlu0 0
        %5269 = vperm.xlu0 %5268, %v5247
        %v5270 = vpop.permute.xlu0 %5269
        %5273 = vset.pattern.permute.xlu0 0
        %5274 = vperm.xlu0 %5273, %v5248
        %v5275 = vpop.permute.xlu0 %5274
        %5278 = vset.pattern.permute.xlu0 0
        %5279 = vperm.xlu0 %5278, %v5249
        %v5280 = vpop.permute.xlu0 %5279
        %5283 = vset.pattern.permute.xlu0 0
        %5284 = vperm.xlu0 %5283, %v5250
        %v5285 = vpop.permute.xlu0 %5284
        %5288 = vset.pattern.permute.xlu0 0
        %5289 = vperm.xlu0 %5288, %v5251
        %v5290 = vpop.permute.xlu0 %5289
        %v5300 = vunpack.c.l.b16 %v5228
        %v5301 = vunpack.c.l.b16 %v5229
        %v5302 = vunpack.c.l.b16 %v5230
        %v5303 = vunpack.c.l.b16 %v5231
        %v5304 = vunpack.c.l.b16 %v5232
        %v5305 = vunpack.c.l.b16 %v5233
        %v5306 = vunpack.c.l.b16 %v5234
        %v5307 = vunpack.c.l.b16 %v5235
        %v5308 = vpack.c.b16 %v5301, %v5300
        %v5309 = vpack.c.b16 %v5303, %v5302
        %v5310 = vpack.c.b16 %v5305, %v5304
        %v5311 = vpack.c.b16 %v5307, %v5306
        %v5313 = vsel %vm393, %v5308, 0
        %v5316 = vsel %vm393, %v5309, 0
        %v5319 = vsel %vm393, %v5310, 0
        %v5322 = vsel %vm393, %v5311, 0
        %5324 = vmatprep.subr.bf16.mxu0 0
        %5325 = vmatpush1.bf16.msra.mxu0 0
        %5326 = vmatprep.subr.bf16.mxu0 0
        %5327 = vmatpush1.bf16.msra.mxu0 0
        %5328 = vmatprep.subr.bf16.mxu0 0
        %5329 = vmatpush1.bf16.msra.mxu0 0
        %5330 = vmatprep.subr.bf16.mxu0 0
        %5331 = vmatpush1.bf16.msra.mxu0 0
        %5332 = vmatprep.subr.bf16.mxu0 %v5243
        %5333 = vmatpush1.bf16.msra.mxu0 %v5242
        %5334 = vmatprep.subr.bf16.mxu0 %v5241
        %5335 = vmatpush1.bf16.msra.mxu0 %v5240
        %5336 = vmatprep.subr.bf16.mxu0 %v5239
        %5337 = vmatpush1.bf16.msra.mxu0 %v5238
        %5338 = vmatprep.subr.bf16.mxu0 %v5237
        %5339 = vmatpush1.bf16.msra.mxu0 %v5236
        %5340 = vmatprep.subr.bf16.mxu0 0
        %5341 = vmatpush2.bf16.msra.mxu0 0
        %5342 = vmatprep.subr.bf16.mxu0 0
        %5343 = vmatpush2.bf16.msra.mxu0 0
        %5344 = vmatprep.subr.bf16.mxu0 0
        %5345 = vmatpush2.bf16.msra.mxu0 0
        %5346 = vmatprep.subr.bf16.mxu0 0
        %5347 = vmatpush2.bf16.msra.mxu0 0
        %5348 = vmatprep.subr.bf16.mxu0 0
        %5349 = vmatpush2.bf16.msra.mxu0 0
        %5350 = vmatprep.subr.bf16.mxu0 0
        %5351 = vmatpush2.bf16.msra.mxu0 0
        %5352 = vmatprep.subr.bf16.mxu0 0
        %5353 = vmatpush2.bf16.msra.mxu0 0
        %5354 = vmatprep.subr.bf16.mxu0 0
        %5355 = vmatpush2.bf16.msra.mxu0 0
        %5356 = vmatprep.mubr.bf16.mxu0 0
        %5357 = vmatmul.mubr.bf16.gmra.mxu0 %v5313
        %v5358 = vpop.f32.mrf.mxu0
        %v5359 = vadd.f32 %v5255, %v5358
        %v5360 = vpop.f32.mrf.mxu0
        %v5361 = vadd.f32 %v5255, %v5360
        %v5362 = vpop.f32.mrf.mxu0
        %v5363 = vadd.f32 %v5260, %v5362
        %v5364 = vpop.f32.mrf.mxu0
        %v5365 = vadd.f32 %v5260, %v5364
        %5366 = vmatprep.mubr.bf16.mxu0 0
        %5367 = vmatmul.mubr.bf16.gmra.mxu0 %v5316
        %v5368 = vpop.f32.mrf.mxu0
        %v5369 = vadd.f32 %v5265, %v5368
        %v5370 = vpop.f32.mrf.mxu0
        %v5371 = vadd.f32 %v5265, %v5370
        %v5372 = vpop.f32.mrf.mxu0
        %v5373 = vadd.f32 %v5270, %v5372
        %v5374 = vpop.f32.mrf.mxu0
        %v5375 = vadd.f32 %v5270, %v5374
        %5376 = vmatprep.mubr.bf16.mxu0 0
        %5377 = vmatmul.mubr.bf16.gmra.mxu0 %v5319
        %v5378 = vpop.f32.mrf.mxu0
        %v5379 = vadd.f32 %v5275, %v5378
        %v5380 = vpop.f32.mrf.mxu0
        %v5381 = vadd.f32 %v5275, %v5380
        %v5382 = vpop.f32.mrf.mxu0
        %v5383 = vadd.f32 %v5280, %v5382
        %v5384 = vpop.f32.mrf.mxu0
        %v5385 = vadd.f32 %v5280, %v5384
        %5386 = vmatprep.mubr.bf16.mxu0 0
        %5387 = vmatmul.mubr.bf16.gmra.mxu0 %v5322
        %v5388 = vpop.f32.mrf.mxu0
        %v5389 = vadd.f32 %v5285, %v5388
        %v5390 = vpop.f32.mrf.mxu0
        %v5391 = vadd.f32 %v5285, %v5390
        %v5392 = vpop.f32.mrf.mxu0
        %v5393 = vadd.f32 %v5290, %v5392
        %v5394 = vpop.f32.mrf.mxu0
        %v5395 = vadd.f32 %v5290, %v5394
        %5396 = vdwg.mxu0
        %v5397 = vadd.f32 %v5359, %v305
        %v5398 = vadd.f32 %v5361, %v306
        %v5399 = vadd.f32 %v5363, %v307
        %v5400 = vadd.f32 %v5365, %v308
        %v5401 = vadd.f32 %v5369, %v309
        %v5402 = vadd.f32 %v5371, %v310
        %v5403 = vadd.f32 %v5373, %v311
        %v5404 = vadd.f32 %v5375, %v312
        %v5405 = vadd.f32 %v5379, %v313
        %v5406 = vadd.f32 %v5381, %v314
        %v5407 = vadd.f32 %v5383, %v315
        %v5408 = vadd.f32 %v5385, %v316
        %v5409 = vadd.f32 %v5389, %v317
        %v5410 = vadd.f32 %v5391, %v318
        %v5411 = vadd.f32 %v5393, %v319
        %v5412 = vadd.f32 %v5395, %v320
        %5413 = vst [vmem:[%s298] sm:$0xff] %v5397
        %5414 = vst [vmem:[%s298 + $0x8] sm:$0xff] %v5398
        %5415 = vst [vmem:[%s298 + $0x10] sm:$0xff] %v5399
        %5416 = vst [vmem:[%s298 + $0x18] sm:$0xff] %v5400
        %5417 = vst [vmem:[%s298 + $0x20] sm:$0xff] %v5401
        %5418 = vst [vmem:[%s298 + $0x28] sm:$0xff] %v5402
        %5419 = vst [vmem:[%s298 + $0x30] sm:$0xff] %v5403
        %5420 = vst [vmem:[%s298 + $0x38] sm:$0xff] %v5404
        %5421 = vst [vmem:[%s298 + $0x40] sm:$0xff] %v5405
        %5422 = vst [vmem:[%s298 + $0x48] sm:$0xff] %v5406
        %5423 = vst [vmem:[%s298 + $0x50] sm:$0xff] %v5407
        %5424 = vst [vmem:[%s298 + $0x58] sm:$0xff] %v5408
        %5425 = vst [vmem:[%s298 + $0x60] sm:$0xff] %v5409
        %5426 = vst [vmem:[%s298 + $0x68] sm:$0xff] %v5410
        %5427 = vst [vmem:[%s298 + $0x70] sm:$0xff] %v5411
        %5428 = vst [vmem:[%s298 + $0x78] sm:$0xff] %v5412
        %s5429 = sand.u32 %s203, 1
        %s5430 = scalar_lea.sflag [#allocation3], %s5429
        %s5431 = sand.u32 %s203, 1
        %s5432 = smul.addr %s5431, 128
        %s5433 = scalar_lea.vmem [#allocation2], %s5432
        // Predicated region
        $region53: #{tpu_custom_call.1} parent=51 // pred_check
          %p5434 = pneg %p213
        $region54: #{tpu_custom_call.1} parent=51 // pred_check_branch
          %5436 = sbr.rel (%p5434) target = $region56
        $region55: #{tpu_custom_call.1} parent=51 // pred_region
          %s5438 = ssub.s32 2048, 2048
          %5439 = vsyncadd %s5430, %s5438
          %s5440 = smul.addr %s22, 16
          %s5441 = smul.addr %s5440, 128
          %s5442 = scalar_lea.hbm %s8, %s5441
          %s5443 = sshll.u32 %s5433, 4
          %s5444 = int_to_ptr.vmem [resolvable:$true] %s5443
          %5449 = dma.vmem_to_hbm [thread:$0]  %s5444, 2048, %s5442, %s5430, 256, 256, 16
        $region56: #{tpu_custom_call.1} parent=51 // pred_fallthru
          _
      $region52: #{tpu_custom_call.1} parent=5 // pred_fallthru
        _
      %p5450 = scmp.le.s32.totalorder 2, %s17
      // Predicated region
      $region57: #{tpu_custom_call.1} parent=5 // pred_check
        %p5451 = pneg %p5450
      $region58: #{tpu_custom_call.1} parent=5 // pred_check_branch
        %5453 = sbr.rel (%p5451) target = $region60
      $region59: #{tpu_custom_call.1} parent=5 // pred_region
        %s5454 = ssub.s32 %s17, 2
        // Predicated region
        $region61: #{tpu_custom_call.1} parent=59 // pred_check
          %p5455 = pneg %p219
        $region62: #{tpu_custom_call.1} parent=59 // pred_check_branch
          %5457 = sbr.rel (%p5455) target = $region64
        $region63: #{tpu_custom_call.1} parent=59 // pred_region
          %s5458 = sand.u32 %s204, 1
          %s5459 = scalar_lea.sflag [#allocation3], %s5458
          %s5460 = sand.u32 %s204, 1
          %s5461 = smul.addr %s5460, 128
          %s5462 = scalar_lea.vmem [#allocation2], %s5461
          %5463 = dma.done %s5459, 2048
        $region64: #{tpu_custom_call.1} parent=59 // pred_fallthru
          _
      $region60: #{tpu_custom_call.1} parent=5 // pred_fallthru
        _
    $region6: #{tpu_custom_call.1} parent=1 // loop_footer
      %s21 = sadd.s32 1, %s17
    $region7: #{tpu_custom_call.1} parent=1 // loop_footer_branch
      %16 = sbr.rel target = $region3
    $region8: #{tpu_custom_call.1} parent=1 // loop_exit
      _
    %5464 = vsyncpa [#allocation3], 1
    %s5465 = scalar_lea.sflag [#allocation3], 1
    %5466 = vsyncpa %s5465, 1

</llo_original>
